<compile_context>
chip_gen: v6e
topology: v6e:2x2x1
jax: 0.10.0
libtpu: 0.0.40
codegen_flags: <defaults>
</compile_context>

<pallas_src>
import jax
import jax.numpy as jnp
import numpy as np
from jax.experimental import pallas as pl
from jax.experimental.pallas import tpu as pltpu

LANE = 128


def _pack_conv_weight(w):
    """PyTorch Conv1d weight [Cout, Cin, ks] -> tap-packed [Cin, ks*Cout] bf16."""
    cout, cin, ks = w.shape
    return jnp.transpose(w, (1, 2, 0)).reshape(cin, ks * cout).astype(jnp.bfloat16)


# ----------------------------- Pallas wrapper -------------------------------
def glove_densenet_forward(token_ids, pos_ids, params, cfg, tb=None):
    """DenseNet + LayerNorm + Linear head fused in one Pallas kernel."""
    B, S = token_ids.shape
    kernels = cfg["densenet_kernels"]
    depth, width = len(kernels), len(kernels[0])
    fnf, nf, lnf = (cfg["first_num_filters"], cfg["num_filters"],
                    cfg["last_num_filters"])
    L = cfg["label_size"]
    Lp = ((L + LANE - 1) // LANE) * LANE          # lane-dense output width

    # ---- glue (no clean Pallas equivalent for the embedding gather) ----
    tok_e = params["embed_token"][token_ids]                       # [B,S,Dt]
    pos_e = params["embed_pos"][pos_ids]                           # [B,S,Dp]
    # x is only ever an MXU operand -> ship it to the kernel already in bf16.
    x_emb = jnp.concatenate([tok_e, pos_e], axis=-1).astype(jnp.bfloat16)
    E = x_emb.shape[-1]
    # mask = sign(|token_ids|) -> [B,S,1]; kept narrow, broadcast once in-kernel.
    mask3 = (token_ids != 0).astype(jnp.float32)[:, :, None]

    # ---- batch tile: TB*S >= 128 MXU rows, >=2 parallel grid steps, VMEM cap
    if tb is None:
        tb = B
        if B % 2 == 0 and (B // 2) * S >= 128:
            tb = B // 2                           # dual-TC (v7x) gets both steps
        ch = E + width * (fnf + nf * max(depth - 1, 1)) + lnf + Lp
        row_bytes = 8 * ch                        # f32 live values + slack
        while tb % 2 == 0 and tb * S * row_bytes > 24 * 1024 * 1024:
            tb //= 2                              # stay inside v7x 64 MiB VMEM
    TB = tb
    assert B % TB == 0

    # ---- repack parameters: tap-packed bf16 conv/linear weights, f32 biases/LN
    flat = [x_emb, mask3]
    # depth 0: both width columns read x -> pack their weights along Cout.
    w0 = jnp.concatenate(
        [_pack_conv_weight(params[f"dn_w_0_{j}"]) for j in range(width)], axis=1)
    flat.append(w0)
    for j in range(width):
        flat.append(params[f"dn_b_0_{j}"].reshape(1, -1).astype(jnp.float32))
    for i in range(1, depth):
        for j in range(width):
            flat.append(_pack_conv_weight(params[f"dn_w_{i}_{j}"]))
            flat.append(params[f"dn_b_{i}_{j}"].reshape(1, -1).astype(jnp.float32))
    flat.append(_pack_conv_weight(params["last_w"]))               # ks=1
    flat.append(params["last_b"].reshape(1, -1).astype(jnp.float32))
    flat.append(params["ln_g"].reshape(1, -1).astype(jnp.float32))
    flat.append(params["ln_b"].reshape(1, -1).astype(jnp.float32))
    D = params["lin_w"].shape[1]
    wlin = (jnp.zeros((D, Lp), jnp.float32)
            .at[:, :L].set(params["lin_w"].T.astype(jnp.float32))
            .astype(jnp.bfloat16))
    blin = jnp.zeros((1, Lp), jnp.float32).at[0, :L].set(
        params["lin_b"].astype(jnp.float32))
    flat += [wlin, blin]

    # ------------------------------ kernel ----------------------------------
    def kernel(*refs):
        x_ref, m_ref = refs[0], refs[1]
        out_ref = refs[-1]
        pos = [2]

        def nxt():
            r = refs[pos[0]]
            pos[0] += 1
            return r

        w0_ref = nxt()
        b0_refs = [nxt() for _ in range(width)]
        dn_w, dn_b = {}, {}
        for i in range(1, depth):
            for j in range(width):
                dn_w[(i, j)] = nxt()
                dn_b[(i, j)] = nxt()
        wl_ref, bl_ref = nxt(), nxt()
        g_ref, be_ref = nxt(), nxt()
        wlin_ref, blin_ref = nxt(), nxt()

        R = TB * S
        x = x_ref[...].reshape(R, E)              # bf16 (MXU operand only)
        m1 = m_ref[...].reshape(R, 1)             # f32 token mask (0/1)

        # ---- hoisted broadcasts (JAX does not CSE broadcast_in_dim) ----
        mask_cache = {}

        def tok_mask(c):
            if c not in mask_cache:
                mask_cache[c] = jnp.broadcast_to(m1, (R, c))
            return mask_cache[c]

        valid_cache = {}

        def valid_mask(d, c):
            # True where the tap's shifted source position t+d lies in [0, S).
            key = (d, c)
            if key not in valid_cache:
                t = jax.lax.broadcasted_iota(jnp.int32, (TB, S, c), 1)
                t = t.reshape(R, c)
                valid_cache[key] = (t < (S - d)) if d > 0 else (t >= -d)
            return valid_cache[key]

        def taps_to_out(z, base, ks, cout, b_ref):
            # z: [R, *] f32 tap-packed conv partial sums; combine ks taps with
            # sublane rolls + masked adds, add bias once, token-mask, ReLU.
            p = (ks - 1) // 2
            y = None
            for k in range(ks):
                d = k - p
                zk = z[:, base + k * cout: base + (k + 1) * cout]
                if d != 0:
                    zk = pltpu.roll(zk, (-d) % R, axis=0)     # out[r] = z[r+d]
                    zk = jnp.where(valid_mask(d, cout), zk, 0.0)
                y = zk if y is None else y + zk
            y = jnp.maximum((y + b_ref[...]) * tok_mask(cout), 0.0)
            return y.astype(jnp.bfloat16)          # only feeds later MXU ops

        def parts_matmul(parts, w_ref):
            # sum_p parts[p] @ w_ref[row_p:row_p+c_p, :]  (static ref slices,
            # f32 accumulation) -- no channel-concat materialization.
            acc, row = None, 0
            for xp in parts:
                c = xp.shape[-1]
                z = jnp.dot(xp, w_ref[row:row + c, :],
                            preferred_element_type=jnp.float32)
                acc = z if acc is None else acc + z
                row += c
            return acc

        # ---- DenseNet ----
        # depth 0: one wide matmul for all width columns (shared input x).
        z0 = jnp.dot(x, w0_ref[...], preferred_element_type=jnp.float32)
        col_results, base = [], 0
        for j in range(width):
            ks = kernels[0][j]
            r0 = taps_to_out(z0, base, ks, fnf, b0_refs[j])
            base += ks * fnf
            col_results.append([r0])

        for i in range(1, depth):
            for j in range(width):
                ks = kernels[i][j]
                z = parts_matmul(col_results[j], dn_w[(i, j)])
                col_results[j].append(taps_to_out(z, 0, ks, nf, dn_b[(i, j)]))

        # Final 1x1 conv over cat([x] + merge_list) -- split-weight accumulation.
        parts = [x] + [col_results[j][-1] for j in range(width)]
        z = parts_matmul(parts, wl_ref)
        h = jnp.maximum((z + bl_ref[...]) * tok_mask(lnf), 0.0)   # f32 [R,lnf]

        # LayerNorm over features (f32 statistics, eps = nn.LayerNorm default).
        mu = jnp.mean(h, axis=-1, keepdims=True)
        var = jnp.mean((h - mu) ** 2, axis=-1, keepdims=True)
        hn = (h - mu) * jax.lax.rsqrt(var + 1e-5)
        hn = hn * g_ref[...] + be_ref[...]

        # Token-classification Linear, lane-dense (label dim padded to 128).
        logits = jnp.dot(hn.astype(jnp.bfloat16), wlin_ref[...],
                         preferred_element_type=jnp.float32) + blin_ref[...]
        out_ref[...] = logits.reshape(TB, S, Lp)

    # ------------------------------ specs -----------------------------------
    def const_spec(a):
        nd = a.ndim
        return pl.BlockSpec(a.shape, lambda b, _n=nd: (0,) * _n)

    in_specs = [pl.BlockSpec((TB, S, E), lambda b: (b, 0, 0)),
                pl.BlockSpec((TB, S, 1), lambda b: (b, 0, 0))]
    in_specs += [const_spec(a) for a in flat[2:]]
    out_spec = pl.BlockSpec((TB, S, Lp), lambda b: (b, 0, 0))

    logits_p = pl.pallas_call(
        kernel,
        out_shape=jax.ShapeDtypeStruct((B, S, Lp), jnp.float32),
        grid_spec=pltpu.PrefetchScalarGridSpec(
            num_scalar_prefetch=0,
            grid=(B // TB,),
            in_specs=in_specs,
            out_specs=out_spec),
        compiler_params=pltpu.CompilerParams(
            dimension_semantics=("parallel",),
            vmem_limit_bytes=48 * 1024 * 1024),
    )(*flat)

    return logits_p[:, :, :L]


# --------------------------- pure-JAX reference ------------------------------
def reference_logits(token_ids, pos_ids, params, cfg):
    kernels = cfg["densenet_kernels"]
    depth, width = len(kernels), len(kernels[0])
    tok_e = params["embed_token"][token_ids]
    pos_e = params["embed_pos"][pos_ids]
    x_emb = jnp.concatenate([tok_e, pos_e], axis=-1)
    mask = (token_ids != 0).astype(jnp.float32)

    x = jnp.transpose(x_emb, (0, 2, 1))                 # [B, C, S]
    m = mask[:, None, :]                                # [B, 1, S]

    def conv1d(x_ncw, w, b, ks):
        p = (ks - 1) // 2
        y = jax.lax.conv_general_dilated(
            x_ncw, w, window_strides=(1,), padding=[(p, p)],
            dimension_numbers=("NCH", "OIH", "NCH"),
            precision=jax.lax.Precision.HIGHEST)
        return y + b[None, :, None]

    merge = []
    for j in range(width):
        results = []
        for i in range(depth):
            conv_in = x if i == 0 else jnp.concatenate(results, axis=1)
            y = conv1d(conv_in, params[f"dn_w_{i}_{j}"], params[f"dn_b_{i}_{j}"],
                       kernels[i][j])
            results.append(jax.nn.relu(y * m))
        merge.append(results[-1])

    y = conv1d(jnp.concatenate([x] + merge, axis=1),
               params["last_w"], params["last_b"], 1)
    h = jnp.transpose(jax.nn.relu(y * m), (0, 2, 1))    # [B, S, D]

    mu = h.mean(-1, keepdims=True)
    var = ((h - mu) ** 2).mean(-1, keepdims=True)
    hn = (h - mu) / jnp.sqrt(var + 1e-5) * params["ln_g"] + params["ln_b"]
    return jnp.einsum("bsd,ld->bsl", hn, params["lin_w"],
                      precision=jax.lax.Precision.HIGHEST) + params["lin_b"]


# ------------------------------ parameters -----------------------------------
def init_params(key, cfg):
    kernels = cfg["densenet_kernels"]
    depth, width = len(kernels), len(kernels[0])
    Dt, Dp = cfg["token_emb_dim"], cfg["pos_emb_dim"]
    E = Dt + Dp
    fnf, nf, lnf = (cfg["first_num_filters"], cfg["num_filters"],
                    cfg["last_num_filters"])
    L = cfg["label_size"]
    keys = iter(jax.random.split(key, 32))

    def nrm(shape, s):
        return (s * jax.random.normal(next(keys), shape)).astype(jnp.float32)

    p = {}
    p["embed_token"] = nrm((cfg["vocab_size"], Dt), 0.5).at[0].set(0.0)   # pad idx 0
    p["embed_pos"] = nrm((cfg["pos_vocab_size"], Dp), 0.5).at[0].set(0.0)
    for i in range(depth):
        cin = E if i == 0 else fnf + nf * (i - 1)
        cout = fnf if i == 0 else nf
        for j in range(width):
            ks = kernels[i][j]
            p[f"dn_w_{i}_{j}"] = nrm((cout, cin, ks), 1.0 / np.sqrt(cin * ks))
            p[f"dn_b_{i}_{j}"] = nrm((cout,), 0.1)
    cin_last = E + nf * width
    p["last_w"] = nrm((lnf, cin_last, 1), 1.0 / np.sqrt(cin_last))
    p["last_b"] = nrm((lnf,), 0.1)
    p["ln_g"] = jnp.ones((lnf,), jnp.float32)
    p["ln_b"] = jnp.zeros((lnf,), jnp.float32)
    p["lin_w"] = nrm((L, lnf), 1.0 / np.sqrt(lnf))
    p["lin_b"] = nrm((L,), 0.1)
    return p


if __name__ == "__main__":
    cfg = dict(
        n_ctx=16, token_emb_dim=32, pos_emb_dim=16,
        vocab_size=100, pos_vocab_size=12,
        densenet_kernels=[[3, 5], [3, 5], [3, 5]],     # depth=3, width=2
        first_num_filters=32, num_filters=32, last_num_filters=64,
        label_size=9,
    )
    B, S = 16, cfg["n_ctx"]
    key = jax.random.PRNGKey(0)
    kp, kt, kq, kl = jax.random.split(key, 4)
    params = init_params(kp, cfg)

    # Inputs mirror the PyTorch module: (token_ids, pos_ids); pad id = 0.
    lengths = jax.random.randint(kl, (B,), 3, S + 1)
    valid = jnp.arange(S)[None, :] < lengths[:, None]
    token_ids = jnp.where(valid,
                          jax.random.randint(kt, (B, S), 1, cfg["vocab_size"]), 0)
    pos_ids = jnp.where(valid,
                        jax.random.randint(kq, (B, S), 1, cfg["pos_vocab_size"]), 0)

    logits = glove_densenet_forward(token_ids, pos_ids, params, cfg)
    logits = jax.block_until_ready(logits)

    ref = reference_logits(token_ids, pos_ids, params, cfg)
    assert logits.shape == (B, S, cfg["label_size"])
    # bf16 MXU operands with f32 accumulation vs f32-HIGHEST reference.
    np.testing.assert_allclose(np.asarray(logits), np.asarray(ref),
                               atol=5e-2, rtol=5e-2)
    print("KERNEL_OK")
</pallas_src>

<mosaic_0001>
module attributes {stable_mosaic.version = 11 : i64} {
  func.func @kernel(%arg0: i32, %arg1: memref<8x16x48xbf16, #tpu.memory_space<vmem>>, %arg2: memref<8x16x1xf32, #tpu.memory_space<vmem>>, %arg3: memref<48x256xbf16, #tpu.memory_space<vmem>>, %arg4: memref<1x32xf32, #tpu.memory_space<vmem>>, %arg5: memref<1x32xf32, #tpu.memory_space<vmem>>, %arg6: memref<32x96xbf16, #tpu.memory_space<vmem>>, %arg7: memref<1x32xf32, #tpu.memory_space<vmem>>, %arg8: memref<32x160xbf16, #tpu.memory_space<vmem>>, %arg9: memref<1x32xf32, #tpu.memory_space<vmem>>, %arg10: memref<64x96xbf16, #tpu.memory_space<vmem>>, %arg11: memref<1x32xf32, #tpu.memory_space<vmem>>, %arg12: memref<64x160xbf16, #tpu.memory_space<vmem>>, %arg13: memref<1x32xf32, #tpu.memory_space<vmem>>, %arg14: memref<112x64xbf16, #tpu.memory_space<vmem>>, %arg15: memref<1x64xf32, #tpu.memory_space<vmem>>, %arg16: memref<1x64xf32, #tpu.memory_space<vmem>>, %arg17: memref<1x64xf32, #tpu.memory_space<vmem>>, %arg18: memref<64x128xbf16, #tpu.memory_space<vmem>>, %arg19: memref<1x128xf32, #tpu.memory_space<vmem>>, %arg20: memref<8x16x128xf32, #tpu.memory_space<vmem>>) attributes {dimension_semantics = [#tpu.dimension_semantics<parallel>], iteration_bounds = array<i64: 2>, scalar_prefetch = 0 : i64, scratch_operands = 0 : i64, tpu.core_type = #tpu.core_type<tc>, window_params = [{transform_indices = @transform_0, window_bounds = array<i64: 8, 16, 48>}, {transform_indices = @transform_1, window_bounds = array<i64: 8, 16, 1>}, {pipeline_mode = #tpu.pipeline_mode<synchronous>, transform_indices = @transform_2, window_bounds = array<i64: 48, 256>}, {pipeline_mode = #tpu.pipeline_mode<synchronous>, transform_indices = @transform_3, window_bounds = array<i64: 1, 32>}, {pipeline_mode = #tpu.pipeline_mode<synchronous>, transform_indices = @transform_4, window_bounds = array<i64: 1, 32>}, {pipeline_mode = #tpu.pipeline_mode<synchronous>, transform_indices = @transform_5, window_bounds = array<i64: 32, 96>}, {pipeline_mode = #tpu.pipeline_mode<synchronous>, transform_indices = @transform_6, window_bounds = array<i64: 1, 32>}, {pipeline_mode = #tpu.pipeline_mode<synchronous>, transform_indices = @transform_7, window_bounds = array<i64: 32, 160>}, {pipeline_mode = #tpu.pipeline_mode<synchronous>, transform_indices = @transform_8, window_bounds = array<i64: 1, 32>}, {pipeline_mode = #tpu.pipeline_mode<synchronous>, transform_indices = @transform_9, window_bounds = array<i64: 64, 96>}, {pipeline_mode = #tpu.pipeline_mode<synchronous>, transform_indices = @transform_10, window_bounds = array<i64: 1, 32>}, {pipeline_mode = #tpu.pipeline_mode<synchronous>, transform_indices = @transform_11, window_bounds = array<i64: 64, 160>}, {pipeline_mode = #tpu.pipeline_mode<synchronous>, transform_indices = @transform_12, window_bounds = array<i64: 1, 32>}, {pipeline_mode = #tpu.pipeline_mode<synchronous>, transform_indices = @transform_13, window_bounds = array<i64: 112, 64>}, {pipeline_mode = #tpu.pipeline_mode<synchronous>, transform_indices = @transform_14, window_bounds = array<i64: 1, 64>}, {pipeline_mode = #tpu.pipeline_mode<synchronous>, transform_indices = @transform_15, window_bounds = array<i64: 1, 64>}, {pipeline_mode = #tpu.pipeline_mode<synchronous>, transform_indices = @transform_16, window_bounds = array<i64: 1, 64>}, {pipeline_mode = #tpu.pipeline_mode<synchronous>, transform_indices = @transform_17, window_bounds = array<i64: 64, 128>}, {pipeline_mode = #tpu.pipeline_mode<synchronous>, transform_indices = @transform_18, window_bounds = array<i64: 1, 128>}, {transform_indices = @transform_19, window_bounds = array<i64: 8, 16, 128>}]} {
    %c0 = arith.constant 0 : index
    %c0_0 = arith.constant 0 : index
    %c0_1 = arith.constant 0 : index
    %0 = vector.load %arg1[%c0, %c0_0, %c0_1] : memref<8x16x48xbf16, #tpu.memory_space<vmem>>, vector<8x16x48xbf16>
    %1 = vector.shape_cast %0 : vector<8x16x48xbf16> to vector<128x48xbf16>
    %c0_2 = arith.constant 0 : index
    %c0_3 = arith.constant 0 : index
    %c0_4 = arith.constant 0 : index
    %2 = vector.load %arg2[%c0_2, %c0_3, %c0_4] : memref<8x16x1xf32, #tpu.memory_space<vmem>>, vector<8x16x1xf32>
    %3 = vector.shape_cast %2 : vector<8x16x1xf32> to vector<128x1xf32>
    %c0_5 = arith.constant 0 : index
    %c0_6 = arith.constant 0 : index
    %4 = vector.load %arg3[%c0_5, %c0_6] : memref<48x256xbf16, #tpu.memory_space<vmem>>, vector<48x256xbf16>
    %cst = arith.constant dense<0.000000e+00> : vector<128x256xf32>
    %5 = tpu.matmul %1, %4, %cst {dimension_numbers = #tpu.dot_dimension_numbers<[1], [0], [0], [1], [0, 0, 1, 1], [], []>} : vector<128x48xbf16>, vector<48x256xbf16>, vector<128x256xf32> -> vector<128x256xf32>
    %6 = vector.extract_strided_slice %5 {offsets = [0, 0], sizes = [128, 32], strides = [1, 1]} : vector<128x256xf32> to vector<128x32xf32>
    %c1_i32 = arith.constant 1 : i32
    %7 = tpu.dynamic_rotate %6 by %c1_i32 dim 0 : vector<128x32xf32>, i32 -> vector<128x32xf32>
    %8 = tpu.iota {dimensions = array<i32: 1>} : vector<8x16x32xi32>
    %9 = vector.shape_cast %8 : vector<8x16x32xi32> to vector<128x32xi32>
    %c1_i32_7 = arith.constant 1 : i32
    %10 = vector.broadcast %c1_i32_7 : i32 to vector<128x32xi32>
    %11 = arith.cmpi sge, %9, %10 : vector<128x32xi32>
    %cst_8 = arith.constant 0.000000e+00 : f32
    %12 = vector.broadcast %cst_8 : f32 to vector<128x32xf32>
    %13 = arith.select %11, %7, %12 : vector<128x32xi1>, vector<128x32xf32>
    %14 = vector.extract_strided_slice %5 {offsets = [0, 32], sizes = [128, 32], strides = [1, 1]} : vector<128x256xf32> to vector<128x32xf32>
    %15 = arith.addf %13, %14 : vector<128x32xf32>
    %16 = vector.extract_strided_slice %5 {offsets = [0, 64], sizes = [128, 32], strides = [1, 1]} : vector<128x256xf32> to vector<128x32xf32>
    %c127_i32 = arith.constant 127 : i32
    %17 = tpu.dynamic_rotate %16 by %c127_i32 dim 0 : vector<128x32xf32>, i32 -> vector<128x32xf32>
    %18 = tpu.iota {dimensions = array<i32: 1>} : vector<8x16x32xi32>
    %19 = vector.shape_cast %18 : vector<8x16x32xi32> to vector<128x32xi32>
    %c15_i32 = arith.constant 15 : i32
    %20 = vector.broadcast %c15_i32 : i32 to vector<128x32xi32>
    %21 = arith.cmpi slt, %19, %20 : vector<128x32xi32>
    %cst_9 = arith.constant 0.000000e+00 : f32
    %22 = vector.broadcast %cst_9 : f32 to vector<128x32xf32>
    %23 = arith.select %21, %17, %22 : vector<128x32xi1>, vector<128x32xf32>
    %24 = arith.addf %15, %23 : vector<128x32xf32>
    %c0_10 = arith.constant 0 : index
    %c0_11 = arith.constant 0 : index
    %25 = vector.load %arg4[%c0_10, %c0_11] : memref<1x32xf32, #tpu.memory_space<vmem>>, vector<1x32xf32>
    %26 = vector.broadcast %25 : vector<1x32xf32> to vector<128x32xf32>
    %27 = arith.addf %24, %26 : vector<128x32xf32>
    %28 = vector.shape_cast %3 : vector<128x1xf32> to vector<128x1xf32>
    %29 = vector.broadcast %28 : vector<128x1xf32> to vector<128x32xf32>
    %30 = arith.mulf %27, %29 : vector<128x32xf32>
    %cst_12 = arith.constant 0.000000e+00 : f32
    %31 = vector.broadcast %cst_12 : f32 to vector<128x32xf32>
    %32 = arith.maximumf %30, %31 : vector<128x32xf32>
    %33 = arith.truncf %32 : vector<128x32xf32> to vector<128x32xbf16>
    %34 = vector.extract_strided_slice %5 {offsets = [0, 96], sizes = [128, 32], strides = [1, 1]} : vector<128x256xf32> to vector<128x32xf32>
    %c2_i32 = arith.constant 2 : i32
    %35 = tpu.dynamic_rotate %34 by %c2_i32 dim 0 : vector<128x32xf32>, i32 -> vector<128x32xf32>
    %36 = tpu.iota {dimensions = array<i32: 1>} : vector<8x16x32xi32>
    %37 = vector.shape_cast %36 : vector<8x16x32xi32> to vector<128x32xi32>
    %c2_i32_13 = arith.constant 2 : i32
    %38 = vector.broadcast %c2_i32_13 : i32 to vector<128x32xi32>
    %39 = arith.cmpi sge, %37, %38 : vector<128x32xi32>
    %cst_14 = arith.constant 0.000000e+00 : f32
    %40 = vector.broadcast %cst_14 : f32 to vector<128x32xf32>
    %41 = arith.select %39, %35, %40 : vector<128x32xi1>, vector<128x32xf32>
    %42 = vector.extract_strided_slice %5 {offsets = [0, 128], sizes = [128, 32], strides = [1, 1]} : vector<128x256xf32> to vector<128x32xf32>
    %c1_i32_15 = arith.constant 1 : i32
    %43 = tpu.dynamic_rotate %42 by %c1_i32_15 dim 0 : vector<128x32xf32>, i32 -> vector<128x32xf32>
    %cst_16 = arith.constant 0.000000e+00 : f32
    %44 = vector.broadcast %cst_16 : f32 to vector<128x32xf32>
    %45 = arith.select %11, %43, %44 : vector<128x32xi1>, vector<128x32xf32>
    %46 = arith.addf %41, %45 : vector<128x32xf32>
    %47 = vector.extract_strided_slice %5 {offsets = [0, 160], sizes = [128, 32], strides = [1, 1]} : vector<128x256xf32> to vector<128x32xf32>
    %48 = arith.addf %46, %47 : vector<128x32xf32>
    %49 = vector.extract_strided_slice %5 {offsets = [0, 192], sizes = [128, 32], strides = [1, 1]} : vector<128x256xf32> to vector<128x32xf32>
    %c127_i32_17 = arith.constant 127 : i32
    %50 = tpu.dynamic_rotate %49 by %c127_i32_17 dim 0 : vector<128x32xf32>, i32 -> vector<128x32xf32>
    %cst_18 = arith.constant 0.000000e+00 : f32
    %51 = vector.broadcast %cst_18 : f32 to vector<128x32xf32>
    %52 = arith.select %21, %50, %51 : vector<128x32xi1>, vector<128x32xf32>
    %53 = arith.addf %48, %52 : vector<128x32xf32>
    %54 = vector.extract_strided_slice %5 {offsets = [0, 224], sizes = [128, 32], strides = [1, 1]} : vector<128x256xf32> to vector<128x32xf32>
    %c126_i32 = arith.constant 126 : i32
    %55 = tpu.dynamic_rotate %54 by %c126_i32 dim 0 : vector<128x32xf32>, i32 -> vector<128x32xf32>
    %56 = tpu.iota {dimensions = array<i32: 1>} : vector<8x16x32xi32>
    %57 = vector.shape_cast %56 : vector<8x16x32xi32> to vector<128x32xi32>
    %c14_i32 = arith.constant 14 : i32
    %58 = vector.broadcast %c14_i32 : i32 to vector<128x32xi32>
    %59 = arith.cmpi slt, %57, %58 : vector<128x32xi32>
    %cst_19 = arith.constant 0.000000e+00 : f32
    %60 = vector.broadcast %cst_19 : f32 to vector<128x32xf32>
    %61 = arith.select %59, %55, %60 : vector<128x32xi1>, vector<128x32xf32>
    %62 = arith.addf %53, %61 : vector<128x32xf32>
    %c0_20 = arith.constant 0 : index
    %c0_21 = arith.constant 0 : index
    %63 = vector.load %arg5[%c0_20, %c0_21] : memref<1x32xf32, #tpu.memory_space<vmem>>, vector<1x32xf32>
    %64 = vector.broadcast %63 : vector<1x32xf32> to vector<128x32xf32>
    %65 = arith.addf %62, %64 : vector<128x32xf32>
    %66 = arith.mulf %65, %29 : vector<128x32xf32>
    %cst_22 = arith.constant 0.000000e+00 : f32
    %67 = vector.broadcast %cst_22 : f32 to vector<128x32xf32>
    %68 = arith.maximumf %66, %67 : vector<128x32xf32>
    %69 = arith.truncf %68 : vector<128x32xf32> to vector<128x32xbf16>
    %c0_23 = arith.constant 0 : index
    %c0_24 = arith.constant 0 : index
    %70 = vector.load %arg6[%c0_23, %c0_24] : memref<32x96xbf16, #tpu.memory_space<vmem>>, vector<32x96xbf16>
    %cst_25 = arith.constant dense<0.000000e+00> : vector<128x96xf32>
    %71 = tpu.matmul %33, %70, %cst_25 {dimension_numbers = #tpu.dot_dimension_numbers<[1], [0], [0], [1], [0, 0, 1, 1], [], []>} : vector<128x32xbf16>, vector<32x96xbf16>, vector<128x96xf32> -> vector<128x96xf32>
    %72 = vector.extract_strided_slice %71 {offsets = [0, 0], sizes = [128, 32], strides = [1, 1]} : vector<128x96xf32> to vector<128x32xf32>
    %c1_i32_26 = arith.constant 1 : i32
    %73 = tpu.dynamic_rotate %72 by %c1_i32_26 dim 0 : vector<128x32xf32>, i32 -> vector<128x32xf32>
    %cst_27 = arith.constant 0.000000e+00 : f32
    %74 = vector.broadcast %cst_27 : f32 to vector<128x32xf32>
    %75 = arith.select %11, %73, %74 : vector<128x32xi1>, vector<128x32xf32>
    %76 = vector.extract_strided_slice %71 {offsets = [0, 32], sizes = [128, 32], strides = [1, 1]} : vector<128x96xf32> to vector<128x32xf32>
    %77 = arith.addf %75, %76 : vector<128x32xf32>
    %78 = vector.extract_strided_slice %71 {offsets = [0, 64], sizes = [128, 32], strides = [1, 1]} : vector<128x96xf32> to vector<128x32xf32>
    %c127_i32_28 = arith.constant 127 : i32
    %79 = tpu.dynamic_rotate %78 by %c127_i32_28 dim 0 : vector<128x32xf32>, i32 -> vector<128x32xf32>
    %cst_29 = arith.constant 0.000000e+00 : f32
    %80 = vector.broadcast %cst_29 : f32 to vector<128x32xf32>
    %81 = arith.select %21, %79, %80 : vector<128x32xi1>, vector<128x32xf32>
    %82 = arith.addf %77, %81 : vector<128x32xf32>
    %c0_30 = arith.constant 0 : index
    %c0_31 = arith.constant 0 : index
    %83 = vector.load %arg7[%c0_30, %c0_31] : memref<1x32xf32, #tpu.memory_space<vmem>>, vector<1x32xf32>
    %84 = vector.broadcast %83 : vector<1x32xf32> to vector<128x32xf32>
    %85 = arith.addf %82, %84 : vector<128x32xf32>
    %86 = arith.mulf %85, %29 : vector<128x32xf32>
    %cst_32 = arith.constant 0.000000e+00 : f32
    %87 = vector.broadcast %cst_32 : f32 to vector<128x32xf32>
    %88 = arith.maximumf %86, %87 : vector<128x32xf32>
    %89 = arith.truncf %88 : vector<128x32xf32> to vector<128x32xbf16>
    %c0_33 = arith.constant 0 : index
    %c0_34 = arith.constant 0 : index
    %90 = vector.load %arg8[%c0_33, %c0_34] : memref<32x160xbf16, #tpu.memory_space<vmem>>, vector<32x160xbf16>
    %cst_35 = arith.constant dense<0.000000e+00> : vector<128x160xf32>
    %91 = tpu.matmul %69, %90, %cst_35 {dimension_numbers = #tpu.dot_dimension_numbers<[1], [0], [0], [1], [0, 0, 1, 1], [], []>} : vector<128x32xbf16>, vector<32x160xbf16>, vector<128x160xf32> -> vector<128x160xf32>
    %92 = vector.extract_strided_slice %91 {offsets = [0, 0], sizes = [128, 32], strides = [1, 1]} : vector<128x160xf32> to vector<128x32xf32>
    %c2_i32_36 = arith.constant 2 : i32
    %93 = tpu.dynamic_rotate %92 by %c2_i32_36 dim 0 : vector<128x32xf32>, i32 -> vector<128x32xf32>
    %cst_37 = arith.constant 0.000000e+00 : f32
    %94 = vector.broadcast %cst_37 : f32 to vector<128x32xf32>
    %95 = arith.select %39, %93, %94 : vector<128x32xi1>, vector<128x32xf32>
    %96 = vector.extract_strided_slice %91 {offsets = [0, 32], sizes = [128, 32], strides = [1, 1]} : vector<128x160xf32> to vector<128x32xf32>
    %c1_i32_38 = arith.constant 1 : i32
    %97 = tpu.dynamic_rotate %96 by %c1_i32_38 dim 0 : vector<128x32xf32>, i32 -> vector<128x32xf32>
    %cst_39 = arith.constant 0.000000e+00 : f32
    %98 = vector.broadcast %cst_39 : f32 to vector<128x32xf32>
    %99 = arith.select %11, %97, %98 : vector<128x32xi1>, vector<128x32xf32>
    %100 = arith.addf %95, %99 : vector<128x32xf32>
    %101 = vector.extract_strided_slice %91 {offsets = [0, 64], sizes = [128, 32], strides = [1, 1]} : vector<128x160xf32> to vector<128x32xf32>
    %102 = arith.addf %100, %101 : vector<128x32xf32>
    %103 = vector.extract_strided_slice %91 {offsets = [0, 96], sizes = [128, 32], strides = [1, 1]} : vector<128x160xf32> to vector<128x32xf32>
    %c127_i32_40 = arith.constant 127 : i32
    %104 = tpu.dynamic_rotate %103 by %c127_i32_40 dim 0 : vector<128x32xf32>, i32 -> vector<128x32xf32>
    %cst_41 = arith.constant 0.000000e+00 : f32
    %105 = vector.broadcast %cst_41 : f32 to vector<128x32xf32>
    %106 = arith.select %21, %104, %105 : vector<128x32xi1>, vector<128x32xf32>
    %107 = arith.addf %102, %106 : vector<128x32xf32>
    %108 = vector.extract_strided_slice %91 {offsets = [0, 128], sizes = [128, 32], strides = [1, 1]} : vector<128x160xf32> to vector<128x32xf32>
    %c126_i32_42 = arith.constant 126 : i32
    %109 = tpu.dynamic_rotate %108 by %c126_i32_42 dim 0 : vector<128x32xf32>, i32 -> vector<128x32xf32>
    %cst_43 = arith.constant 0.000000e+00 : f32
    %110 = vector.broadcast %cst_43 : f32 to vector<128x32xf32>
    %111 = arith.select %59, %109, %110 : vector<128x32xi1>, vector<128x32xf32>
    %112 = arith.addf %107, %111 : vector<128x32xf32>
    %c0_44 = arith.constant 0 : index
    %c0_45 = arith.constant 0 : index
    %113 = vector.load %arg9[%c0_44, %c0_45] : memref<1x32xf32, #tpu.memory_space<vmem>>, vector<1x32xf32>
    %114 = vector.broadcast %113 : vector<1x32xf32> to vector<128x32xf32>
    %115 = arith.addf %112, %114 : vector<128x32xf32>
    %116 = arith.mulf %115, %29 : vector<128x32xf32>
    %cst_46 = arith.constant 0.000000e+00 : f32
    %117 = vector.broadcast %cst_46 : f32 to vector<128x32xf32>
    %118 = arith.maximumf %116, %117 : vector<128x32xf32>
    %119 = arith.truncf %118 : vector<128x32xf32> to vector<128x32xbf16>
    %c0_47 = arith.constant 0 : index
    %c0_48 = arith.constant 0 : index
    %120 = vector.load %arg10[%c0_47, %c0_48] : memref<64x96xbf16, #tpu.memory_space<vmem>>, vector<32x96xbf16>
    %cst_49 = arith.constant dense<0.000000e+00> : vector<128x96xf32>
    %121 = tpu.matmul %33, %120, %cst_49 {dimension_numbers = #tpu.dot_dimension_numbers<[1], [0], [0], [1], [0, 0, 1, 1], [], []>} : vector<128x32xbf16>, vector<32x96xbf16>, vector<128x96xf32> -> vector<128x96xf32>
    %c32 = arith.constant 32 : index
    %c0_50 = arith.constant 0 : index
    %122 = vector.load %arg10[%c32, %c0_50] : memref<64x96xbf16, #tpu.memory_space<vmem>>, vector<32x96xbf16>
    %cst_51 = arith.constant dense<0.000000e+00> : vector<128x96xf32>
    %123 = tpu.matmul %89, %122, %cst_51 {dimension_numbers = #tpu.dot_dimension_numbers<[1], [0], [0], [1], [0, 0, 1, 1], [], []>} : vector<128x32xbf16>, vector<32x96xbf16>, vector<128x96xf32> -> vector<128x96xf32>
    %124 = arith.addf %121, %123 : vector<128x96xf32>
    %125 = vector.extract_strided_slice %124 {offsets = [0, 0], sizes = [128, 32], strides = [1, 1]} : vector<128x96xf32> to vector<128x32xf32>
    %c1_i32_52 = arith.constant 1 : i32
    %126 = tpu.dynamic_rotate %125 by %c1_i32_52 dim 0 : vector<128x32xf32>, i32 -> vector<128x32xf32>
    %cst_53 = arith.constant 0.000000e+00 : f32
    %127 = vector.broadcast %cst_53 : f32 to vector<128x32xf32>
    %128 = arith.select %11, %126, %127 : vector<128x32xi1>, vector<128x32xf32>
    %129 = vector.extract_strided_slice %124 {offsets = [0, 32], sizes = [128, 32], strides = [1, 1]} : vector<128x96xf32> to vector<128x32xf32>
    %130 = arith.addf %128, %129 : vector<128x32xf32>
    %131 = vector.extract_strided_slice %124 {offsets = [0, 64], sizes = [128, 32], strides = [1, 1]} : vector<128x96xf32> to vector<128x32xf32>
    %c127_i32_54 = arith.constant 127 : i32
    %132 = tpu.dynamic_rotate %131 by %c127_i32_54 dim 0 : vector<128x32xf32>, i32 -> vector<128x32xf32>
    %cst_55 = arith.constant 0.000000e+00 : f32
    %133 = vector.broadcast %cst_55 : f32 to vector<128x32xf32>
    %134 = arith.select %21, %132, %133 : vector<128x32xi1>, vector<128x32xf32>
    %135 = arith.addf %130, %134 : vector<128x32xf32>
    %c0_56 = arith.constant 0 : index
    %c0_57 = arith.constant 0 : index
    %136 = vector.load %arg11[%c0_56, %c0_57] : memref<1x32xf32, #tpu.memory_space<vmem>>, vector<1x32xf32>
    %137 = vector.broadcast %136 : vector<1x32xf32> to vector<128x32xf32>
    %138 = arith.addf %135, %137 : vector<128x32xf32>
    %139 = arith.mulf %138, %29 : vector<128x32xf32>
    %cst_58 = arith.constant 0.000000e+00 : f32
    %140 = vector.broadcast %cst_58 : f32 to vector<128x32xf32>
    %141 = arith.maximumf %139, %140 : vector<128x32xf32>
    %142 = arith.truncf %141 : vector<128x32xf32> to vector<128x32xbf16>
    %c0_59 = arith.constant 0 : index
    %c0_60 = arith.constant 0 : index
    %143 = vector.load %arg12[%c0_59, %c0_60] : memref<64x160xbf16, #tpu.memory_space<vmem>>, vector<32x160xbf16>
    %cst_61 = arith.constant dense<0.000000e+00> : vector<128x160xf32>
    %144 = tpu.matmul %69, %143, %cst_61 {dimension_numbers = #tpu.dot_dimension_numbers<[1], [0], [0], [1], [0, 0, 1, 1], [], []>} : vector<128x32xbf16>, vector<32x160xbf16>, vector<128x160xf32> -> vector<128x160xf32>
    %c32_62 = arith.constant 32 : index
    %c0_63 = arith.constant 0 : index
    %145 = vector.load %arg12[%c32_62, %c0_63] : memref<64x160xbf16, #tpu.memory_space<vmem>>, vector<32x160xbf16>
    %cst_64 = arith.constant dense<0.000000e+00> : vector<128x160xf32>
    %146 = tpu.matmul %119, %145, %cst_64 {dimension_numbers = #tpu.dot_dimension_numbers<[1], [0], [0], [1], [0, 0, 1, 1], [], []>} : vector<128x32xbf16>, vector<32x160xbf16>, vector<128x160xf32> -> vector<128x160xf32>
    %147 = arith.addf %144, %146 : vector<128x160xf32>
    %148 = vector.extract_strided_slice %147 {offsets = [0, 0], sizes = [128, 32], strides = [1, 1]} : vector<128x160xf32> to vector<128x32xf32>
    %c2_i32_65 = arith.constant 2 : i32
    %149 = tpu.dynamic_rotate %148 by %c2_i32_65 dim 0 : vector<128x32xf32>, i32 -> vector<128x32xf32>
    %cst_66 = arith.constant 0.000000e+00 : f32
    %150 = vector.broadcast %cst_66 : f32 to vector<128x32xf32>
    %151 = arith.select %39, %149, %150 : vector<128x32xi1>, vector<128x32xf32>
    %152 = vector.extract_strided_slice %147 {offsets = [0, 32], sizes = [128, 32], strides = [1, 1]} : vector<128x160xf32> to vector<128x32xf32>
    %c1_i32_67 = arith.constant 1 : i32
    %153 = tpu.dynamic_rotate %152 by %c1_i32_67 dim 0 : vector<128x32xf32>, i32 -> vector<128x32xf32>
    %cst_68 = arith.constant 0.000000e+00 : f32
    %154 = vector.broadcast %cst_68 : f32 to vector<128x32xf32>
    %155 = arith.select %11, %153, %154 : vector<128x32xi1>, vector<128x32xf32>
    %156 = arith.addf %151, %155 : vector<128x32xf32>
    %157 = vector.extract_strided_slice %147 {offsets = [0, 64], sizes = [128, 32], strides = [1, 1]} : vector<128x160xf32> to vector<128x32xf32>
    %158 = arith.addf %156, %157 : vector<128x32xf32>
    %159 = vector.extract_strided_slice %147 {offsets = [0, 96], sizes = [128, 32], strides = [1, 1]} : vector<128x160xf32> to vector<128x32xf32>
    %c127_i32_69 = arith.constant 127 : i32
    %160 = tpu.dynamic_rotate %159 by %c127_i32_69 dim 0 : vector<128x32xf32>, i32 -> vector<128x32xf32>
    %cst_70 = arith.constant 0.000000e+00 : f32
    %161 = vector.broadcast %cst_70 : f32 to vector<128x32xf32>
    %162 = arith.select %21, %160, %161 : vector<128x32xi1>, vector<128x32xf32>
    %163 = arith.addf %158, %162 : vector<128x32xf32>
    %164 = vector.extract_strided_slice %147 {offsets = [0, 128], sizes = [128, 32], strides = [1, 1]} : vector<128x160xf32> to vector<128x32xf32>
    %c126_i32_71 = arith.constant 126 : i32
    %165 = tpu.dynamic_rotate %164 by %c126_i32_71 dim 0 : vector<128x32xf32>, i32 -> vector<128x32xf32>
    %cst_72 = arith.constant 0.000000e+00 : f32
    %166 = vector.broadcast %cst_72 : f32 to vector<128x32xf32>
    %167 = arith.select %59, %165, %166 : vector<128x32xi1>, vector<128x32xf32>
    %168 = arith.addf %163, %167 : vector<128x32xf32>
    %c0_73 = arith.constant 0 : index
    %c0_74 = arith.constant 0 : index
    %169 = vector.load %arg13[%c0_73, %c0_74] : memref<1x32xf32, #tpu.memory_space<vmem>>, vector<1x32xf32>
    %170 = vector.broadcast %169 : vector<1x32xf32> to vector<128x32xf32>
    %171 = arith.addf %168, %170 : vector<128x32xf32>
    %172 = arith.mulf %171, %29 : vector<128x32xf32>
    %cst_75 = arith.constant 0.000000e+00 : f32
    %173 = vector.broadcast %cst_75 : f32 to vector<128x32xf32>
    %174 = arith.maximumf %172, %173 : vector<128x32xf32>
    %175 = arith.truncf %174 : vector<128x32xf32> to vector<128x32xbf16>
    %c0_76 = arith.constant 0 : index
    %c0_77 = arith.constant 0 : index
    %176 = vector.load %arg14[%c0_76, %c0_77] : memref<112x64xbf16, #tpu.memory_space<vmem>>, vector<48x64xbf16>
    %cst_78 = arith.constant dense<0.000000e+00> : vector<128x64xf32>
    %177 = tpu.matmul %1, %176, %cst_78 {dimension_numbers = #tpu.dot_dimension_numbers<[1], [0], [0], [1], [0, 0, 1, 1], [], []>} : vector<128x48xbf16>, vector<48x64xbf16>, vector<128x64xf32> -> vector<128x64xf32>
    %c48 = arith.constant 48 : index
    %c0_79 = arith.constant 0 : index
    %178 = vector.load %arg14[%c48, %c0_79] : memref<112x64xbf16, #tpu.memory_space<vmem>>, vector<32x64xbf16>
    %cst_80 = arith.constant dense<0.000000e+00> : vector<128x64xf32>
    %179 = tpu.matmul %142, %178, %cst_80 {dimension_numbers = #tpu.dot_dimension_numbers<[1], [0], [0], [1], [0, 0, 1, 1], [], []>} : vector<128x32xbf16>, vector<32x64xbf16>, vector<128x64xf32> -> vector<128x64xf32>
    %180 = arith.addf %177, %179 : vector<128x64xf32>
    %c80 = arith.constant 80 : index
    %c0_81 = arith.constant 0 : index
    %181 = vector.load %arg14[%c80, %c0_81] : memref<112x64xbf16, #tpu.memory_space<vmem>>, vector<32x64xbf16>
    %cst_82 = arith.constant dense<0.000000e+00> : vector<128x64xf32>
    %182 = tpu.matmul %175, %181, %cst_82 {dimension_numbers = #tpu.dot_dimension_numbers<[1], [0], [0], [1], [0, 0, 1, 1], [], []>} : vector<128x32xbf16>, vector<32x64xbf16>, vector<128x64xf32> -> vector<128x64xf32>
    %183 = arith.addf %180, %182 : vector<128x64xf32>
    %c0_83 = arith.constant 0 : index
    %c0_84 = arith.constant 0 : index
    %184 = vector.load %arg15[%c0_83, %c0_84] : memref<1x64xf32, #tpu.memory_space<vmem>>, vector<1x64xf32>
    %185 = vector.broadcast %184 : vector<1x64xf32> to vector<128x64xf32>
    %186 = arith.addf %183, %185 : vector<128x64xf32>
    %187 = vector.shape_cast %3 : vector<128x1xf32> to vector<128x1xf32>
    %188 = vector.broadcast %187 : vector<128x1xf32> to vector<128x64xf32>
    %189 = arith.mulf %186, %188 : vector<128x64xf32>
    %cst_85 = arith.constant 0.000000e+00 : f32
    %190 = vector.broadcast %cst_85 : f32 to vector<128x64xf32>
    %191 = arith.maximumf %189, %190 : vector<128x64xf32>
    %cst_86 = arith.constant dense<0.000000e+00> : vector<128xf32>
    %192 = vector.multi_reduction <add>, %191, %cst_86 [1] : vector<128x64xf32> to vector<128xf32>
    %193 = vector.shape_cast %192 : vector<128xf32> to vector<128x1xf32>
    %cst_87 = arith.constant 6.400000e+01 : f32
    %194 = vector.broadcast %cst_87 : f32 to vector<128x1xf32>
    %195 = arith.divf %193, %194 : vector<128x1xf32>
    %196 = vector.broadcast %195 : vector<128x1xf32> to vector<128x64xf32>
    %197 = arith.subf %191, %196 : vector<128x64xf32>
    %198 = arith.mulf %197, %197 : vector<128x64xf32>
    %cst_88 = arith.constant dense<0.000000e+00> : vector<128xf32>
    %199 = vector.multi_reduction <add>, %198, %cst_88 [1] : vector<128x64xf32> to vector<128xf32>
    %200 = vector.shape_cast %199 : vector<128xf32> to vector<128x1xf32>
    %cst_89 = arith.constant 6.400000e+01 : f32
    %201 = vector.broadcast %cst_89 : f32 to vector<128x1xf32>
    %202 = arith.divf %200, %201 : vector<128x1xf32>
    %203 = vector.broadcast %195 : vector<128x1xf32> to vector<128x64xf32>
    %204 = arith.subf %191, %203 : vector<128x64xf32>
    %cst_90 = arith.constant 9.99999974E-6 : f32
    %205 = vector.broadcast %cst_90 : f32 to vector<128x1xf32>
    %206 = arith.addf %202, %205 : vector<128x1xf32>
    %207 = math.rsqrt %206 : vector<128x1xf32>
    %208 = vector.broadcast %207 : vector<128x1xf32> to vector<128x64xf32>
    %209 = arith.mulf %204, %208 : vector<128x64xf32>
    %c0_91 = arith.constant 0 : index
    %c0_92 = arith.constant 0 : index
    %210 = vector.load %arg16[%c0_91, %c0_92] : memref<1x64xf32, #tpu.memory_space<vmem>>, vector<1x64xf32>
    %211 = vector.broadcast %210 : vector<1x64xf32> to vector<128x64xf32>
    %212 = arith.mulf %209, %211 : vector<128x64xf32>
    %c0_93 = arith.constant 0 : index
    %c0_94 = arith.constant 0 : index
    %213 = vector.load %arg17[%c0_93, %c0_94] : memref<1x64xf32, #tpu.memory_space<vmem>>, vector<1x64xf32>
    %214 = vector.broadcast %213 : vector<1x64xf32> to vector<128x64xf32>
    %215 = arith.addf %212, %214 : vector<128x64xf32>
    %216 = arith.truncf %215 : vector<128x64xf32> to vector<128x64xbf16>
    %c0_95 = arith.constant 0 : index
    %c0_96 = arith.constant 0 : index
    %217 = vector.load %arg18[%c0_95, %c0_96] : memref<64x128xbf16, #tpu.memory_space<vmem>>, vector<64x128xbf16>
    %cst_97 = arith.constant dense<0.000000e+00> : vector<128x128xf32>
    %218 = tpu.matmul %216, %217, %cst_97 {dimension_numbers = #tpu.dot_dimension_numbers<[1], [0], [0], [1], [0, 0, 1, 1], [], []>} : vector<128x64xbf16>, vector<64x128xbf16>, vector<128x128xf32> -> vector<128x128xf32>
    %c0_98 = arith.constant 0 : index
    %c0_99 = arith.constant 0 : index
    %219 = vector.load %arg19[%c0_98, %c0_99] : memref<1x128xf32, #tpu.memory_space<vmem>>, vector<1x128xf32>
    %220 = vector.broadcast %219 : vector<1x128xf32> to vector<128x128xf32>
    %221 = arith.addf %218, %220 : vector<128x128xf32>
    %222 = vector.shape_cast %221 : vector<128x128xf32> to vector<8x16x128xf32>
    %c0_100 = arith.constant 0 : index
    %c0_101 = arith.constant 0 : index
    %c0_102 = arith.constant 0 : index
    %223 = vector.load %arg20[%c0_100, %c0_101, %c0_102] : memref<8x16x128xf32, #tpu.memory_space<vmem>>, vector<8x16x128xf32>
    tpu.vector_store %arg20[%c0_100, %c0_101, %c0_102], %222 {strides = array<i32>} : memref<8x16x128xf32, #tpu.memory_space<vmem>>, vector<8x16x128xf32>,
    return
  }
  func.func @transform_0(%arg0: i32) -> (i32, i32, i32) {
    %c0_i32 = arith.constant 0 : i32
    %c0_i32_0 = arith.constant 0 : i32
    %c0_i32_1 = arith.constant 0 : i32
    return %arg0, %c0_i32, %c0_i32_0 : i32, i32, i32
  }
  func.func @transform_1(%arg0: i32) -> (i32, i32, i32) {
    %c0_i32 = arith.constant 0 : i32
    %c0_i32_0 = arith.constant 0 : i32
    %c0_i32_1 = arith.constant 0 : i32
    return %arg0, %c0_i32, %c0_i32_0 : i32, i32, i32
  }
  func.func @transform_2(%arg0: i32) -> (i32, i32) {
    %c0_i32 = arith.constant 0 : i32
    %c0_i32_0 = arith.constant 0 : i32
    %c0_i32_1 = arith.constant 0 : i32
    return %c0_i32, %c0_i32_0 : i32, i32
  }
  func.func @transform_3(%arg0: i32) -> (i32, i32) {
    %c0_i32 = arith.constant 0 : i32
    %c0_i32_0 = arith.constant 0 : i32
    %c0_i32_1 = arith.constant 0 : i32
    return %c0_i32, %c0_i32_0 : i32, i32
  }
  func.func @transform_4(%arg0: i32) -> (i32, i32) {
    %c0_i32 = arith.constant 0 : i32
    %c0_i32_0 = arith.constant 0 : i32
    %c0_i32_1 = arith.constant 0 : i32
    return %c0_i32, %c0_i32_0 : i32, i32
  }
  func.func @transform_5(%arg0: i32) -> (i32, i32) {
    %c0_i32 = arith.constant 0 : i32
    %c0_i32_0 = arith.constant 0 : i32
    %c0_i32_1 = arith.constant 0 : i32
    return %c0_i32, %c0_i32_0 : i32, i32
  }
  func.func @transform_6(%arg0: i32) -> (i32, i32) {
    %c0_i32 = arith.constant 0 : i32
    %c0_i32_0 = arith.constant 0 : i32
    %c0_i32_1 = arith.constant 0 : i32
    return %c0_i32, %c0_i32_0 : i32, i32
  }
  func.func @transform_7(%arg0: i32) -> (i32, i32) {
    %c0_i32 = arith.constant 0 : i32
    %c0_i32_0 = arith.constant 0 : i32
    %c0_i32_1 = arith.constant 0 : i32
    return %c0_i32, %c0_i32_0 : i32, i32
  }
  func.func @transform_8(%arg0: i32) -> (i32, i32) {
    %c0_i32 = arith.constant 0 : i32
    %c0_i32_0 = arith.constant 0 : i32
    %c0_i32_1 = arith.constant 0 : i32
    return %c0_i32, %c0_i32_0 : i32, i32
  }
  func.func @transform_9(%arg0: i32) -> (i32, i32) {
    %c0_i32 = arith.constant 0 : i32
    %c0_i32_0 = arith.constant 0 : i32
    %c0_i32_1 = arith.constant 0 : i32
    return %c0_i32, %c0_i32_0 : i32, i32
  }
  func.func @transform_10(%arg0: i32) -> (i32, i32) {
    %c0_i32 = arith.constant 0 : i32
    %c0_i32_0 = arith.constant 0 : i32
    %c0_i32_1 = arith.constant 0 : i32
    return %c0_i32, %c0_i32_0 : i32, i32
  }
  func.func @transform_11(%arg0: i32) -> (i32, i32) {
    %c0_i32 = arith.constant 0 : i32
    %c0_i32_0 = arith.constant 0 : i32
    %c0_i32_1 = arith.constant 0 : i32
    return %c0_i32, %c0_i32_0 : i32, i32
  }
  func.func @transform_12(%arg0: i32) -> (i32, i32) {
    %c0_i32 = arith.constant 0 : i32
    %c0_i32_0 = arith.constant 0 : i32
    %c0_i32_1 = arith.constant 0 : i32
    return %c0_i32, %c0_i32_0 : i32, i32
  }
  func.func @transform_13(%arg0: i32) -> (i32, i32) {
    %c0_i32 = arith.constant 0 : i32
    %c0_i32_0 = arith.constant 0 : i32
    %c0_i32_1 = arith.constant 0 : i32
    return %c0_i32, %c0_i32_0 : i32, i32
  }
  func.func @transform_14(%arg0: i32) -> (i32, i32) {
    %c0_i32 = arith.constant 0 : i32
    %c0_i32_0 = arith.constant 0 : i32
    %c0_i32_1 = arith.constant 0 : i32
    return %c0_i32, %c0_i32_0 : i32, i32
  }
  func.func @transform_15(%arg0: i32) -> (i32, i32) {
    %c0_i32 = arith.constant 0 : i32
    %c0_i32_0 = arith.constant 0 : i32
    %c0_i32_1 = arith.constant 0 : i32
    return %c0_i32, %c0_i32_0 : i32, i32
  }
  func.func @transform_16(%arg0: i32) -> (i32, i32) {
    %c0_i32 = arith.constant 0 : i32
    %c0_i32_0 = arith.constant 0 : i32
    %c0_i32_1 = arith.constant 0 : i32
    return %c0_i32, %c0_i32_0 : i32, i32
  }
  func.func @transform_17(%arg0: i32) -> (i32, i32) {
    %c0_i32 = arith.constant 0 : i32
    %c0_i32_0 = arith.constant 0 : i32
    %c0_i32_1 = arith.constant 0 : i32
    return %c0_i32, %c0_i32_0 : i32, i32
  }
  func.func @transform_18(%arg0: i32) -> (i32, i32) {
    %c0_i32 = arith.constant 0 : i32
    %c0_i32_0 = arith.constant 0 : i32
    %c0_i32_1 = arith.constant 0 : i32
    return %c0_i32, %c0_i32_0 : i32, i32
  }
  func.func @transform_19(%arg0: i32) -> (i32, i32, i32) {
    %c0_i32 = arith.constant 0 : i32
    %c0_i32_0 = arith.constant 0 : i32
    %c0_i32_1 = arith.constant 0 : i32
    return %arg0, %c0_i32, %c0_i32_0 : i32, i32, i32
  }
}

</mosaic_0001>

<llo_original>
// kernel: tpu_custom_call.1
$region0: #{tpu_custom_call.1}
  #allocation0 [shape = 'u32[]', space=smem, size = 0x4, offset = 0x4, fixed_abs, tag = 'smem constant byte address 0x4 - core index']
  #allocation1 [shape = 'u32[144,128]{1,0:T(1,128)}', space=vmem, size = 0x12000, scoped, tag = 'internal scratch']
  %s0 = inlined_call_operand.vmem [shape: bf16[16,16,48], index: 0, kind: input, shape index: {}]
  %s1 = inlined_call_operand.vmem [shape: f32[16,16,1], index: 1, kind: input, shape index: {}]
  %s2 = inlined_call_operand.vmem [shape: bf16[48,256], index: 2, kind: input, shape index: {}]
  %s3 = inlined_call_operand.vmem [shape: f32[1,32], index: 3, kind: input, shape index: {}]
  %s4 = inlined_call_operand.vmem [shape: f32[1,32], index: 4, kind: input, shape index: {}]
  %s5 = inlined_call_operand.hbm [shape: bf16[32,96], index: 5, kind: input, shape index: {}]
  %s6 = inlined_call_operand.vmem [shape: f32[1,32], index: 6, kind: input, shape index: {}]
  %s7 = inlined_call_operand.vmem [shape: bf16[32,160], index: 7, kind: input, shape index: {}]
  %s8 = inlined_call_operand.vmem [shape: f32[1,32], index: 8, kind: input, shape index: {}]
  %s9 = inlined_call_operand.vmem [shape: bf16[64,96], index: 9, kind: input, shape index: {}]
  %s10 = inlined_call_operand.vmem [shape: f32[1,32], index: 10, kind: input, shape index: {}]
  %s11 = inlined_call_operand.vmem [shape: bf16[64,160], index: 11, kind: input, shape index: {}]
  %s12 = inlined_call_operand.vmem [shape: f32[1,32], index: 12, kind: input, shape index: {}]
  %s13 = inlined_call_operand.vmem [shape: bf16[112,64], index: 13, kind: input, shape index: {}]
  %s14 = inlined_call_operand.vmem [shape: f32[1,64], index: 14, kind: input, shape index: {}]
  %s15 = inlined_call_operand.vmem [shape: f32[1,64], index: 15, kind: input, shape index: {}]
  %s16 = inlined_call_operand.vmem [shape: f32[1,64], index: 16, kind: input, shape index: {}]
  %s17 = inlined_call_operand.vmem [shape: bf16[64,128], index: 17, kind: input, shape index: {}]
  %s18 = inlined_call_operand.vmem [shape: f32[1,128], index: 18, kind: input, shape index: {}]
  %s19 = inlined_call_operand.hbm [shape: f32[16,16,128], index: 19, kind: output, shape index: {}]
  %s20 = sld [smem:[#allocation0]]
  $region113: #{tpu_custom_call.1} parent=0
    _
  %s22 = ssub.s32 1, %s20
  %s23 = scalar_select 0, %s22, %s20
  $region1: #{tpu_custom_call.1} parent=0
    #allocation2 [shape = 'u8[8192]{0}', space=vmem, size = 0x2000, scoped, tag = 'input window, operand 5, single buffered']
    #allocation3 [shape = 's32[2]{0}', space=sflag, size = 0x8, scoped, tag = 'scoped memory for tpu_custom_call.1']
    #allocation4 [shape = 's32[2]{0}', space=sflag, size = 0x8, scoped, tag = 'scoped memory for tpu_custom_call.1']
    #allocation5 [shape = 'u8[131072]{0}', space=vmem, size = 0x20000, scoped, tag = 'output window, operand 0']
    %24 = vsyncpa [#allocation3], 0
    %25 = vsyncpa [#allocation4], 0
    %s26 = scalar_lea.sflag [#allocation4], 1
    %27 = vsyncpa %s26, 0
    loop: start=0, step=1, limit=4
    $region2: #{tpu_custom_call.1} parent=1 // loop_pre_header
      _
    $region3: #{tpu_custom_call.1} parent=1 // loop_header
      %s29 = sphi 0, %s33
      %p30 = scmp.ge.s32.totalorder %s29, 4
      %s39 = sphi 0, %s41
      %s42 = sphi 0, %s39
      %s43 = sphi 0, %s42
      %s59 = sphi 0, %s43
      %s65 = sphi 0, %s67
      %s68 = sphi 0, %s65
      %s69 = sphi 0, %s68
      %s85 = sphi 0, %s69
      %s89 = sphi 0, %s89
      %s91 = sphi 0, %s89
      %s92 = sphi 0, %s91
      %s106 = sphi 0, %s92
      %s110 = sphi 0, %s110
      %s112 = sphi 0, %s110
      %s113 = sphi 0, %s112
      %s127 = sphi 0, %s113
      %s131 = sphi 0, %s131
      %s133 = sphi 0, %s131
      %s134 = sphi 0, %s133
      %s148 = sphi 0, %s134
      %s152 = sphi 0, %s152
      %s154 = sphi 0, %s152
      %s155 = sphi 0, %s154
      %s169 = sphi 0, %s155
      %s173 = sphi 0, %s173
      %s175 = sphi 0, %s173
      %s176 = sphi 0, %s175
      %s190 = sphi 0, %s176
      %s194 = sphi 0, %s194
      %s196 = sphi 0, %s194
      %s197 = sphi 0, %s196
      %s211 = sphi 0, %s197
      %s215 = sphi 0, %s215
      %s217 = sphi 0, %s215
      %s218 = sphi 0, %s217
      %s232 = sphi 0, %s218
      %s236 = sphi 0, %s236
      %s238 = sphi 0, %s236
      %s239 = sphi 0, %s238
      %s253 = sphi 0, %s239
      %s257 = sphi 0, %s257
      %s259 = sphi 0, %s257
      %s260 = sphi 0, %s259
      %s274 = sphi 0, %s260
      %s278 = sphi 0, %s278
      %s280 = sphi 0, %s278
      %s281 = sphi 0, %s280
      %s295 = sphi 0, %s281
      %s299 = sphi 0, %s299
      %s301 = sphi 0, %s299
      %s302 = sphi 0, %s301
      %s316 = sphi 0, %s302
      %s320 = sphi 0, %s320
      %s322 = sphi 0, %s320
      %s323 = sphi 0, %s322
      %s337 = sphi 0, %s323
      %s341 = sphi 0, %s341
      %s343 = sphi 0, %s341
      %s344 = sphi 0, %s343
      %s358 = sphi 0, %s344
      %s362 = sphi 0, %s362
      %s364 = sphi 0, %s362
      %s365 = sphi 0, %s364
      %s379 = sphi 0, %s365
      %s383 = sphi 0, %s383
      %s385 = sphi 0, %s383
      %s386 = sphi 0, %s385
      %s400 = sphi 0, %s386
      %s404 = sphi 0, %s404
      %s406 = sphi 0, %s404
      %s407 = sphi 0, %s406
      %s421 = sphi 0, %s407
      %s425 = sphi 0, %s425
      %s427 = sphi 0, %s425
      %s428 = sphi 0, %s427
      %s442 = sphi 0, %s428
      %s448 = sphi 0, %s450
      %s451 = sphi 0, %s448
      %s452 = sphi 0, %s451
      %s468 = sphi 0, %s452
    $region4: #{tpu_custom_call.1} parent=1 // loop_header_branch
      %32 = sbr.rel (%p30) target = $region8
    $region5: #{tpu_custom_call.1} parent=1 // loop_body
      %s34 = ssub.s32 %s29, 1
      %s35 = ssub.s32 %s29, 2
      %s36 = sadd.s32 %s29, 1
      %s37 = ssub.s32 %s29, %s36
      %p38 = scmp.eq.s32.totalorder %s37, 0
      %s40 = sadd.s32 %s39, 1
      %s41 = scalar_select %p38, %s39, %s40
      %p44 = pneg %p38
      %p45 = scmp.eq.s32.totalorder %s29, 1
      %p46 = por %p44, %p45
      %p47 = scmp.ne.s32.totalorder %s39, %s42
      %p48 = scmp.eq.s32.totalorder %s29, 0
      %p49 = por %p47, %p48
      %p50 = scmp.ne.s32.totalorder %s39, %s42
      %p51 = scmp.eq.s32.totalorder %s34, 1
      %p52 = por %p50, %p51
      %p53 = scmp.ne.s32.totalorder %s42, %s43
      %p54 = scmp.eq.s32.totalorder %s34, 0
      %p55 = por %p53, %p54
      %p56 = scmp.ne.s32.totalorder %s42, %s43
      %p57 = scmp.eq.s32.totalorder %s35, 1
      %p58 = por %p56, %p57
      %p60 = scmp.ne.s32.totalorder %s43, %s59
      %p61 = scmp.eq.s32.totalorder %s35, 0
      %p62 = por %p60, %p61
      %s63 = ssub.s32 %s29, %s36
      %p64 = scmp.eq.s32.totalorder %s63, 0
      %s66 = sadd.s32 %s65, 1
      %s67 = scalar_select %p64, %s65, %s66
      %p70 = pneg %p64
      %p71 = scmp.eq.s32.totalorder %s29, 1
      %p72 = por %p70, %p71
      %p73 = scmp.ne.s32.totalorder %s65, %s68
      %p74 = scmp.eq.s32.totalorder %s29, 0
      %p75 = por %p73, %p74
      %p76 = scmp.ne.s32.totalorder %s65, %s68
      %p77 = scmp.eq.s32.totalorder %s34, 1
      %p78 = por %p76, %p77
      %p79 = scmp.ne.s32.totalorder %s68, %s69
      %p80 = scmp.eq.s32.totalorder %s34, 0
      %p81 = por %p79, %p80
      %p82 = scmp.ne.s32.totalorder %s68, %s69
      %p83 = scmp.eq.s32.totalorder %s35, 1
      %p84 = por %p82, %p83
      %p86 = scmp.ne.s32.totalorder %s69, %s85
      %p87 = scmp.eq.s32.totalorder %s35, 0
      %p88 = por %p86, %p87
      %s90 = sadd.s32 %s89, 1
      %p93 = scmp.eq.s32.totalorder %s29, 1
      %p94 = scmp.ne.s32.totalorder %s89, %s91
      %p95 = scmp.eq.s32.totalorder %s29, 0
      %p96 = por %p94, %p95
      %p97 = scmp.ne.s32.totalorder %s89, %s91
      %p98 = scmp.eq.s32.totalorder %s34, 1
      %p99 = por %p97, %p98
      %p100 = scmp.ne.s32.totalorder %s91, %s92
      %p101 = scmp.eq.s32.totalorder %s34, 0
      %p102 = por %p100, %p101
      %p103 = scmp.ne.s32.totalorder %s91, %s92
      %p104 = scmp.eq.s32.totalorder %s35, 1
      %p105 = por %p103, %p104
      %p107 = scmp.ne.s32.totalorder %s92, %s106
      %p108 = scmp.eq.s32.totalorder %s35, 0
      %p109 = por %p107, %p108
      %s111 = sadd.s32 %s110, 1
      %p114 = scmp.eq.s32.totalorder %s29, 1
      %p115 = scmp.ne.s32.totalorder %s110, %s112
      %p116 = scmp.eq.s32.totalorder %s29, 0
      %p117 = por %p115, %p116
      %p118 = scmp.ne.s32.totalorder %s110, %s112
      %p119 = scmp.eq.s32.totalorder %s34, 1
      %p120 = por %p118, %p119
      %p121 = scmp.ne.s32.totalorder %s112, %s113
      %p122 = scmp.eq.s32.totalorder %s34, 0
      %p123 = por %p121, %p122
      %p124 = scmp.ne.s32.totalorder %s112, %s113
      %p125 = scmp.eq.s32.totalorder %s35, 1
      %p126 = por %p124, %p125
      %p128 = scmp.ne.s32.totalorder %s113, %s127
      %p129 = scmp.eq.s32.totalorder %s35, 0
      %p130 = por %p128, %p129
      %s132 = sadd.s32 %s131, 1
      %p135 = scmp.eq.s32.totalorder %s29, 1
      %p136 = scmp.ne.s32.totalorder %s131, %s133
      %p137 = scmp.eq.s32.totalorder %s29, 0
      %p138 = por %p136, %p137
      %p139 = scmp.ne.s32.totalorder %s131, %s133
      %p140 = scmp.eq.s32.totalorder %s34, 1
      %p141 = por %p139, %p140
      %p142 = scmp.ne.s32.totalorder %s133, %s134
      %p143 = scmp.eq.s32.totalorder %s34, 0
      %p144 = por %p142, %p143
      %p145 = scmp.ne.s32.totalorder %s133, %s134
      %p146 = scmp.eq.s32.totalorder %s35, 1
      %p147 = por %p145, %p146
      %p149 = scmp.ne.s32.totalorder %s134, %s148
      %p150 = scmp.eq.s32.totalorder %s35, 0
      %p151 = por %p149, %p150
      %s153 = sadd.s32 %s152, 1
      %p156 = scmp.eq.s32.totalorder %s29, 1
      %p157 = scmp.ne.s32.totalorder %s152, %s154
      %p158 = scmp.eq.s32.totalorder %s29, 0
      %p159 = por %p157, %p158
      %p160 = scmp.ne.s32.totalorder %s152, %s154
      %p161 = scmp.eq.s32.totalorder %s34, 1
      %p162 = por %p160, %p161
      %p163 = scmp.ne.s32.totalorder %s154, %s155
      %p164 = scmp.eq.s32.totalorder %s34, 0
      %p165 = por %p163, %p164
      %p166 = scmp.ne.s32.totalorder %s154, %s155
      %p167 = scmp.eq.s32.totalorder %s35, 1
      %p168 = por %p166, %p167
      %p170 = scmp.ne.s32.totalorder %s155, %s169
      %p171 = scmp.eq.s32.totalorder %s35, 0
      %p172 = por %p170, %p171
      %s174 = sadd.s32 %s173, 1
      %p177 = scmp.eq.s32.totalorder %s29, 1
      %p178 = scmp.ne.s32.totalorder %s173, %s175
      %p179 = scmp.eq.s32.totalorder %s29, 0
      %p180 = por %p178, %p179
      %p181 = scmp.ne.s32.totalorder %s173, %s175
      %p182 = scmp.eq.s32.totalorder %s34, 1
      %p183 = por %p181, %p182
      %p184 = scmp.ne.s32.totalorder %s175, %s176
      %p185 = scmp.eq.s32.totalorder %s34, 0
      %p186 = por %p184, %p185
      %p187 = scmp.ne.s32.totalorder %s175, %s176
      %p188 = scmp.eq.s32.totalorder %s35, 1
      %p189 = por %p187, %p188
      %p191 = scmp.ne.s32.totalorder %s176, %s190
      %p192 = scmp.eq.s32.totalorder %s35, 0
      %p193 = por %p191, %p192
      %s195 = sadd.s32 %s194, 1
      %p198 = scmp.eq.s32.totalorder %s29, 1
      %p199 = scmp.ne.s32.totalorder %s194, %s196
      %p200 = scmp.eq.s32.totalorder %s29, 0
      %p201 = por %p199, %p200
      %p202 = scmp.ne.s32.totalorder %s194, %s196
      %p203 = scmp.eq.s32.totalorder %s34, 1
      %p204 = por %p202, %p203
      %p205 = scmp.ne.s32.totalorder %s196, %s197
      %p206 = scmp.eq.s32.totalorder %s34, 0
      %p207 = por %p205, %p206
      %p208 = scmp.ne.s32.totalorder %s196, %s197
      %p209 = scmp.eq.s32.totalorder %s35, 1
      %p210 = por %p208, %p209
      %p212 = scmp.ne.s32.totalorder %s197, %s211
      %p213 = scmp.eq.s32.totalorder %s35, 0
      %p214 = por %p212, %p213
      %s216 = sadd.s32 %s215, 1
      %p219 = scmp.eq.s32.totalorder %s29, 1
      %p220 = scmp.ne.s32.totalorder %s215, %s217
      %p221 = scmp.eq.s32.totalorder %s29, 0
      %p222 = por %p220, %p221
      %p223 = scmp.ne.s32.totalorder %s215, %s217
      %p224 = scmp.eq.s32.totalorder %s34, 1
      %p225 = por %p223, %p224
      %p226 = scmp.ne.s32.totalorder %s217, %s218
      %p227 = scmp.eq.s32.totalorder %s34, 0
      %p228 = por %p226, %p227
      %p229 = scmp.ne.s32.totalorder %s217, %s218
      %p230 = scmp.eq.s32.totalorder %s35, 1
      %p231 = por %p229, %p230
      %p233 = scmp.ne.s32.totalorder %s218, %s232
      %p234 = scmp.eq.s32.totalorder %s35, 0
      %p235 = por %p233, %p234
      %s237 = sadd.s32 %s236, 1
      %p240 = scmp.eq.s32.totalorder %s29, 1
      %p241 = scmp.ne.s32.totalorder %s236, %s238
      %p242 = scmp.eq.s32.totalorder %s29, 0
      %p243 = por %p241, %p242
      %p244 = scmp.ne.s32.totalorder %s236, %s238
      %p245 = scmp.eq.s32.totalorder %s34, 1
      %p246 = por %p244, %p245
      %p247 = scmp.ne.s32.totalorder %s238, %s239
      %p248 = scmp.eq.s32.totalorder %s34, 0
      %p249 = por %p247, %p248
      %p250 = scmp.ne.s32.totalorder %s238, %s239
      %p251 = scmp.eq.s32.totalorder %s35, 1
      %p252 = por %p250, %p251
      %p254 = scmp.ne.s32.totalorder %s239, %s253
      %p255 = scmp.eq.s32.totalorder %s35, 0
      %p256 = por %p254, %p255
      %s258 = sadd.s32 %s257, 1
      %p261 = scmp.eq.s32.totalorder %s29, 1
      %p262 = scmp.ne.s32.totalorder %s257, %s259
      %p263 = scmp.eq.s32.totalorder %s29, 0
      %p264 = por %p262, %p263
      %p265 = scmp.ne.s32.totalorder %s257, %s259
      %p266 = scmp.eq.s32.totalorder %s34, 1
      %p267 = por %p265, %p266
      %p268 = scmp.ne.s32.totalorder %s259, %s260
      %p269 = scmp.eq.s32.totalorder %s34, 0
      %p270 = por %p268, %p269
      %p271 = scmp.ne.s32.totalorder %s259, %s260
      %p272 = scmp.eq.s32.totalorder %s35, 1
      %p273 = por %p271, %p272
      %p275 = scmp.ne.s32.totalorder %s260, %s274
      %p276 = scmp.eq.s32.totalorder %s35, 0
      %p277 = por %p275, %p276
      %s279 = sadd.s32 %s278, 1
      %p282 = scmp.eq.s32.totalorder %s29, 1
      %p283 = scmp.ne.s32.totalorder %s278, %s280
      %p284 = scmp.eq.s32.totalorder %s29, 0
      %p285 = por %p283, %p284
      %p286 = scmp.ne.s32.totalorder %s278, %s280
      %p287 = scmp.eq.s32.totalorder %s34, 1
      %p288 = por %p286, %p287
      %p289 = scmp.ne.s32.totalorder %s280, %s281
      %p290 = scmp.eq.s32.totalorder %s34, 0
      %p291 = por %p289, %p290
      %p292 = scmp.ne.s32.totalorder %s280, %s281
      %p293 = scmp.eq.s32.totalorder %s35, 1
      %p294 = por %p292, %p293
      %p296 = scmp.ne.s32.totalorder %s281, %s295
      %p297 = scmp.eq.s32.totalorder %s35, 0
      %p298 = por %p296, %p297
      %s300 = sadd.s32 %s299, 1
      %p303 = scmp.eq.s32.totalorder %s29, 1
      %p304 = scmp.ne.s32.totalorder %s299, %s301
      %p305 = scmp.eq.s32.totalorder %s29, 0
      %p306 = por %p304, %p305
      %p307 = scmp.ne.s32.totalorder %s299, %s301
      %p308 = scmp.eq.s32.totalorder %s34, 1
      %p309 = por %p307, %p308
      %p310 = scmp.ne.s32.totalorder %s301, %s302
      %p311 = scmp.eq.s32.totalorder %s34, 0
      %p312 = por %p310, %p311
      %p313 = scmp.ne.s32.totalorder %s301, %s302
      %p314 = scmp.eq.s32.totalorder %s35, 1
      %p315 = por %p313, %p314
      %p317 = scmp.ne.s32.totalorder %s302, %s316
      %p318 = scmp.eq.s32.totalorder %s35, 0
      %p319 = por %p317, %p318
      %s321 = sadd.s32 %s320, 1
      %p324 = scmp.eq.s32.totalorder %s29, 1
      %p325 = scmp.ne.s32.totalorder %s320, %s322
      %p326 = scmp.eq.s32.totalorder %s29, 0
      %p327 = por %p325, %p326
      %p328 = scmp.ne.s32.totalorder %s320, %s322
      %p329 = scmp.eq.s32.totalorder %s34, 1
      %p330 = por %p328, %p329
      %p331 = scmp.ne.s32.totalorder %s322, %s323
      %p332 = scmp.eq.s32.totalorder %s34, 0
      %p333 = por %p331, %p332
      %p334 = scmp.ne.s32.totalorder %s322, %s323
      %p335 = scmp.eq.s32.totalorder %s35, 1
      %p336 = por %p334, %p335
      %p338 = scmp.ne.s32.totalorder %s323, %s337
      %p339 = scmp.eq.s32.totalorder %s35, 0
      %p340 = por %p338, %p339
      %s342 = sadd.s32 %s341, 1
      %p345 = scmp.eq.s32.totalorder %s29, 1
      %p346 = scmp.ne.s32.totalorder %s341, %s343
      %p347 = scmp.eq.s32.totalorder %s29, 0
      %p348 = por %p346, %p347
      %p349 = scmp.ne.s32.totalorder %s341, %s343
      %p350 = scmp.eq.s32.totalorder %s34, 1
      %p351 = por %p349, %p350
      %p352 = scmp.ne.s32.totalorder %s343, %s344
      %p353 = scmp.eq.s32.totalorder %s34, 0
      %p354 = por %p352, %p353
      %p355 = scmp.ne.s32.totalorder %s343, %s344
      %p356 = scmp.eq.s32.totalorder %s35, 1
      %p357 = por %p355, %p356
      %p359 = scmp.ne.s32.totalorder %s344, %s358
      %p360 = scmp.eq.s32.totalorder %s35, 0
      %p361 = por %p359, %p360
      %s363 = sadd.s32 %s362, 1
      %p366 = scmp.eq.s32.totalorder %s29, 1
      %p367 = scmp.ne.s32.totalorder %s362, %s364
      %p368 = scmp.eq.s32.totalorder %s29, 0
      %p369 = por %p367, %p368
      %p370 = scmp.ne.s32.totalorder %s362, %s364
      %p371 = scmp.eq.s32.totalorder %s34, 1
      %p372 = por %p370, %p371
      %p373 = scmp.ne.s32.totalorder %s364, %s365
      %p374 = scmp.eq.s32.totalorder %s34, 0
      %p375 = por %p373, %p374
      %p376 = scmp.ne.s32.totalorder %s364, %s365
      %p377 = scmp.eq.s32.totalorder %s35, 1
      %p378 = por %p376, %p377
      %p380 = scmp.ne.s32.totalorder %s365, %s379
      %p381 = scmp.eq.s32.totalorder %s35, 0
      %p382 = por %p380, %p381
      %s384 = sadd.s32 %s383, 1
      %p387 = scmp.eq.s32.totalorder %s29, 1
      %p388 = scmp.ne.s32.totalorder %s383, %s385
      %p389 = scmp.eq.s32.totalorder %s29, 0
      %p390 = por %p388, %p389
      %p391 = scmp.ne.s32.totalorder %s383, %s385
      %p392 = scmp.eq.s32.totalorder %s34, 1
      %p393 = por %p391, %p392
      %p394 = scmp.ne.s32.totalorder %s385, %s386
      %p395 = scmp.eq.s32.totalorder %s34, 0
      %p396 = por %p394, %p395
      %p397 = scmp.ne.s32.totalorder %s385, %s386
      %p398 = scmp.eq.s32.totalorder %s35, 1
      %p399 = por %p397, %p398
      %p401 = scmp.ne.s32.totalorder %s386, %s400
      %p402 = scmp.eq.s32.totalorder %s35, 0
      %p403 = por %p401, %p402
      %s405 = sadd.s32 %s404, 1
      %p408 = scmp.eq.s32.totalorder %s29, 1
      %p409 = scmp.ne.s32.totalorder %s404, %s406
      %p410 = scmp.eq.s32.totalorder %s29, 0
      %p411 = por %p409, %p410
      %p412 = scmp.ne.s32.totalorder %s404, %s406
      %p413 = scmp.eq.s32.totalorder %s34, 1
      %p414 = por %p412, %p413
      %p415 = scmp.ne.s32.totalorder %s406, %s407
      %p416 = scmp.eq.s32.totalorder %s34, 0
      %p417 = por %p415, %p416
      %p418 = scmp.ne.s32.totalorder %s406, %s407
      %p419 = scmp.eq.s32.totalorder %s35, 1
      %p420 = por %p418, %p419
      %p422 = scmp.ne.s32.totalorder %s407, %s421
      %p423 = scmp.eq.s32.totalorder %s35, 0
      %p424 = por %p422, %p423
      %s426 = sadd.s32 %s425, 1
      %p429 = scmp.eq.s32.totalorder %s29, 1
      %p430 = scmp.ne.s32.totalorder %s425, %s427
      %p431 = scmp.eq.s32.totalorder %s29, 0
      %p432 = por %p430, %p431
      %p433 = scmp.ne.s32.totalorder %s425, %s427
      %p434 = scmp.eq.s32.totalorder %s34, 1
      %p435 = por %p433, %p434
      %p436 = scmp.ne.s32.totalorder %s427, %s428
      %p437 = scmp.eq.s32.totalorder %s34, 0
      %p438 = por %p436, %p437
      %p439 = scmp.ne.s32.totalorder %s427, %s428
      %p440 = scmp.eq.s32.totalorder %s35, 1
      %p441 = por %p439, %p440
      %p443 = scmp.ne.s32.totalorder %s428, %s442
      %p444 = scmp.eq.s32.totalorder %s35, 0
      %p445 = por %p443, %p444
      %s446 = ssub.s32 %s29, %s36
      %p447 = scmp.eq.s32.totalorder %s446, 0
      %s449 = sadd.s32 %s448, 1
      %s450 = scalar_select %p447, %s448, %s449
      %p453 = pneg %p447
      %p454 = scmp.eq.s32.totalorder %s29, 1
      %p455 = por %p453, %p454
      %p456 = scmp.ne.s32.totalorder %s448, %s451
      %p457 = scmp.eq.s32.totalorder %s29, 0
      %p458 = por %p456, %p457
      %p459 = scmp.ne.s32.totalorder %s448, %s451
      %p460 = scmp.eq.s32.totalorder %s34, 1
      %p461 = por %p459, %p460
      %p462 = scmp.ne.s32.totalorder %s451, %s452
      %p463 = scmp.eq.s32.totalorder %s34, 0
      %p464 = por %p462, %p463
      %p465 = scmp.ne.s32.totalorder %s451, %s452
      %p466 = scmp.eq.s32.totalorder %s35, 1
      %p467 = por %p465, %p466
      %p469 = scmp.ne.s32.totalorder %s452, %s468
      %p470 = scmp.eq.s32.totalorder %s35, 0
      %p471 = por %p469, %p470
      %p472 = scmp.le.s32.totalorder 1, %s29
      %p473 = scmp.lt.s32.totalorder %s29, 3
      %p474 = pnand %p472, %p473
      %p475 = pneg %p474
      // Predicated region
      $region9: #{tpu_custom_call.1} parent=5 // pred_check
        _
      $region10: #{tpu_custom_call.1} parent=5 // pred_check_branch
        %477 = sbr.rel (%p474) target = $region12
      $region11: #{tpu_custom_call.1} parent=5 // pred_region
        %s478 = ssub.s32 %s29, 1
        // Predicated region
        $region13: #{tpu_custom_call.1} parent=11 // pred_check
          %p479 = pneg %p102
        $region14: #{tpu_custom_call.1} parent=11 // pred_check_branch
          %481 = sbr.rel (%p479) target = $region16
        $region15: #{tpu_custom_call.1} parent=11 // pred_region
          _
        $region16: #{tpu_custom_call.1} parent=11 // pred_fallthru
          _
        // Predicated region
        $region17: #{tpu_custom_call.1} parent=11 // pred_check
          %p482 = pneg %p123
        $region18: #{tpu_custom_call.1} parent=11 // pred_check_branch
          %484 = sbr.rel (%p482) target = $region20
        $region19: #{tpu_custom_call.1} parent=11 // pred_region
          _
        $region20: #{tpu_custom_call.1} parent=11 // pred_fallthru
          _
        // Predicated region
        $region21: #{tpu_custom_call.1} parent=11 // pred_check
          %p485 = pneg %p144
        $region22: #{tpu_custom_call.1} parent=11 // pred_check_branch
          %487 = sbr.rel (%p485) target = $region24
        $region23: #{tpu_custom_call.1} parent=11 // pred_region
          _
        $region24: #{tpu_custom_call.1} parent=11 // pred_fallthru
          _
        // Predicated region
        $region25: #{tpu_custom_call.1} parent=11 // pred_check
          %p488 = pneg %p165
        $region26: #{tpu_custom_call.1} parent=11 // pred_check_branch
          %490 = sbr.rel (%p488) target = $region28
        $region27: #{tpu_custom_call.1} parent=11 // pred_region
          %s492 = ssub.s32 256, 256
          %493 = vsyncadd [#allocation3], %s492
          %s494 = sshll.u32 [#allocation2], 4
          %s495 = int_to_ptr.vmem [resolvable:$true] %s494
          %500 = dma.hbm_to_vmem [thread:$0]  %s5, 256, %s495, [#allocation3], 64, 64, 4
        $region28: #{tpu_custom_call.1} parent=11 // pred_fallthru
          _
        // Predicated region
        $region29: #{tpu_custom_call.1} parent=11 // pred_check
          %p501 = pneg %p186
        $region30: #{tpu_custom_call.1} parent=11 // pred_check_branch
          %503 = sbr.rel (%p501) target = $region32
        $region31: #{tpu_custom_call.1} parent=11 // pred_region
          _
        $region32: #{tpu_custom_call.1} parent=11 // pred_fallthru
          _
        // Predicated region
        $region33: #{tpu_custom_call.1} parent=11 // pred_check
          %p504 = pneg %p207
        $region34: #{tpu_custom_call.1} parent=11 // pred_check_branch
          %506 = sbr.rel (%p504) target = $region36
        $region35: #{tpu_custom_call.1} parent=11 // pred_region
          _
        $region36: #{tpu_custom_call.1} parent=11 // pred_fallthru
          _
        // Predicated region
        $region37: #{tpu_custom_call.1} parent=11 // pred_check
          %p507 = pneg %p228
        $region38: #{tpu_custom_call.1} parent=11 // pred_check_branch
          %509 = sbr.rel (%p507) target = $region40
        $region39: #{tpu_custom_call.1} parent=11 // pred_region
          _
        $region40: #{tpu_custom_call.1} parent=11 // pred_fallthru
          _
        // Predicated region
        $region41: #{tpu_custom_call.1} parent=11 // pred_check
          %p510 = pneg %p249
        $region42: #{tpu_custom_call.1} parent=11 // pred_check_branch
          %512 = sbr.rel (%p510) target = $region44
        $region43: #{tpu_custom_call.1} parent=11 // pred_region
          _
        $region44: #{tpu_custom_call.1} parent=11 // pred_fallthru
          _
        // Predicated region
        $region45: #{tpu_custom_call.1} parent=11 // pred_check
          %p513 = pneg %p270
        $region46: #{tpu_custom_call.1} parent=11 // pred_check_branch
          %515 = sbr.rel (%p513) target = $region48
        $region47: #{tpu_custom_call.1} parent=11 // pred_region
          _
        $region48: #{tpu_custom_call.1} parent=11 // pred_fallthru
          _
        // Predicated region
        $region49: #{tpu_custom_call.1} parent=11 // pred_check
          %p516 = pneg %p291
        $region50: #{tpu_custom_call.1} parent=11 // pred_check_branch
          %518 = sbr.rel (%p516) target = $region52
        $region51: #{tpu_custom_call.1} parent=11 // pred_region
          _
        $region52: #{tpu_custom_call.1} parent=11 // pred_fallthru
          _
        // Predicated region
        $region53: #{tpu_custom_call.1} parent=11 // pred_check
          %p519 = pneg %p312
        $region54: #{tpu_custom_call.1} parent=11 // pred_check_branch
          %521 = sbr.rel (%p519) target = $region56
        $region55: #{tpu_custom_call.1} parent=11 // pred_region
          _
        $region56: #{tpu_custom_call.1} parent=11 // pred_fallthru
          _
        // Predicated region
        $region57: #{tpu_custom_call.1} parent=11 // pred_check
          %p522 = pneg %p333
        $region58: #{tpu_custom_call.1} parent=11 // pred_check_branch
          %524 = sbr.rel (%p522) target = $region60
        $region59: #{tpu_custom_call.1} parent=11 // pred_region
          _
        $region60: #{tpu_custom_call.1} parent=11 // pred_fallthru
          _
        // Predicated region
        $region61: #{tpu_custom_call.1} parent=11 // pred_check
          %p525 = pneg %p354
        $region62: #{tpu_custom_call.1} parent=11 // pred_check_branch
          %527 = sbr.rel (%p525) target = $region64
        $region63: #{tpu_custom_call.1} parent=11 // pred_region
          _
        $region64: #{tpu_custom_call.1} parent=11 // pred_fallthru
          _
        // Predicated region
        $region65: #{tpu_custom_call.1} parent=11 // pred_check
          %p528 = pneg %p375
        $region66: #{tpu_custom_call.1} parent=11 // pred_check_branch
          %530 = sbr.rel (%p528) target = $region68
        $region67: #{tpu_custom_call.1} parent=11 // pred_region
          _
        $region68: #{tpu_custom_call.1} parent=11 // pred_fallthru
          _
        // Predicated region
        $region69: #{tpu_custom_call.1} parent=11 // pred_check
          %p531 = pneg %p396
        $region70: #{tpu_custom_call.1} parent=11 // pred_check_branch
          %533 = sbr.rel (%p531) target = $region72
        $region71: #{tpu_custom_call.1} parent=11 // pred_region
          _
        $region72: #{tpu_custom_call.1} parent=11 // pred_fallthru
          _
        // Predicated region
        $region73: #{tpu_custom_call.1} parent=11 // pred_check
          %p534 = pneg %p417
        $region74: #{tpu_custom_call.1} parent=11 // pred_check_branch
          %536 = sbr.rel (%p534) target = $region76
        $region75: #{tpu_custom_call.1} parent=11 // pred_region
          _
        $region76: #{tpu_custom_call.1} parent=11 // pred_fallthru
          _
        // Predicated region
        $region77: #{tpu_custom_call.1} parent=11 // pred_check
          %p537 = pneg %p438
        $region78: #{tpu_custom_call.1} parent=11 // pred_check_branch
          %539 = sbr.rel (%p537) target = $region80
        $region79: #{tpu_custom_call.1} parent=11 // pred_region
          _
        $region80: #{tpu_custom_call.1} parent=11 // pred_fallthru
          _
      $region12: #{tpu_custom_call.1} parent=5 // pred_fallthru
        _
      %p540 = scmp.lt.s32.totalorder %s29, 2
      // Predicated region
      $region81: #{tpu_custom_call.1} parent=5 // pred_check
        %p541 = pneg %p540
      $region82: #{tpu_custom_call.1} parent=5 // pred_check_branch
        %543 = sbr.rel (%p541) target = $region84
      $region83: #{tpu_custom_call.1} parent=5 // pred_region
        // Predicated region
        $region85: #{tpu_custom_call.1} parent=83 // pred_check
          %p544 = pneg %p49
        $region86: #{tpu_custom_call.1} parent=83 // pred_check_branch
          %546 = sbr.rel (%p544) target = $region88
        $region87: #{tpu_custom_call.1} parent=83 // pred_region
          %s547 = smul.u32 8, %s29
          %p548 = scmp.lt.s32.totalorder %s547, 15
          %s549 = scalar_select %p548, %s547, 15
          %s550 = smul.addr %s549, 2
          %s551 = smul.addr %s550, 4
          %s552 = scalar_lea.vmem %s0, %s551
          %s553 = smul.u32 8, %s29
        $region88: #{tpu_custom_call.1} parent=83 // pred_fallthru
          _
        // Predicated region
        $region89: #{tpu_custom_call.1} parent=83 // pred_check
          %p554 = pneg %p75
        $region90: #{tpu_custom_call.1} parent=83 // pred_check_branch
          %556 = sbr.rel (%p554) target = $region92
        $region91: #{tpu_custom_call.1} parent=83 // pred_region
          %s557 = smul.u32 8, %s29
          %p558 = scmp.lt.s32.totalorder %s557, 15
          %s559 = scalar_select %p558, %s557, 15
          %s560 = smul.addr %s559, 2
          %s561 = smul.addr %s560, 8
          %s562 = scalar_lea.vmem %s1, %s561
          %s563 = smul.u32 8, %s29
        $region92: #{tpu_custom_call.1} parent=83 // pred_fallthru
          _
      $region84: #{tpu_custom_call.1} parent=5 // pred_fallthru
        _
      %p564 = scmp.le.s32.totalorder 1, %s29
      %p565 = scmp.lt.s32.totalorder %s29, 3
      %p566 = pnand %p564, %p565
      %p567 = pneg %p566
      // Predicated region
      $region93: #{tpu_custom_call.1} parent=5 // pred_check
        _
      $region94: #{tpu_custom_call.1} parent=5 // pred_check_branch
        %569 = sbr.rel (%p566) target = $region96
      $region95: #{tpu_custom_call.1} parent=5 // pred_region
        %s570 = ssub.s32 %s29, 1
        // Predicated region
        $region97: #{tpu_custom_call.1} parent=95 // pred_check
          %p571 = pneg %p165
        $region98: #{tpu_custom_call.1} parent=95 // pred_check_branch
          %573 = sbr.rel (%p571) target = $region100
        $region99: #{tpu_custom_call.1} parent=95 // pred_region
          %574 = dma.done [#allocation3], 256
        $region100: #{tpu_custom_call.1} parent=95 // pred_fallthru
          _
        %s575 = smul.u32 8, %s34
        %p576 = scmp.lt.s32.totalorder %s575, 15
        %s577 = scalar_select %p576, %s575, 15
        %s578 = smul.addr %s577, 2
        %s579 = smul.addr %s578, 4
        %s580 = scalar_lea.vmem %s0, %s579
        %p581 = pneg %p55
        %p582 = pneg %p52
        %s583 = smul.u32 8, %s34
        %p584 = scmp.lt.s32.totalorder %s583, 15
        %s585 = scalar_select %p584, %s583, 15
        %s586 = smul.addr %s585, 2
        %s587 = smul.addr %s586, 8
        %s588 = scalar_lea.vmem %s1, %s587
        %p589 = pneg %p81
        %p590 = pneg %p78
        %p591 = pneg %p102
        %p592 = pneg %p99
        %p593 = pneg %p123
        %p594 = pneg %p120
        %p595 = pneg %p144
        %p596 = pneg %p141
        %p597 = pneg %p165
        %p598 = pneg %p162
        %p599 = pneg %p186
        %p600 = pneg %p183
        %p601 = pneg %p207
        %p602 = pneg %p204
        %p603 = pneg %p228
        %p604 = pneg %p225
        %p605 = pneg %p249
        %p606 = pneg %p246
        %p607 = pneg %p270
        %p608 = pneg %p267
        %p609 = pneg %p291
        %p610 = pneg %p288
        %p611 = pneg %p312
        %p612 = pneg %p309
        %p613 = pneg %p333
        %p614 = pneg %p330
        %p615 = pneg %p354
        %p616 = pneg %p351
        %p617 = pneg %p375
        %p618 = pneg %p372
        %p619 = pneg %p396
        %p620 = pneg %p393
        %p621 = pneg %p417
        %p622 = pneg %p414
        %p623 = pneg %p438
        %p624 = pneg %p435
        %p625 = pneg %p464
        %p626 = pneg %p461
        %s627 = sand.u32 %s451, 1
        %s628 = scalar_lea.sflag [#allocation4], %s627
        %s629 = sand.u32 %s451, 1
        %s630 = smul.addr %s629, 128
        %s631 = scalar_lea.vmem [#allocation5], %s630
        %s632 = smul.u32 8, %s34
        %p633 = scmp.lt.s32.totalorder %s632, 15
        %s634 = scalar_select %p633, %s632, 15
        %s635 = smul.addr %s634, 2
        %s636 = smul.addr %s635, 4
        %s637 = scalar_lea.vmem %s0, %s636
        %s638 = smul.u32 8, %s34
        %s639 = smul.u32 8, %s34
        %p640 = scmp.lt.s32.totalorder %s639, 15
        %s641 = scalar_select %p640, %s639, 15
        %s642 = smul.addr %s641, 2
        %s643 = smul.addr %s642, 8
        %s644 = scalar_lea.vmem %s1, %s643
        %s645 = smul.u32 8, %s34
        %s646 = smul.u32 8, %s34
        %v648 = vld [vmem:[%s637] sm:$0xf]
        %v649 = vld [vmem:[%s637 + $0x4] sm:$0xf]
        %v650 = vld [vmem:[%s637 + $0x8] sm:$0xf]
        %v651 = vld [vmem:[%s637 + $0xc] sm:$0xf]
        %v652 = vld [vmem:[%s637 + $0x10] sm:$0xf]
        %v653 = vld [vmem:[%s637 + $0x14] sm:$0xf]
        %v654 = vld [vmem:[%s637 + $0x18] sm:$0xf]
        %v655 = vld [vmem:[%s637 + $0x1c] sm:$0xf]
        %v656 = vld [vmem:[%s637 + $0x20] sm:$0xf]
        %v657 = vld [vmem:[%s637 + $0x24] sm:$0xf]
        %v658 = vld [vmem:[%s637 + $0x28] sm:$0xf]
        %v659 = vld [vmem:[%s637 + $0x2c] sm:$0xf]
        %v660 = vld [vmem:[%s637 + $0x30] sm:$0xf]
        %v661 = vld [vmem:[%s637 + $0x34] sm:$0xf]
        %v662 = vld [vmem:[%s637 + $0x38] sm:$0xf]
        %v663 = vld [vmem:[%s637 + $0x3c] sm:$0xf]
        %v664 = vld [vmem:[%s644] sm:$0xff]
        %v665 = vld [vmem:[%s644 + $0x8] sm:$0xff]
        %v666 = vld [vmem:[%s644 + $0x10] sm:$0xff]
        %v667 = vld [vmem:[%s644 + $0x18] sm:$0xff]
        %v668 = vld [vmem:[%s644 + $0x20] sm:$0xff]
        %v669 = vld [vmem:[%s644 + $0x28] sm:$0xff]
        %v670 = vld [vmem:[%s644 + $0x30] sm:$0xff]
        %v671 = vld [vmem:[%s644 + $0x38] sm:$0xff]
        %v672 = vld [vmem:[%s644 + $0x40] sm:$0xff]
        %v673 = vld [vmem:[%s644 + $0x48] sm:$0xff]
        %v674 = vld [vmem:[%s644 + $0x50] sm:$0xff]
        %v675 = vld [vmem:[%s644 + $0x58] sm:$0xff]
        %v676 = vld [vmem:[%s644 + $0x60] sm:$0xff]
        %v677 = vld [vmem:[%s644 + $0x68] sm:$0xff]
        %v678 = vld [vmem:[%s644 + $0x70] sm:$0xff]
        %v679 = vld [vmem:[%s644 + $0x78] sm:$0xff]
        %v680 = vld [vmem:[%s2] sm:$0xff]
        %v681 = vld [vmem:[%s2 + $0x8] sm:$0xff]
        %v682 = vld [vmem:[%s2 + $0x10] sm:$0xff]
        %v683 = vld [vmem:[%s2 + $0x18] sm:$0xff]
        %v684 = vld [vmem:[%s2 + $0x20] sm:$0xff]
        %v685 = vld [vmem:[%s2 + $0x28] sm:$0xff]
        %v702 = vunpack.c.l.b16 %v648
        %v703 = vunpack.c.l.b16 %v649
        %v704 = vunpack.c.l.b16 %v650
        %v705 = vunpack.c.l.b16 %v651
        %v706 = vunpack.c.l.b16 %v652
        %v707 = vunpack.c.l.b16 %v653
        %v708 = vunpack.c.l.b16 %v654
        %v709 = vunpack.c.l.b16 %v655
        %v710 = vunpack.c.l.b16 %v656
        %v711 = vunpack.c.l.b16 %v657
        %v712 = vunpack.c.l.b16 %v658
        %v713 = vunpack.c.l.b16 %v659
        %v714 = vunpack.c.l.b16 %v660
        %v715 = vunpack.c.l.b16 %v661
        %v716 = vunpack.c.l.b16 %v662
        %v717 = vunpack.c.l.b16 %v663
        %v718 = vpack.c.b16 %v703, %v702
        %v719 = vpack.c.b16 %v705, %v704
        %v720 = vpack.c.b16 %v707, %v706
        %v721 = vpack.c.b16 %v709, %v708
        %v722 = vpack.c.b16 %v711, %v710
        %v723 = vpack.c.b16 %v713, %v712
        %v724 = vpack.c.b16 %v715, %v714
        %v725 = vpack.c.b16 %v717, %v716
        %v732 = vunpack.c.l.b16 %v680
        %v733 = vunpack.c.h.b16 %v680
        %v734 = vunpack.c.l.b16 %v681
        %v735 = vunpack.c.h.b16 %v681
        %v736 = vunpack.c.l.b16 %v682
        %v737 = vunpack.c.h.b16 %v682
        %v738 = vunpack.c.l.b16 %v683
        %v739 = vunpack.c.h.b16 %v683
        %v740 = vunpack.c.l.b16 %v684
        %v741 = vunpack.c.h.b16 %v684
        %v742 = vunpack.c.l.b16 %v685
        %v743 = vunpack.c.h.b16 %v685
        %v744 = vpack.c.b16 %v734, %v732
        %v745 = vpack.c.b16 %v735, %v733
        %v746 = vpack.c.b16 %v738, %v736
        %v747 = vpack.c.b16 %v739, %v737
        %v748 = vpack.c.b16 %v742, %v740
        %v749 = vpack.c.b16 %v743, %v741
        %vm756 = vcmask 392192
        %v758 = vsel %vm756, %v718, 0
        %v761 = vsel %vm756, %v719, 0
        %v764 = vsel %vm756, %v720, 0
        %v767 = vsel %vm756, %v721, 0
        %v770 = vsel %vm756, %v722, 0
        %v773 = vsel %vm756, %v723, 0
        %v776 = vsel %vm756, %v724, 0
        %v779 = vsel %vm756, %v725, 0
        %781 = vmatprep.subr.bf16.mxu0 0
        %782 = vmatpush1.bf16.msra.mxu0 0
        %783 = vmatprep.subr.bf16.mxu0 0
        %784 = vmatpush1.bf16.msra.mxu0 0
        %785 = vmatprep.subr.bf16.mxu0 0
        %786 = vmatpush1.bf16.msra.mxu0 0
        %787 = vmatprep.subr.bf16.mxu0 0
        %788 = vmatpush1.bf16.msra.mxu0 0
        %789 = vmatprep.subr.bf16.mxu0 0
        %790 = vmatpush1.bf16.msra.mxu0 0
        %791 = vmatprep.subr.bf16.mxu0 %v749
        %792 = vmatpush1.bf16.msra.mxu0 %v748
        %793 = vmatprep.subr.bf16.mxu0 %v747
        %794 = vmatpush1.bf16.msra.mxu0 %v746
        %795 = vmatprep.subr.bf16.mxu0 %v745
        %796 = vmatpush1.bf16.msra.mxu0 %v744
        %797 = vmatprep.subr.bf16.mxu0 0
        %798 = vmatpush2.bf16.msra.mxu0 0
        %799 = vmatprep.subr.bf16.mxu0 0
        %800 = vmatpush2.bf16.msra.mxu0 0
        %801 = vmatprep.subr.bf16.mxu0 0
        %802 = vmatpush2.bf16.msra.mxu0 0
        %803 = vmatprep.subr.bf16.mxu0 0
        %804 = vmatpush2.bf16.msra.mxu0 0
        %805 = vmatprep.subr.bf16.mxu0 0
        %806 = vmatpush2.bf16.msra.mxu0 0
        %807 = vmatprep.subr.bf16.mxu0 0
        %808 = vmatpush2.bf16.msra.mxu0 0
        %809 = vmatprep.subr.bf16.mxu0 0
        %810 = vmatpush2.bf16.msra.mxu0 0
        %811 = vmatprep.subr.bf16.mxu0 0
        %812 = vmatpush2.bf16.msra.mxu0 0
        %813 = vmatprep.mubr.bf16.mxu0 0
        %814 = vmatmul.mubr.bf16.gmra.mxu0 %v758
        %v815 = vpop.f32.mrf.mxu0
        %v816 = vadd.f32 0.0, %v815
        %v817 = vpop.f32.mrf.mxu0
        %v818 = vadd.f32 0.0, %v817
        %v819 = vpop.f32.mrf.mxu0
        %v820 = vadd.f32 0.0, %v819
        %v821 = vpop.f32.mrf.mxu0
        %v822 = vadd.f32 0.0, %v821
        %823 = vmatprep.mubr.bf16.mxu0 0
        %824 = vmatmul.mubr.bf16.gmra.mxu0 %v761
        %v825 = vpop.f32.mrf.mxu0
        %v826 = vadd.f32 0.0, %v825
        %v827 = vpop.f32.mrf.mxu0
        %v828 = vadd.f32 0.0, %v827
        %v829 = vpop.f32.mrf.mxu0
        %v830 = vadd.f32 0.0, %v829
        %v831 = vpop.f32.mrf.mxu0
        %v832 = vadd.f32 0.0, %v831
        %833 = vmatprep.mubr.bf16.mxu0 0
        %834 = vmatmul.mubr.bf16.gmra.mxu0 %v764
        %v835 = vpop.f32.mrf.mxu0
        %v836 = vadd.f32 0.0, %v835
        %v837 = vpop.f32.mrf.mxu0
        %v838 = vadd.f32 0.0, %v837
        %v839 = vpop.f32.mrf.mxu0
        %v840 = vadd.f32 0.0, %v839
        %v841 = vpop.f32.mrf.mxu0
        %v842 = vadd.f32 0.0, %v841
        %843 = vmatprep.mubr.bf16.mxu0 0
        %844 = vmatmul.mubr.bf16.gmra.mxu0 %v767
        %v845 = vpop.f32.mrf.mxu0
        %v846 = vadd.f32 0.0, %v845
        %v847 = vpop.f32.mrf.mxu0
        %v848 = vadd.f32 0.0, %v847
        %v849 = vpop.f32.mrf.mxu0
        %v850 = vadd.f32 0.0, %v849
        %v851 = vpop.f32.mrf.mxu0
        %v852 = vadd.f32 0.0, %v851
        %853 = vmatprep.mubr.bf16.mxu0 0
        %854 = vmatmul.mubr.bf16.gmra.mxu0 %v770
        %v855 = vpop.f32.mrf.mxu0
        %v856 = vadd.f32 0.0, %v855
        %v857 = vpop.f32.mrf.mxu0
        %v858 = vadd.f32 0.0, %v857
        %v859 = vpop.f32.mrf.mxu0
        %v860 = vadd.f32 0.0, %v859
        %v861 = vpop.f32.mrf.mxu0
        %v862 = vadd.f32 0.0, %v861
        %863 = vmatprep.mubr.bf16.mxu0 0
        %864 = vmatmul.mubr.bf16.gmra.mxu0 %v773
        %v865 = vpop.f32.mrf.mxu0
        %v866 = vadd.f32 0.0, %v865
        %v867 = vpop.f32.mrf.mxu0
        %v868 = vadd.f32 0.0, %v867
        %v869 = vpop.f32.mrf.mxu0
        %v870 = vadd.f32 0.0, %v869
        %v871 = vpop.f32.mrf.mxu0
        %v872 = vadd.f32 0.0, %v871
        %873 = vmatprep.mubr.bf16.mxu0 0
        %874 = vmatmul.mubr.bf16.gmra.mxu0 %v776
        %v875 = vpop.f32.mrf.mxu0
        %v876 = vadd.f32 0.0, %v875
        %v877 = vpop.f32.mrf.mxu0
        %v878 = vadd.f32 0.0, %v877
        %v879 = vpop.f32.mrf.mxu0
        %v880 = vadd.f32 0.0, %v879
        %v881 = vpop.f32.mrf.mxu0
        %v882 = vadd.f32 0.0, %v881
        %883 = vmatprep.mubr.bf16.mxu0 0
        %884 = vmatmul.mubr.bf16.gmra.mxu0 %v779
        %v885 = vpop.f32.mrf.mxu0
        %v886 = vadd.f32 0.0, %v885
        %v887 = vpop.f32.mrf.mxu0
        %v888 = vadd.f32 0.0, %v887
        %v889 = vpop.f32.mrf.mxu0
        %v890 = vadd.f32 0.0, %v889
        %v891 = vpop.f32.mrf.mxu0
        %v892 = vadd.f32 0.0, %v891
        %893 = vdwg.mxu0
        %v894 = vrot.slane %v816, 7
        %v895 = vrot.slane %v820, 7
        %v896 = vrot.slane %v826, 7
        %v897 = vrot.slane %v830, 7
        %v898 = vrot.slane %v836, 7
        %v899 = vrot.slane %v840, 7
        %v900 = vrot.slane %v846, 7
        %v901 = vrot.slane %v850, 7
        %v902 = vrot.slane %v856, 7
        %v903 = vrot.slane %v860, 7
        %v904 = vrot.slane %v866, 7
        %v905 = vrot.slane %v870, 7
        %v906 = vrot.slane %v876, 7
        %v907 = vrot.slane %v880, 7
        %v908 = vrot.slane %v886, 7
        %v909 = vrot.slane %v890, 7
        %v910 = vlaneseq
        %v911 = vshrl.u32 %v910, 7
        %vm912 = vcmp.lt.s32.totalorder %v911, 1
        %v913 = vsel %vm912, %v908, %v909
        %v914 = vsel %vm912, %v907, %v908
        %v915 = vsel %vm912, %v906, %v907
        %v916 = vsel %vm912, %v905, %v906
        %v917 = vsel %vm912, %v904, %v905
        %v918 = vsel %vm912, %v903, %v904
        %v919 = vsel %vm912, %v902, %v903
        %v920 = vsel %vm912, %v901, %v902
        %v921 = vsel %vm912, %v900, %v901
        %v922 = vsel %vm912, %v899, %v900
        %v923 = vsel %vm912, %v898, %v899
        %v924 = vsel %vm912, %v897, %v898
        %v925 = vsel %vm912, %v896, %v897
        %v926 = vsel %vm912, %v895, %v896
        %v927 = vsel %vm912, %v894, %v895
        %v928 = vsel %vm912, %v909, %v894
        %v929 = vadd.s32 %v911, 8
        %vm930 = vcmp.ge.s32.totalorder %v911, 1
        %vm931 = vcmp.ge.s32.totalorder %v929, 1
        %v932 = vsel %vm930, %v928, 0.0
        %v933 = vsel %vm931, %v927, 0.0
        %v934 = vsel %vm930, %v926, 0.0
        %v935 = vsel %vm931, %v925, 0.0
        %v936 = vsel %vm930, %v924, 0.0
        %v937 = vsel %vm931, %v923, 0.0
        %v938 = vsel %vm930, %v922, 0.0
        %v939 = vsel %vm931, %v921, 0.0
        %v940 = vsel %vm930, %v920, 0.0
        %v941 = vsel %vm931, %v919, 0.0
        %v942 = vsel %vm930, %v918, 0.0
        %v943 = vsel %vm931, %v917, 0.0
        %v944 = vsel %vm930, %v916, 0.0
        %v945 = vsel %vm931, %v915, 0.0
        %v946 = vsel %vm930, %v914, 0.0
        %v947 = vsel %vm931, %v913, 0.0
        %964 = vrot.lane.b32.xlu0 %v816, 96
        %v965 = vpop.permute.xlu0 %964
        %966 = vrot.lane.b32.xlu0 %v820, 96
        %v967 = vpop.permute.xlu0 %966
        %968 = vrot.lane.b32.xlu0 %v826, 96
        %v969 = vpop.permute.xlu0 %968
        %970 = vrot.lane.b32.xlu0 %v830, 96
        %v971 = vpop.permute.xlu0 %970
        %972 = vrot.lane.b32.xlu0 %v836, 96
        %v973 = vpop.permute.xlu0 %972
        %974 = vrot.lane.b32.xlu0 %v840, 96
        %v975 = vpop.permute.xlu0 %974
        %976 = vrot.lane.b32.xlu0 %v846, 96
        %v977 = vpop.permute.xlu0 %976
        %978 = vrot.lane.b32.xlu0 %v850, 96
        %v979 = vpop.permute.xlu0 %978
        %980 = vrot.lane.b32.xlu0 %v856, 96
        %v981 = vpop.permute.xlu0 %980
        %982 = vrot.lane.b32.xlu0 %v860, 96
        %v983 = vpop.permute.xlu0 %982
        %984 = vrot.lane.b32.xlu0 %v866, 96
        %v985 = vpop.permute.xlu0 %984
        %986 = vrot.lane.b32.xlu0 %v870, 96
        %v987 = vpop.permute.xlu0 %986
        %988 = vrot.lane.b32.xlu0 %v876, 96
        %v989 = vpop.permute.xlu0 %988
        %990 = vrot.lane.b32.xlu0 %v880, 96
        %v991 = vpop.permute.xlu0 %990
        %992 = vrot.lane.b32.xlu0 %v886, 96
        %v993 = vpop.permute.xlu0 %992
        %994 = vrot.lane.b32.xlu0 %v890, 96
        %v995 = vpop.permute.xlu0 %994
        %v1012 = vadd.f32 %v932, %v965
        %v1013 = vadd.f32 %v933, %v967
        %v1014 = vadd.f32 %v934, %v969
        %v1015 = vadd.f32 %v935, %v971
        %v1016 = vadd.f32 %v936, %v973
        %v1017 = vadd.f32 %v937, %v975
        %v1018 = vadd.f32 %v938, %v977
        %v1019 = vadd.f32 %v939, %v979
        %v1020 = vadd.f32 %v940, %v981
        %v1021 = vadd.f32 %v941, %v983
        %v1022 = vadd.f32 %v942, %v985
        %v1023 = vadd.f32 %v943, %v987
        %v1024 = vadd.f32 %v944, %v989
        %v1025 = vadd.f32 %v945, %v991
        %v1026 = vadd.f32 %v946, %v993
        %v1027 = vadd.f32 %v947, %v995
        %1028 = vrot.lane.b32.xlu0 %v816, 64
        %v1029 = vpop.permute.xlu0 %1028
        %1030 = vrot.lane.b32.xlu0 %v820, 64
        %v1031 = vpop.permute.xlu0 %1030
        %1032 = vrot.lane.b32.xlu0 %v826, 64
        %v1033 = vpop.permute.xlu0 %1032
        %1034 = vrot.lane.b32.xlu0 %v830, 64
        %v1035 = vpop.permute.xlu0 %1034
        %1036 = vrot.lane.b32.xlu0 %v836, 64
        %v1037 = vpop.permute.xlu0 %1036
        %1038 = vrot.lane.b32.xlu0 %v840, 64
        %v1039 = vpop.permute.xlu0 %1038
        %1040 = vrot.lane.b32.xlu0 %v846, 64
        %v1041 = vpop.permute.xlu0 %1040
        %1042 = vrot.lane.b32.xlu0 %v850, 64
        %v1043 = vpop.permute.xlu0 %1042
        %1044 = vrot.lane.b32.xlu0 %v856, 64
        %v1045 = vpop.permute.xlu0 %1044
        %1046 = vrot.lane.b32.xlu0 %v860, 64
        %v1047 = vpop.permute.xlu0 %1046
        %1048 = vrot.lane.b32.xlu0 %v866, 64
        %v1049 = vpop.permute.xlu0 %1048
        %1050 = vrot.lane.b32.xlu0 %v870, 64
        %v1051 = vpop.permute.xlu0 %1050
        %1052 = vrot.lane.b32.xlu0 %v876, 64
        %v1053 = vpop.permute.xlu0 %1052
        %1054 = vrot.lane.b32.xlu0 %v880, 64
        %v1055 = vpop.permute.xlu0 %1054
        %1056 = vrot.lane.b32.xlu0 %v886, 64
        %v1057 = vpop.permute.xlu0 %1056
        %1058 = vrot.lane.b32.xlu0 %v890, 64
        %v1059 = vpop.permute.xlu0 %1058
        %v1076 = vrot.slane %v1029, 1
        %v1077 = vrot.slane %v1031, 1
        %v1078 = vrot.slane %v1033, 1
        %v1079 = vrot.slane %v1035, 1
        %v1080 = vrot.slane %v1037, 1
        %v1081 = vrot.slane %v1039, 1
        %v1082 = vrot.slane %v1041, 1
        %v1083 = vrot.slane %v1043, 1
        %v1084 = vrot.slane %v1045, 1
        %v1085 = vrot.slane %v1047, 1
        %v1086 = vrot.slane %v1049, 1
        %v1087 = vrot.slane %v1051, 1
        %v1088 = vrot.slane %v1053, 1
        %v1089 = vrot.slane %v1055, 1
        %v1090 = vrot.slane %v1057, 1
        %v1091 = vrot.slane %v1059, 1
        %vm1092 = vcmp.lt.s32.totalorder %v911, 7
        %v1093 = vsel %vm1092, %v1090, %v1091
        %v1094 = vsel %vm1092, %v1089, %v1090
        %v1095 = vsel %vm1092, %v1088, %v1089
        %v1096 = vsel %vm1092, %v1087, %v1088
        %v1097 = vsel %vm1092, %v1086, %v1087
        %v1098 = vsel %vm1092, %v1085, %v1086
        %v1099 = vsel %vm1092, %v1084, %v1085
        %v1100 = vsel %vm1092, %v1083, %v1084
        %v1101 = vsel %vm1092, %v1082, %v1083
        %v1102 = vsel %vm1092, %v1081, %v1082
        %v1103 = vsel %vm1092, %v1080, %v1081
        %v1104 = vsel %vm1092, %v1079, %v1080
        %v1105 = vsel %vm1092, %v1078, %v1079
        %v1106 = vsel %vm1092, %v1077, %v1078
        %v1107 = vsel %vm1092, %v1076, %v1077
        %v1108 = vsel %vm1092, %v1091, %v1076
        %vm1109 = vcmp.lt.s32.totalorder %v911, 15
        %vm1110 = vcmp.lt.s32.totalorder %v929, 15
        %v1111 = vsel %vm1109, %v1107, 0.0
        %v1112 = vsel %vm1110, %v1106, 0.0
        %v1113 = vsel %vm1109, %v1105, 0.0
        %v1114 = vsel %vm1110, %v1104, 0.0
        %v1115 = vsel %vm1109, %v1103, 0.0
        %v1116 = vsel %vm1110, %v1102, 0.0
        %v1117 = vsel %vm1109, %v1101, 0.0
        %v1118 = vsel %vm1110, %v1100, 0.0
        %v1119 = vsel %vm1109, %v1099, 0.0
        %v1120 = vsel %vm1110, %v1098, 0.0
        %v1121 = vsel %vm1109, %v1097, 0.0
        %v1122 = vsel %vm1110, %v1096, 0.0
        %v1123 = vsel %vm1109, %v1095, 0.0
        %v1124 = vsel %vm1110, %v1094, 0.0
        %v1125 = vsel %vm1109, %v1093, 0.0
        %v1126 = vsel %vm1110, %v1108, 0.0
        %v1127 = vadd.f32 %v1012, %v1111
        %v1128 = vadd.f32 %v1013, %v1112
        %v1129 = vadd.f32 %v1014, %v1113
        %v1130 = vadd.f32 %v1015, %v1114
        %v1131 = vadd.f32 %v1016, %v1115
        %v1132 = vadd.f32 %v1017, %v1116
        %v1133 = vadd.f32 %v1018, %v1117
        %v1134 = vadd.f32 %v1019, %v1118
        %v1135 = vadd.f32 %v1020, %v1119
        %v1136 = vadd.f32 %v1021, %v1120
        %v1137 = vadd.f32 %v1022, %v1121
        %v1138 = vadd.f32 %v1023, %v1122
        %v1139 = vadd.f32 %v1024, %v1123
        %v1140 = vadd.f32 %v1025, %v1124
        %v1141 = vadd.f32 %v1026, %v1125
        %v1142 = vadd.f32 %v1027, %v1126
        %v1143 = vld [vmem:[%s3] sm:$0x1]
        %v1145 = vlaneseq
        %v1146 = vshrl.u32 %v1145, 7
        %v1147 = vsub.s32 0, %v1146
        %v1148 = vrot.slane %v1143, %v1147
        %v1150 = vadd.f32 %v1127, %v1148
        %v1151 = vadd.f32 %v1128, %v1148
        %v1152 = vadd.f32 %v1129, %v1148
        %v1153 = vadd.f32 %v1130, %v1148
        %v1154 = vadd.f32 %v1131, %v1148
        %v1155 = vadd.f32 %v1132, %v1148
        %v1156 = vadd.f32 %v1133, %v1148
        %v1157 = vadd.f32 %v1134, %v1148
        %v1158 = vadd.f32 %v1135, %v1148
        %v1159 = vadd.f32 %v1136, %v1148
        %v1160 = vadd.f32 %v1137, %v1148
        %v1161 = vadd.f32 %v1138, %v1148
        %v1162 = vadd.f32 %v1139, %v1148
        %v1163 = vadd.f32 %v1140, %v1148
        %v1164 = vadd.f32 %v1141, %v1148
        %v1165 = vadd.f32 %v1142, %v1148
        %1167 = vset.pattern.permute.xlu0 0
        %1168 = vperm.xlu0 %1167, %v664
        %v1169 = vpop.permute.xlu0 %1168
        %1172 = vset.pattern.permute.xlu0 0
        %1173 = vperm.xlu0 %1172, %v665
        %v1174 = vpop.permute.xlu0 %1173
        %1177 = vset.pattern.permute.xlu0 0
        %1178 = vperm.xlu0 %1177, %v666
        %v1179 = vpop.permute.xlu0 %1178
        %1182 = vset.pattern.permute.xlu0 0
        %1183 = vperm.xlu0 %1182, %v667
        %v1184 = vpop.permute.xlu0 %1183
        %1187 = vset.pattern.permute.xlu0 0
        %1188 = vperm.xlu0 %1187, %v668
        %v1189 = vpop.permute.xlu0 %1188
        %1192 = vset.pattern.permute.xlu0 0
        %1193 = vperm.xlu0 %1192, %v669
        %v1194 = vpop.permute.xlu0 %1193
        %1197 = vset.pattern.permute.xlu0 0
        %1198 = vperm.xlu0 %1197, %v670
        %v1199 = vpop.permute.xlu0 %1198
        %1202 = vset.pattern.permute.xlu0 0
        %1203 = vperm.xlu0 %1202, %v671
        %v1204 = vpop.permute.xlu0 %1203
        %1207 = vset.pattern.permute.xlu0 0
        %1208 = vperm.xlu0 %1207, %v672
        %v1209 = vpop.permute.xlu0 %1208
        %1212 = vset.pattern.permute.xlu0 0
        %1213 = vperm.xlu0 %1212, %v673
        %v1214 = vpop.permute.xlu0 %1213
        %1217 = vset.pattern.permute.xlu0 0
        %1218 = vperm.xlu0 %1217, %v674
        %v1219 = vpop.permute.xlu0 %1218
        %1222 = vset.pattern.permute.xlu0 0
        %1223 = vperm.xlu0 %1222, %v675
        %v1224 = vpop.permute.xlu0 %1223
        %1227 = vset.pattern.permute.xlu0 0
        %1228 = vperm.xlu0 %1227, %v676
        %v1229 = vpop.permute.xlu0 %1228
        %1232 = vset.pattern.permute.xlu0 0
        %1233 = vperm.xlu0 %1232, %v677
        %v1234 = vpop.permute.xlu0 %1233
        %1237 = vset.pattern.permute.xlu0 0
        %1238 = vperm.xlu0 %1237, %v678
        %v1239 = vpop.permute.xlu0 %1238
        %1242 = vset.pattern.permute.xlu0 0
        %1243 = vperm.xlu0 %1242, %v679
        %v1244 = vpop.permute.xlu0 %1243
        %v1246 = vmul.f32 %v1150, %v1169
        %v1247 = vmul.f32 %v1151, %v1174
        %v1248 = vmul.f32 %v1152, %v1179
        %v1249 = vmul.f32 %v1153, %v1184
        %v1250 = vmul.f32 %v1154, %v1189
        %v1251 = vmul.f32 %v1155, %v1194
        %v1252 = vmul.f32 %v1156, %v1199
        %v1253 = vmul.f32 %v1157, %v1204
        %v1254 = vmul.f32 %v1158, %v1209
        %v1255 = vmul.f32 %v1159, %v1214
        %v1256 = vmul.f32 %v1160, %v1219
        %v1257 = vmul.f32 %v1161, %v1224
        %v1258 = vmul.f32 %v1162, %v1229
        %v1259 = vmul.f32 %v1163, %v1234
        %v1260 = vmul.f32 %v1164, %v1239
        %v1261 = vmul.f32 %v1165, %v1244
        %v1262 = vmax.f32 %v1246, 0.0
        %v1263 = vmax.f32 %v1247, 0.0
        %v1264 = vmax.f32 %v1248, 0.0
        %v1265 = vmax.f32 %v1249, 0.0
        %v1266 = vmax.f32 %v1250, 0.0
        %v1267 = vmax.f32 %v1251, 0.0
        %v1268 = vmax.f32 %v1252, 0.0
        %v1269 = vmax.f32 %v1253, 0.0
        %v1270 = vmax.f32 %v1254, 0.0
        %v1271 = vmax.f32 %v1255, 0.0
        %v1272 = vmax.f32 %v1256, 0.0
        %v1273 = vmax.f32 %v1257, 0.0
        %v1274 = vmax.f32 %v1258, 0.0
        %v1275 = vmax.f32 %v1259, 0.0
        %v1276 = vmax.f32 %v1260, 0.0
        %v1277 = vmax.f32 %v1261, 0.0
        %v1278 = vpack.c.bf16 %v1263, %v1262
        %v1279 = vpack.c.bf16 %v1265, %v1264
        %v1280 = vpack.c.bf16 %v1267, %v1266
        %v1281 = vpack.c.bf16 %v1269, %v1268
        %v1282 = vpack.c.bf16 %v1271, %v1270
        %v1283 = vpack.c.bf16 %v1273, %v1272
        %v1284 = vpack.c.bf16 %v1275, %v1274
        %v1285 = vpack.c.bf16 %v1277, %v1276
        %1286 = vrot.lane.b32.xlu0 %v816, 32
        %v1287 = vpop.permute.xlu0 %1286
        %1288 = vrot.lane.b32.xlu0 %v820, 32
        %v1289 = vpop.permute.xlu0 %1288
        %1290 = vrot.lane.b32.xlu0 %v826, 32
        %v1291 = vpop.permute.xlu0 %1290
        %1292 = vrot.lane.b32.xlu0 %v830, 32
        %v1293 = vpop.permute.xlu0 %1292
        %1294 = vrot.lane.b32.xlu0 %v836, 32
        %v1295 = vpop.permute.xlu0 %1294
        %1296 = vrot.lane.b32.xlu0 %v840, 32
        %v1297 = vpop.permute.xlu0 %1296
        %1298 = vrot.lane.b32.xlu0 %v846, 32
        %v1299 = vpop.permute.xlu0 %1298
        %1300 = vrot.lane.b32.xlu0 %v850, 32
        %v1301 = vpop.permute.xlu0 %1300
        %1302 = vrot.lane.b32.xlu0 %v856, 32
        %v1303 = vpop.permute.xlu0 %1302
        %1304 = vrot.lane.b32.xlu0 %v860, 32
        %v1305 = vpop.permute.xlu0 %1304
        %1306 = vrot.lane.b32.xlu0 %v866, 32
        %v1307 = vpop.permute.xlu0 %1306
        %1308 = vrot.lane.b32.xlu0 %v870, 32
        %v1309 = vpop.permute.xlu0 %1308
        %1310 = vrot.lane.b32.xlu0 %v876, 32
        %v1311 = vpop.permute.xlu0 %1310
        %1312 = vrot.lane.b32.xlu0 %v880, 32
        %v1313 = vpop.permute.xlu0 %1312
        %1314 = vrot.lane.b32.xlu0 %v886, 32
        %v1315 = vpop.permute.xlu0 %1314
        %1316 = vrot.lane.b32.xlu0 %v890, 32
        %v1317 = vpop.permute.xlu0 %1316
        %v1334 = vrot.slane %v1287, 6
        %v1335 = vrot.slane %v1289, 6
        %v1336 = vrot.slane %v1291, 6
        %v1337 = vrot.slane %v1293, 6
        %v1338 = vrot.slane %v1295, 6
        %v1339 = vrot.slane %v1297, 6
        %v1340 = vrot.slane %v1299, 6
        %v1341 = vrot.slane %v1301, 6
        %v1342 = vrot.slane %v1303, 6
        %v1343 = vrot.slane %v1305, 6
        %v1344 = vrot.slane %v1307, 6
        %v1345 = vrot.slane %v1309, 6
        %v1346 = vrot.slane %v1311, 6
        %v1347 = vrot.slane %v1313, 6
        %v1348 = vrot.slane %v1315, 6
        %v1349 = vrot.slane %v1317, 6
        %vm1350 = vcmp.lt.s32.totalorder %v911, 2
        %v1351 = vsel %vm1350, %v1348, %v1349
        %v1352 = vsel %vm1350, %v1347, %v1348
        %v1353 = vsel %vm1350, %v1346, %v1347
        %v1354 = vsel %vm1350, %v1345, %v1346
        %v1355 = vsel %vm1350, %v1344, %v1345
        %v1356 = vsel %vm1350, %v1343, %v1344
        %v1357 = vsel %vm1350, %v1342, %v1343
        %v1358 = vsel %vm1350, %v1341, %v1342
        %v1359 = vsel %vm1350, %v1340, %v1341
        %v1360 = vsel %vm1350, %v1339, %v1340
        %v1361 = vsel %vm1350, %v1338, %v1339
        %v1362 = vsel %vm1350, %v1337, %v1338
        %v1363 = vsel %vm1350, %v1336, %v1337
        %v1364 = vsel %vm1350, %v1335, %v1336
        %v1365 = vsel %vm1350, %v1334, %v1335
        %v1366 = vsel %vm1350, %v1349, %v1334
        %vm1367 = vcmp.ge.s32.totalorder %v911, 2
        %vm1368 = vcmp.ge.s32.totalorder %v929, 2
        %v1369 = vsel %vm1367, %v1366, 0.0
        %v1370 = vsel %vm1368, %v1365, 0.0
        %v1371 = vsel %vm1367, %v1364, 0.0
        %v1372 = vsel %vm1368, %v1363, 0.0
        %v1373 = vsel %vm1367, %v1362, 0.0
        %v1374 = vsel %vm1368, %v1361, 0.0
        %v1375 = vsel %vm1367, %v1360, 0.0
        %v1376 = vsel %vm1368, %v1359, 0.0
        %v1377 = vsel %vm1367, %v1358, 0.0
        %v1378 = vsel %vm1368, %v1357, 0.0
        %v1379 = vsel %vm1367, %v1356, 0.0
        %v1380 = vsel %vm1368, %v1355, 0.0
        %v1381 = vsel %vm1367, %v1354, 0.0
        %v1382 = vsel %vm1368, %v1353, 0.0
        %v1383 = vsel %vm1367, %v1352, 0.0
        %v1384 = vsel %vm1368, %v1351, 0.0
        %v1385 = vrot.slane %v818, 7
        %v1386 = vrot.slane %v822, 7
        %v1387 = vrot.slane %v828, 7
        %v1388 = vrot.slane %v832, 7
        %v1389 = vrot.slane %v838, 7
        %v1390 = vrot.slane %v842, 7
        %v1391 = vrot.slane %v848, 7
        %v1392 = vrot.slane %v852, 7
        %v1393 = vrot.slane %v858, 7
        %v1394 = vrot.slane %v862, 7
        %v1395 = vrot.slane %v868, 7
        %v1396 = vrot.slane %v872, 7
        %v1397 = vrot.slane %v878, 7
        %v1398 = vrot.slane %v882, 7
        %v1399 = vrot.slane %v888, 7
        %v1400 = vrot.slane %v892, 7
        %v1401 = vsel %vm912, %v1399, %v1400
        %v1402 = vsel %vm912, %v1398, %v1399
        %v1403 = vsel %vm912, %v1397, %v1398
        %v1404 = vsel %vm912, %v1396, %v1397
        %v1405 = vsel %vm912, %v1395, %v1396
        %v1406 = vsel %vm912, %v1394, %v1395
        %v1407 = vsel %vm912, %v1393, %v1394
        %v1408 = vsel %vm912, %v1392, %v1393
        %v1409 = vsel %vm912, %v1391, %v1392
        %v1410 = vsel %vm912, %v1390, %v1391
        %v1411 = vsel %vm912, %v1389, %v1390
        %v1412 = vsel %vm912, %v1388, %v1389
        %v1413 = vsel %vm912, %v1387, %v1388
        %v1414 = vsel %vm912, %v1386, %v1387
        %v1415 = vsel %vm912, %v1385, %v1386
        %v1416 = vsel %vm912, %v1400, %v1385
        %v1417 = vsel %vm930, %v1416, 0.0
        %v1418 = vsel %vm931, %v1415, 0.0
        %v1419 = vsel %vm930, %v1414, 0.0
        %v1420 = vsel %vm931, %v1413, 0.0
        %v1421 = vsel %vm930, %v1412, 0.0
        %v1422 = vsel %vm931, %v1411, 0.0
        %v1423 = vsel %vm930, %v1410, 0.0
        %v1424 = vsel %vm931, %v1409, 0.0
        %v1425 = vsel %vm930, %v1408, 0.0
        %v1426 = vsel %vm931, %v1407, 0.0
        %v1427 = vsel %vm930, %v1406, 0.0
        %v1428 = vsel %vm931, %v1405, 0.0
        %v1429 = vsel %vm930, %v1404, 0.0
        %v1430 = vsel %vm931, %v1403, 0.0
        %v1431 = vsel %vm930, %v1402, 0.0
        %v1432 = vsel %vm931, %v1401, 0.0
        %v1433 = vadd.f32 %v1369, %v1417
        %v1434 = vadd.f32 %v1370, %v1418
        %v1435 = vadd.f32 %v1371, %v1419
        %v1436 = vadd.f32 %v1372, %v1420
        %v1437 = vadd.f32 %v1373, %v1421
        %v1438 = vadd.f32 %v1374, %v1422
        %v1439 = vadd.f32 %v1375, %v1423
        %v1440 = vadd.f32 %v1376, %v1424
        %v1441 = vadd.f32 %v1377, %v1425
        %v1442 = vadd.f32 %v1378, %v1426
        %v1443 = vadd.f32 %v1379, %v1427
        %v1444 = vadd.f32 %v1380, %v1428
        %v1445 = vadd.f32 %v1381, %v1429
        %v1446 = vadd.f32 %v1382, %v1430
        %v1447 = vadd.f32 %v1383, %v1431
        %v1448 = vadd.f32 %v1384, %v1432
        %1465 = vrot.lane.b32.xlu0 %v818, 96
        %v1466 = vpop.permute.xlu0 %1465
        %1467 = vrot.lane.b32.xlu0 %v822, 96
        %v1468 = vpop.permute.xlu0 %1467
        %1469 = vrot.lane.b32.xlu0 %v828, 96
        %v1470 = vpop.permute.xlu0 %1469
        %1471 = vrot.lane.b32.xlu0 %v832, 96
        %v1472 = vpop.permute.xlu0 %1471
        %1473 = vrot.lane.b32.xlu0 %v838, 96
        %v1474 = vpop.permute.xlu0 %1473
        %1475 = vrot.lane.b32.xlu0 %v842, 96
        %v1476 = vpop.permute.xlu0 %1475
        %1477 = vrot.lane.b32.xlu0 %v848, 96
        %v1478 = vpop.permute.xlu0 %1477
        %1479 = vrot.lane.b32.xlu0 %v852, 96
        %v1480 = vpop.permute.xlu0 %1479
        %1481 = vrot.lane.b32.xlu0 %v858, 96
        %v1482 = vpop.permute.xlu0 %1481
        %1483 = vrot.lane.b32.xlu0 %v862, 96
        %v1484 = vpop.permute.xlu0 %1483
        %1485 = vrot.lane.b32.xlu0 %v868, 96
        %v1486 = vpop.permute.xlu0 %1485
        %1487 = vrot.lane.b32.xlu0 %v872, 96
        %v1488 = vpop.permute.xlu0 %1487
        %1489 = vrot.lane.b32.xlu0 %v878, 96
        %v1490 = vpop.permute.xlu0 %1489
        %1491 = vrot.lane.b32.xlu0 %v882, 96
        %v1492 = vpop.permute.xlu0 %1491
        %1493 = vrot.lane.b32.xlu0 %v888, 96
        %v1494 = vpop.permute.xlu0 %1493
        %1495 = vrot.lane.b32.xlu0 %v892, 96
        %v1496 = vpop.permute.xlu0 %1495
        %v1513 = vadd.f32 %v1433, %v1466
        %v1514 = vadd.f32 %v1434, %v1468
        %v1515 = vadd.f32 %v1435, %v1470
        %v1516 = vadd.f32 %v1436, %v1472
        %v1517 = vadd.f32 %v1437, %v1474
        %v1518 = vadd.f32 %v1438, %v1476
        %v1519 = vadd.f32 %v1439, %v1478
        %v1520 = vadd.f32 %v1440, %v1480
        %v1521 = vadd.f32 %v1441, %v1482
        %v1522 = vadd.f32 %v1442, %v1484
        %v1523 = vadd.f32 %v1443, %v1486
        %v1524 = vadd.f32 %v1444, %v1488
        %v1525 = vadd.f32 %v1445, %v1490
        %v1526 = vadd.f32 %v1446, %v1492
        %v1527 = vadd.f32 %v1447, %v1494
        %v1528 = vadd.f32 %v1448, %v1496
        %1529 = vrot.lane.b32.xlu0 %v818, 64
        %v1530 = vpop.permute.xlu0 %1529
        %1531 = vrot.lane.b32.xlu0 %v822, 64
        %v1532 = vpop.permute.xlu0 %1531
        %1533 = vrot.lane.b32.xlu0 %v828, 64
        %v1534 = vpop.permute.xlu0 %1533
        %1535 = vrot.lane.b32.xlu0 %v832, 64
        %v1536 = vpop.permute.xlu0 %1535
        %1537 = vrot.lane.b32.xlu0 %v838, 64
        %v1538 = vpop.permute.xlu0 %1537
        %1539 = vrot.lane.b32.xlu0 %v842, 64
        %v1540 = vpop.permute.xlu0 %1539
        %1541 = vrot.lane.b32.xlu0 %v848, 64
        %v1542 = vpop.permute.xlu0 %1541
        %1543 = vrot.lane.b32.xlu0 %v852, 64
        %v1544 = vpop.permute.xlu0 %1543
        %1545 = vrot.lane.b32.xlu0 %v858, 64
        %v1546 = vpop.permute.xlu0 %1545
        %1547 = vrot.lane.b32.xlu0 %v862, 64
        %v1548 = vpop.permute.xlu0 %1547
        %1549 = vrot.lane.b32.xlu0 %v868, 64
        %v1550 = vpop.permute.xlu0 %1549
        %1551 = vrot.lane.b32.xlu0 %v872, 64
        %v1552 = vpop.permute.xlu0 %1551
        %1553 = vrot.lane.b32.xlu0 %v878, 64
        %v1554 = vpop.permute.xlu0 %1553
        %1555 = vrot.lane.b32.xlu0 %v882, 64
        %v1556 = vpop.permute.xlu0 %1555
        %1557 = vrot.lane.b32.xlu0 %v888, 64
        %v1558 = vpop.permute.xlu0 %1557
        %1559 = vrot.lane.b32.xlu0 %v892, 64
        %v1560 = vpop.permute.xlu0 %1559
        %v1577 = vrot.slane %v1530, 1
        %v1578 = vrot.slane %v1532, 1
        %v1579 = vrot.slane %v1534, 1
        %v1580 = vrot.slane %v1536, 1
        %v1581 = vrot.slane %v1538, 1
        %v1582 = vrot.slane %v1540, 1
        %v1583 = vrot.slane %v1542, 1
        %v1584 = vrot.slane %v1544, 1
        %v1585 = vrot.slane %v1546, 1
        %v1586 = vrot.slane %v1548, 1
        %v1587 = vrot.slane %v1550, 1
        %v1588 = vrot.slane %v1552, 1
        %v1589 = vrot.slane %v1554, 1
        %v1590 = vrot.slane %v1556, 1
        %v1591 = vrot.slane %v1558, 1
        %v1592 = vrot.slane %v1560, 1
        %v1593 = vsel %vm1092, %v1591, %v1592
        %v1594 = vsel %vm1092, %v1590, %v1591
        %v1595 = vsel %vm1092, %v1589, %v1590
        %v1596 = vsel %vm1092, %v1588, %v1589
        %v1597 = vsel %vm1092, %v1587, %v1588
        %v1598 = vsel %vm1092, %v1586, %v1587
        %v1599 = vsel %vm1092, %v1585, %v1586
        %v1600 = vsel %vm1092, %v1584, %v1585
        %v1601 = vsel %vm1092, %v1583, %v1584
        %v1602 = vsel %vm1092, %v1582, %v1583
        %v1603 = vsel %vm1092, %v1581, %v1582
        %v1604 = vsel %vm1092, %v1580, %v1581
        %v1605 = vsel %vm1092, %v1579, %v1580
        %v1606 = vsel %vm1092, %v1578, %v1579
        %v1607 = vsel %vm1092, %v1577, %v1578
        %v1608 = vsel %vm1092, %v1592, %v1577
        %v1609 = vsel %vm1109, %v1607, 0.0
        %v1610 = vsel %vm1110, %v1606, 0.0
        %v1611 = vsel %vm1109, %v1605, 0.0
        %v1612 = vsel %vm1110, %v1604, 0.0
        %v1613 = vsel %vm1109, %v1603, 0.0
        %v1614 = vsel %vm1110, %v1602, 0.0
        %v1615 = vsel %vm1109, %v1601, 0.0
        %v1616 = vsel %vm1110, %v1600, 0.0
        %v1617 = vsel %vm1109, %v1599, 0.0
        %v1618 = vsel %vm1110, %v1598, 0.0
        %v1619 = vsel %vm1109, %v1597, 0.0
        %v1620 = vsel %vm1110, %v1596, 0.0
        %v1621 = vsel %vm1109, %v1595, 0.0
        %v1622 = vsel %vm1110, %v1594, 0.0
        %v1623 = vsel %vm1109, %v1593, 0.0
        %v1624 = vsel %vm1110, %v1608, 0.0
        %v1625 = vadd.f32 %v1513, %v1609
        %v1626 = vadd.f32 %v1514, %v1610
        %v1627 = vadd.f32 %v1515, %v1611
        %v1628 = vadd.f32 %v1516, %v1612
        %v1629 = vadd.f32 %v1517, %v1613
        %v1630 = vadd.f32 %v1518, %v1614
        %v1631 = vadd.f32 %v1519, %v1615
        %v1632 = vadd.f32 %v1520, %v1616
        %v1633 = vadd.f32 %v1521, %v1617
        %v1634 = vadd.f32 %v1522, %v1618
        %v1635 = vadd.f32 %v1523, %v1619
        %v1636 = vadd.f32 %v1524, %v1620
        %v1637 = vadd.f32 %v1525, %v1621
        %v1638 = vadd.f32 %v1526, %v1622
        %v1639 = vadd.f32 %v1527, %v1623
        %v1640 = vadd.f32 %v1528, %v1624
        %1641 = vrot.lane.b32.xlu0 %v818, 32
        %v1642 = vpop.permute.xlu0 %1641
        %1643 = vrot.lane.b32.xlu0 %v822, 32
        %v1644 = vpop.permute.xlu0 %1643
        %1645 = vrot.lane.b32.xlu0 %v828, 32
        %v1646 = vpop.permute.xlu0 %1645
        %1647 = vrot.lane.b32.xlu0 %v832, 32
        %v1648 = vpop.permute.xlu0 %1647
        %1649 = vrot.lane.b32.xlu0 %v838, 32
        %v1650 = vpop.permute.xlu0 %1649
        %1651 = vrot.lane.b32.xlu0 %v842, 32
        %v1652 = vpop.permute.xlu0 %1651
        %1653 = vrot.lane.b32.xlu0 %v848, 32
        %v1654 = vpop.permute.xlu0 %1653
        %1655 = vrot.lane.b32.xlu0 %v852, 32
        %v1656 = vpop.permute.xlu0 %1655
        %1657 = vrot.lane.b32.xlu0 %v858, 32
        %v1658 = vpop.permute.xlu0 %1657
        %1659 = vrot.lane.b32.xlu0 %v862, 32
        %v1660 = vpop.permute.xlu0 %1659
        %1661 = vrot.lane.b32.xlu0 %v868, 32
        %v1662 = vpop.permute.xlu0 %1661
        %1663 = vrot.lane.b32.xlu0 %v872, 32
        %v1664 = vpop.permute.xlu0 %1663
        %1665 = vrot.lane.b32.xlu0 %v878, 32
        %v1666 = vpop.permute.xlu0 %1665
        %1667 = vrot.lane.b32.xlu0 %v882, 32
        %v1668 = vpop.permute.xlu0 %1667
        %1669 = vrot.lane.b32.xlu0 %v888, 32
        %v1670 = vpop.permute.xlu0 %1669
        %1671 = vrot.lane.b32.xlu0 %v892, 32
        %v1672 = vpop.permute.xlu0 %1671
        %v1689 = vrot.slane %v1642, 2
        %v1690 = vrot.slane %v1644, 2
        %v1691 = vrot.slane %v1646, 2
        %v1692 = vrot.slane %v1648, 2
        %v1693 = vrot.slane %v1650, 2
        %v1694 = vrot.slane %v1652, 2
        %v1695 = vrot.slane %v1654, 2
        %v1696 = vrot.slane %v1656, 2
        %v1697 = vrot.slane %v1658, 2
        %v1698 = vrot.slane %v1660, 2
        %v1699 = vrot.slane %v1662, 2
        %v1700 = vrot.slane %v1664, 2
        %v1701 = vrot.slane %v1666, 2
        %v1702 = vrot.slane %v1668, 2
        %v1703 = vrot.slane %v1670, 2
        %v1704 = vrot.slane %v1672, 2
        %vm1705 = vcmp.lt.s32.totalorder %v911, 6
        %v1706 = vsel %vm1705, %v1703, %v1704
        %v1707 = vsel %vm1705, %v1702, %v1703
        %v1708 = vsel %vm1705, %v1701, %v1702
        %v1709 = vsel %vm1705, %v1700, %v1701
        %v1710 = vsel %vm1705, %v1699, %v1700
        %v1711 = vsel %vm1705, %v1698, %v1699
        %v1712 = vsel %vm1705, %v1697, %v1698
        %v1713 = vsel %vm1705, %v1696, %v1697
        %v1714 = vsel %vm1705, %v1695, %v1696
        %v1715 = vsel %vm1705, %v1694, %v1695
        %v1716 = vsel %vm1705, %v1693, %v1694
        %v1717 = vsel %vm1705, %v1692, %v1693
        %v1718 = vsel %vm1705, %v1691, %v1692
        %v1719 = vsel %vm1705, %v1690, %v1691
        %v1720 = vsel %vm1705, %v1689, %v1690
        %v1721 = vsel %vm1705, %v1704, %v1689
        %vm1722 = vcmp.lt.s32.totalorder %v911, 14
        %vm1723 = vcmp.lt.s32.totalorder %v929, 14
        %v1724 = vsel %vm1722, %v1720, 0.0
        %v1725 = vsel %vm1723, %v1719, 0.0
        %v1726 = vsel %vm1722, %v1718, 0.0
        %v1727 = vsel %vm1723, %v1717, 0.0
        %v1728 = vsel %vm1722, %v1716, 0.0
        %v1729 = vsel %vm1723, %v1715, 0.0
        %v1730 = vsel %vm1722, %v1714, 0.0
        %v1731 = vsel %vm1723, %v1713, 0.0
        %v1732 = vsel %vm1722, %v1712, 0.0
        %v1733 = vsel %vm1723, %v1711, 0.0
        %v1734 = vsel %vm1722, %v1710, 0.0
        %v1735 = vsel %vm1723, %v1709, 0.0
        %v1736 = vsel %vm1722, %v1708, 0.0
        %v1737 = vsel %vm1723, %v1707, 0.0
        %v1738 = vsel %vm1722, %v1706, 0.0
        %v1739 = vsel %vm1723, %v1721, 0.0
        %v1740 = vadd.f32 %v1625, %v1724
        %v1741 = vadd.f32 %v1626, %v1725
        %v1742 = vadd.f32 %v1627, %v1726
        %v1743 = vadd.f32 %v1628, %v1727
        %v1744 = vadd.f32 %v1629, %v1728
        %v1745 = vadd.f32 %v1630, %v1729
        %v1746 = vadd.f32 %v1631, %v1730
        %v1747 = vadd.f32 %v1632, %v1731
        %v1748 = vadd.f32 %v1633, %v1732
        %v1749 = vadd.f32 %v1634, %v1733
        %v1750 = vadd.f32 %v1635, %v1734
        %v1751 = vadd.f32 %v1636, %v1735
        %v1752 = vadd.f32 %v1637, %v1736
        %v1753 = vadd.f32 %v1638, %v1737
        %v1754 = vadd.f32 %v1639, %v1738
        %v1755 = vadd.f32 %v1640, %v1739
        %v1756 = vld [vmem:[%s4] sm:$0x1]
        %v1758 = vlaneseq
        %v1759 = vshrl.u32 %v1758, 7
        %v1760 = vsub.s32 0, %v1759
        %v1761 = vrot.slane %v1756, %v1760
        %v1763 = vadd.f32 %v1740, %v1761
        %v1764 = vadd.f32 %v1741, %v1761
        %v1765 = vadd.f32 %v1742, %v1761
        %v1766 = vadd.f32 %v1743, %v1761
        %v1767 = vadd.f32 %v1744, %v1761
        %v1768 = vadd.f32 %v1745, %v1761
        %v1769 = vadd.f32 %v1746, %v1761
        %v1770 = vadd.f32 %v1747, %v1761
        %v1771 = vadd.f32 %v1748, %v1761
        %v1772 = vadd.f32 %v1749, %v1761
        %v1773 = vadd.f32 %v1750, %v1761
        %v1774 = vadd.f32 %v1751, %v1761
        %v1775 = vadd.f32 %v1752, %v1761
        %v1776 = vadd.f32 %v1753, %v1761
        %v1777 = vadd.f32 %v1754, %v1761
        %v1778 = vadd.f32 %v1755, %v1761
        %v1779 = vmul.f32 %v1763, %v1169
        %v1780 = vmul.f32 %v1764, %v1174
        %v1781 = vmul.f32 %v1765, %v1179
        %v1782 = vmul.f32 %v1766, %v1184
        %v1783 = vmul.f32 %v1767, %v1189
        %v1784 = vmul.f32 %v1768, %v1194
        %v1785 = vmul.f32 %v1769, %v1199
        %v1786 = vmul.f32 %v1770, %v1204
        %v1787 = vmul.f32 %v1771, %v1209
        %v1788 = vmul.f32 %v1772, %v1214
        %v1789 = vmul.f32 %v1773, %v1219
        %v1790 = vmul.f32 %v1774, %v1224
        %v1791 = vmul.f32 %v1775, %v1229
        %v1792 = vmul.f32 %v1776, %v1234
        %v1793 = vmul.f32 %v1777, %v1239
        %v1794 = vmul.f32 %v1778, %v1244
        %v1795 = vmax.f32 %v1779, 0.0
        %v1796 = vmax.f32 %v1780, 0.0
        %v1797 = vmax.f32 %v1781, 0.0
        %v1798 = vmax.f32 %v1782, 0.0
        %v1799 = vmax.f32 %v1783, 0.0
        %v1800 = vmax.f32 %v1784, 0.0
        %v1801 = vmax.f32 %v1785, 0.0
        %v1802 = vmax.f32 %v1786, 0.0
        %v1803 = vmax.f32 %v1787, 0.0
        %v1804 = vmax.f32 %v1788, 0.0
        %v1805 = vmax.f32 %v1789, 0.0
        %v1806 = vmax.f32 %v1790, 0.0
        %v1807 = vmax.f32 %v1791, 0.0
        %v1808 = vmax.f32 %v1792, 0.0
        %v1809 = vmax.f32 %v1793, 0.0
        %v1810 = vmax.f32 %v1794, 0.0
        %v1811 = vpack.c.bf16 %v1796, %v1795
        %v1812 = vpack.c.bf16 %v1798, %v1797
        %v1813 = vpack.c.bf16 %v1800, %v1799
        %v1814 = vpack.c.bf16 %v1802, %v1801
        %v1815 = vpack.c.bf16 %v1804, %v1803
        %v1816 = vpack.c.bf16 %v1806, %v1805
        %v1817 = vpack.c.bf16 %v1808, %v1807
        %v1818 = vpack.c.bf16 %v1810, %v1809
        %v1819 = vld [vmem:[#allocation2] sm:$0xf]
        %v1820 = vld [vmem:[#allocation2 + $0x4] sm:$0xf]
        %v1821 = vld [vmem:[#allocation2 + $0x8] sm:$0xf]
        %v1822 = vld [vmem:[#allocation2 + $0xc] sm:$0xf]
        %v1827 = vunpack.c.l.b16 %v1819
        %v1828 = vunpack.c.l.b16 %v1820
        %v1829 = vunpack.c.l.b16 %v1821
        %v1830 = vunpack.c.l.b16 %v1822
        %v1831 = vpack.c.b16 %v1828, %v1827
        %v1832 = vpack.c.b16 %v1830, %v1829
        %vm1835 = vcmask 261120
        %v1837 = vsel %vm1835, %v1278, 0
        %v1840 = vsel %vm1835, %v1279, 0
        %v1843 = vsel %vm1835, %v1280, 0
        %v1846 = vsel %vm1835, %v1281, 0
        %v1849 = vsel %vm1835, %v1282, 0
        %v1852 = vsel %vm1835, %v1283, 0
        %v1855 = vsel %vm1835, %v1284, 0
        %v1858 = vsel %vm1835, %v1285, 0
        %1860 = vmatprep.subr.bf16.mxu0 0
        %1861 = vmatpush1.bf16.msra.mxu0 0
        %1862 = vmatprep.subr.bf16.mxu0 0
        %1863 = vmatpush1.bf16.msra.mxu0 0
        %1864 = vmatprep.subr.bf16.mxu0 0
        %1865 = vmatpush1.bf16.msra.mxu0 0
        %1866 = vmatprep.subr.bf16.mxu0 0
        %1867 = vmatpush1.bf16.msra.mxu0 0
        %1868 = vmatprep.subr.bf16.mxu0 0
        %1869 = vmatpush1.bf16.msra.mxu0 0
        %1870 = vmatprep.subr.bf16.mxu0 0
        %1871 = vmatpush1.bf16.msra.mxu0 0
        %1872 = vmatprep.subr.bf16.mxu0 0
        %1873 = vmatpush1.bf16.msra.mxu0 %v1832
        %1874 = vmatprep.subr.bf16.mxu0 0
        %1875 = vmatpush1.bf16.msra.mxu0 %v1831
        %1876 = vmatprep.subr.bf16.mxu0 0
        %1877 = vmatpush2.bf16.msra.mxu0 0
        %1878 = vmatprep.subr.bf16.mxu0 0
        %1879 = vmatpush2.bf16.msra.mxu0 0
        %1880 = vmatprep.subr.bf16.mxu0 0
        %1881 = vmatpush2.bf16.msra.mxu0 0
        %1882 = vmatprep.subr.bf16.mxu0 0
        %1883 = vmatpush2.bf16.msra.mxu0 0
        %1884 = vmatprep.subr.bf16.mxu0 0
        %1885 = vmatpush2.bf16.msra.mxu0 0
        %1886 = vmatprep.subr.bf16.mxu0 0
        %1887 = vmatpush2.bf16.msra.mxu0 0
        %1888 = vmatprep.subr.bf16.mxu0 0
        %1889 = vmatpush2.bf16.msra.mxu0 0
        %1890 = vmatprep.subr.bf16.mxu0 0
        %1891 = vmatpush2.bf16.msra.mxu0 0
        %1892 = vmatprep.mubr.bf16.mxu0 0
        %1893 = vmatmul.mubr.bf16.gmra.mxu0 %v1837
        %v1894 = vpop.f32.mrf.mxu0
        %v1895 = vadd.f32 0.0, %v1894
        %v1896 = vpop.f32.mrf.mxu0
        %v1897 = vpop.f32.mrf.mxu0
        %v1898 = vadd.f32 0.0, %v1897
        %v1899 = vpop.f32.mrf.mxu0
        %1900 = vmatprep.mubr.bf16.mxu0 0
        %1901 = vmatmul.mubr.bf16.gmra.mxu0 %v1840
        %v1902 = vpop.f32.mrf.mxu0
        %v1903 = vadd.f32 0.0, %v1902
        %v1904 = vpop.f32.mrf.mxu0
        %v1905 = vpop.f32.mrf.mxu0
        %v1906 = vadd.f32 0.0, %v1905
        %v1907 = vpop.f32.mrf.mxu0
        %1908 = vmatprep.mubr.bf16.mxu0 0
        %1909 = vmatmul.mubr.bf16.gmra.mxu0 %v1843
        %v1910 = vpop.f32.mrf.mxu0
        %v1911 = vadd.f32 0.0, %v1910
        %v1912 = vpop.f32.mrf.mxu0
        %v1913 = vpop.f32.mrf.mxu0
        %v1914 = vadd.f32 0.0, %v1913
        %v1915 = vpop.f32.mrf.mxu0
        %1916 = vmatprep.mubr.bf16.mxu0 0
        %1917 = vmatmul.mubr.bf16.gmra.mxu0 %v1846
        %v1918 = vpop.f32.mrf.mxu0
        %v1919 = vadd.f32 0.0, %v1918
        %v1920 = vpop.f32.mrf.mxu0
        %v1921 = vpop.f32.mrf.mxu0
        %v1922 = vadd.f32 0.0, %v1921
        %v1923 = vpop.f32.mrf.mxu0
        %1924 = vmatprep.mubr.bf16.mxu0 0
        %1925 = vmatmul.mubr.bf16.gmra.mxu0 %v1849
        %v1926 = vpop.f32.mrf.mxu0
        %v1927 = vadd.f32 0.0, %v1926
        %v1928 = vpop.f32.mrf.mxu0
        %v1929 = vpop.f32.mrf.mxu0
        %v1930 = vadd.f32 0.0, %v1929
        %v1931 = vpop.f32.mrf.mxu0
        %1932 = vmatprep.mubr.bf16.mxu0 0
        %1933 = vmatmul.mubr.bf16.gmra.mxu0 %v1852
        %v1934 = vpop.f32.mrf.mxu0
        %v1935 = vadd.f32 0.0, %v1934
        %v1936 = vpop.f32.mrf.mxu0
        %v1937 = vpop.f32.mrf.mxu0
        %v1938 = vadd.f32 0.0, %v1937
        %v1939 = vpop.f32.mrf.mxu0
        %1940 = vmatprep.mubr.bf16.mxu0 0
        %1941 = vmatmul.mubr.bf16.gmra.mxu0 %v1855
        %v1942 = vpop.f32.mrf.mxu0
        %v1943 = vadd.f32 0.0, %v1942
        %v1944 = vpop.f32.mrf.mxu0
        %v1945 = vpop.f32.mrf.mxu0
        %v1946 = vadd.f32 0.0, %v1945
        %v1947 = vpop.f32.mrf.mxu0
        %1948 = vmatprep.mubr.bf16.mxu0 0
        %1949 = vmatmul.mubr.bf16.gmra.mxu0 %v1858
        %v1950 = vpop.f32.mrf.mxu0
        %v1951 = vadd.f32 0.0, %v1950
        %v1952 = vpop.f32.mrf.mxu0
        %v1953 = vpop.f32.mrf.mxu0
        %v1954 = vadd.f32 0.0, %v1953
        %v1955 = vpop.f32.mrf.mxu0
        %1956 = vdwg.mxu0
        %v1957 = vrot.slane %v1895, 7
        %v1958 = vrot.slane %v1898, 7
        %v1959 = vrot.slane %v1903, 7
        %v1960 = vrot.slane %v1906, 7
        %v1961 = vrot.slane %v1911, 7
        %v1962 = vrot.slane %v1914, 7
        %v1963 = vrot.slane %v1919, 7
        %v1964 = vrot.slane %v1922, 7
        %v1965 = vrot.slane %v1927, 7
        %v1966 = vrot.slane %v1930, 7
        %v1967 = vrot.slane %v1935, 7
        %v1968 = vrot.slane %v1938, 7
        %v1969 = vrot.slane %v1943, 7
        %v1970 = vrot.slane %v1946, 7
        %v1971 = vrot.slane %v1951, 7
        %v1972 = vrot.slane %v1954, 7
        %v1973 = vsel %vm912, %v1971, %v1972
        %v1974 = vsel %vm912, %v1970, %v1971
        %v1975 = vsel %vm912, %v1969, %v1970
        %v1976 = vsel %vm912, %v1968, %v1969
        %v1977 = vsel %vm912, %v1967, %v1968
        %v1978 = vsel %vm912, %v1966, %v1967
        %v1979 = vsel %vm912, %v1965, %v1966
        %v1980 = vsel %vm912, %v1964, %v1965
        %v1981 = vsel %vm912, %v1963, %v1964
        %v1982 = vsel %vm912, %v1962, %v1963
        %v1983 = vsel %vm912, %v1961, %v1962
        %v1984 = vsel %vm912, %v1960, %v1961
        %v1985 = vsel %vm912, %v1959, %v1960
        %v1986 = vsel %vm912, %v1958, %v1959
        %v1987 = vsel %vm912, %v1957, %v1958
        %v1988 = vsel %vm912, %v1972, %v1957
        %v1989 = vsel %vm930, %v1988, 0.0
        %v1990 = vsel %vm931, %v1987, 0.0
        %v1991 = vsel %vm930, %v1986, 0.0
        %v1992 = vsel %vm931, %v1985, 0.0
        %v1993 = vsel %vm930, %v1984, 0.0
        %v1994 = vsel %vm931, %v1983, 0.0
        %v1995 = vsel %vm930, %v1982, 0.0
        %v1996 = vsel %vm931, %v1981, 0.0
        %v1997 = vsel %vm930, %v1980, 0.0
        %v1998 = vsel %vm931, %v1979, 0.0
        %v1999 = vsel %vm930, %v1978, 0.0
        %v2000 = vsel %vm931, %v1977, 0.0
        %v2001 = vsel %vm930, %v1976, 0.0
        %v2002 = vsel %vm931, %v1975, 0.0
        %v2003 = vsel %vm930, %v1974, 0.0
        %v2004 = vsel %vm931, %v1973, 0.0
        %2021 = vrot.lane.b32.xlu0 %v1895, 96
        %v2022 = vpop.permute.xlu0 %2021
        %2023 = vrot.lane.b32.xlu0 %v1898, 96
        %v2024 = vpop.permute.xlu0 %2023
        %2025 = vrot.lane.b32.xlu0 %v1903, 96
        %v2026 = vpop.permute.xlu0 %2025
        %2027 = vrot.lane.b32.xlu0 %v1906, 96
        %v2028 = vpop.permute.xlu0 %2027
        %2029 = vrot.lane.b32.xlu0 %v1911, 96
        %v2030 = vpop.permute.xlu0 %2029
        %2031 = vrot.lane.b32.xlu0 %v1914, 96
        %v2032 = vpop.permute.xlu0 %2031
        %2033 = vrot.lane.b32.xlu0 %v1919, 96
        %v2034 = vpop.permute.xlu0 %2033
        %2035 = vrot.lane.b32.xlu0 %v1922, 96
        %v2036 = vpop.permute.xlu0 %2035
        %2037 = vrot.lane.b32.xlu0 %v1927, 96
        %v2038 = vpop.permute.xlu0 %2037
        %2039 = vrot.lane.b32.xlu0 %v1930, 96
        %v2040 = vpop.permute.xlu0 %2039
        %2041 = vrot.lane.b32.xlu0 %v1935, 96
        %v2042 = vpop.permute.xlu0 %2041
        %2043 = vrot.lane.b32.xlu0 %v1938, 96
        %v2044 = vpop.permute.xlu0 %2043
        %2045 = vrot.lane.b32.xlu0 %v1943, 96
        %v2046 = vpop.permute.xlu0 %2045
        %2047 = vrot.lane.b32.xlu0 %v1946, 96
        %v2048 = vpop.permute.xlu0 %2047
        %2049 = vrot.lane.b32.xlu0 %v1951, 96
        %v2050 = vpop.permute.xlu0 %2049
        %2051 = vrot.lane.b32.xlu0 %v1954, 96
        %v2052 = vpop.permute.xlu0 %2051
        %v2069 = vadd.f32 %v1989, %v2022
        %v2070 = vadd.f32 %v1990, %v2024
        %v2071 = vadd.f32 %v1991, %v2026
        %v2072 = vadd.f32 %v1992, %v2028
        %v2073 = vadd.f32 %v1993, %v2030
        %v2074 = vadd.f32 %v1994, %v2032
        %v2075 = vadd.f32 %v1995, %v2034
        %v2076 = vadd.f32 %v1996, %v2036
        %v2077 = vadd.f32 %v1997, %v2038
        %v2078 = vadd.f32 %v1998, %v2040
        %v2079 = vadd.f32 %v1999, %v2042
        %v2080 = vadd.f32 %v2000, %v2044
        %v2081 = vadd.f32 %v2001, %v2046
        %v2082 = vadd.f32 %v2002, %v2048
        %v2083 = vadd.f32 %v2003, %v2050
        %v2084 = vadd.f32 %v2004, %v2052
        %2085 = vrot.lane.b32.xlu0 %v1895, 64
        %v2086 = vpop.permute.xlu0 %2085
        %2087 = vrot.lane.b32.xlu0 %v1898, 64
        %v2088 = vpop.permute.xlu0 %2087
        %2089 = vrot.lane.b32.xlu0 %v1903, 64
        %v2090 = vpop.permute.xlu0 %2089
        %2091 = vrot.lane.b32.xlu0 %v1906, 64
        %v2092 = vpop.permute.xlu0 %2091
        %2093 = vrot.lane.b32.xlu0 %v1911, 64
        %v2094 = vpop.permute.xlu0 %2093
        %2095 = vrot.lane.b32.xlu0 %v1914, 64
        %v2096 = vpop.permute.xlu0 %2095
        %2097 = vrot.lane.b32.xlu0 %v1919, 64
        %v2098 = vpop.permute.xlu0 %2097
        %2099 = vrot.lane.b32.xlu0 %v1922, 64
        %v2100 = vpop.permute.xlu0 %2099
        %2101 = vrot.lane.b32.xlu0 %v1927, 64
        %v2102 = vpop.permute.xlu0 %2101
        %2103 = vrot.lane.b32.xlu0 %v1930, 64
        %v2104 = vpop.permute.xlu0 %2103
        %2105 = vrot.lane.b32.xlu0 %v1935, 64
        %v2106 = vpop.permute.xlu0 %2105
        %2107 = vrot.lane.b32.xlu0 %v1938, 64
        %v2108 = vpop.permute.xlu0 %2107
        %2109 = vrot.lane.b32.xlu0 %v1943, 64
        %v2110 = vpop.permute.xlu0 %2109
        %2111 = vrot.lane.b32.xlu0 %v1946, 64
        %v2112 = vpop.permute.xlu0 %2111
        %2113 = vrot.lane.b32.xlu0 %v1951, 64
        %v2114 = vpop.permute.xlu0 %2113
        %2115 = vrot.lane.b32.xlu0 %v1954, 64
        %v2116 = vpop.permute.xlu0 %2115
        %v2133 = vrot.slane %v2086, 1
        %v2134 = vrot.slane %v2088, 1
        %v2135 = vrot.slane %v2090, 1
        %v2136 = vrot.slane %v2092, 1
        %v2137 = vrot.slane %v2094, 1
        %v2138 = vrot.slane %v2096, 1
        %v2139 = vrot.slane %v2098, 1
        %v2140 = vrot.slane %v2100, 1
        %v2141 = vrot.slane %v2102, 1
        %v2142 = vrot.slane %v2104, 1
        %v2143 = vrot.slane %v2106, 1
        %v2144 = vrot.slane %v2108, 1
        %v2145 = vrot.slane %v2110, 1
        %v2146 = vrot.slane %v2112, 1
        %v2147 = vrot.slane %v2114, 1
        %v2148 = vrot.slane %v2116, 1
        %v2149 = vsel %vm1092, %v2147, %v2148
        %v2150 = vsel %vm1092, %v2146, %v2147
        %v2151 = vsel %vm1092, %v2145, %v2146
        %v2152 = vsel %vm1092, %v2144, %v2145
        %v2153 = vsel %vm1092, %v2143, %v2144
        %v2154 = vsel %vm1092, %v2142, %v2143
        %v2155 = vsel %vm1092, %v2141, %v2142
        %v2156 = vsel %vm1092, %v2140, %v2141
        %v2157 = vsel %vm1092, %v2139, %v2140
        %v2158 = vsel %vm1092, %v2138, %v2139
        %v2159 = vsel %vm1092, %v2137, %v2138
        %v2160 = vsel %vm1092, %v2136, %v2137
        %v2161 = vsel %vm1092, %v2135, %v2136
        %v2162 = vsel %vm1092, %v2134, %v2135
        %v2163 = vsel %vm1092, %v2133, %v2134
        %v2164 = vsel %vm1092, %v2148, %v2133
        %v2165 = vsel %vm1109, %v2163, 0.0
        %v2166 = vsel %vm1110, %v2162, 0.0
        %v2167 = vsel %vm1109, %v2161, 0.0
        %v2168 = vsel %vm1110, %v2160, 0.0
        %v2169 = vsel %vm1109, %v2159, 0.0
        %v2170 = vsel %vm1110, %v2158, 0.0
        %v2171 = vsel %vm1109, %v2157, 0.0
        %v2172 = vsel %vm1110, %v2156, 0.0
        %v2173 = vsel %vm1109, %v2155, 0.0
        %v2174 = vsel %vm1110, %v2154, 0.0
        %v2175 = vsel %vm1109, %v2153, 0.0
        %v2176 = vsel %vm1110, %v2152, 0.0
        %v2177 = vsel %vm1109, %v2151, 0.0
        %v2178 = vsel %vm1110, %v2150, 0.0
        %v2179 = vsel %vm1109, %v2149, 0.0
        %v2180 = vsel %vm1110, %v2164, 0.0
        %v2181 = vadd.f32 %v2069, %v2165
        %v2182 = vadd.f32 %v2070, %v2166
        %v2183 = vadd.f32 %v2071, %v2167
        %v2184 = vadd.f32 %v2072, %v2168
        %v2185 = vadd.f32 %v2073, %v2169
        %v2186 = vadd.f32 %v2074, %v2170
        %v2187 = vadd.f32 %v2075, %v2171
        %v2188 = vadd.f32 %v2076, %v2172
        %v2189 = vadd.f32 %v2077, %v2173
        %v2190 = vadd.f32 %v2078, %v2174
        %v2191 = vadd.f32 %v2079, %v2175
        %v2192 = vadd.f32 %v2080, %v2176
        %v2193 = vadd.f32 %v2081, %v2177
        %v2194 = vadd.f32 %v2082, %v2178
        %v2195 = vadd.f32 %v2083, %v2179
        %v2196 = vadd.f32 %v2084, %v2180
        %v2197 = vld [vmem:[%s6] sm:$0x1]
        %v2199 = vlaneseq
        %v2200 = vshrl.u32 %v2199, 7
        %v2201 = vsub.s32 0, %v2200
        %v2202 = vrot.slane %v2197, %v2201
        %v2204 = vadd.f32 %v2181, %v2202
        %v2205 = vadd.f32 %v2182, %v2202
        %v2206 = vadd.f32 %v2183, %v2202
        %v2207 = vadd.f32 %v2184, %v2202
        %v2208 = vadd.f32 %v2185, %v2202
        %v2209 = vadd.f32 %v2186, %v2202
        %v2210 = vadd.f32 %v2187, %v2202
        %v2211 = vadd.f32 %v2188, %v2202
        %v2212 = vadd.f32 %v2189, %v2202
        %v2213 = vadd.f32 %v2190, %v2202
        %v2214 = vadd.f32 %v2191, %v2202
        %v2215 = vadd.f32 %v2192, %v2202
        %v2216 = vadd.f32 %v2193, %v2202
        %v2217 = vadd.f32 %v2194, %v2202
        %v2218 = vadd.f32 %v2195, %v2202
        %v2219 = vadd.f32 %v2196, %v2202
        %v2220 = vmul.f32 %v2204, %v1169
        %v2221 = vmul.f32 %v2205, %v1174
        %v2222 = vmul.f32 %v2206, %v1179
        %v2223 = vmul.f32 %v2207, %v1184
        %v2224 = vmul.f32 %v2208, %v1189
        %v2225 = vmul.f32 %v2209, %v1194
        %v2226 = vmul.f32 %v2210, %v1199
        %v2227 = vmul.f32 %v2211, %v1204
        %v2228 = vmul.f32 %v2212, %v1209
        %v2229 = vmul.f32 %v2213, %v1214
        %v2230 = vmul.f32 %v2214, %v1219
        %v2231 = vmul.f32 %v2215, %v1224
        %v2232 = vmul.f32 %v2216, %v1229
        %v2233 = vmul.f32 %v2217, %v1234
        %v2234 = vmul.f32 %v2218, %v1239
        %v2235 = vmul.f32 %v2219, %v1244
        %v2236 = vmax.f32 %v2220, 0.0
        %v2237 = vmax.f32 %v2221, 0.0
        %v2238 = vmax.f32 %v2222, 0.0
        %v2239 = vmax.f32 %v2223, 0.0
        %v2240 = vmax.f32 %v2224, 0.0
        %v2241 = vmax.f32 %v2225, 0.0
        %v2242 = vmax.f32 %v2226, 0.0
        %v2243 = vmax.f32 %v2227, 0.0
        %v2244 = vmax.f32 %v2228, 0.0
        %v2245 = vmax.f32 %v2229, 0.0
        %v2246 = vmax.f32 %v2230, 0.0
        %v2247 = vmax.f32 %v2231, 0.0
        %v2248 = vmax.f32 %v2232, 0.0
        %v2249 = vmax.f32 %v2233, 0.0
        %v2250 = vmax.f32 %v2234, 0.0
        %v2251 = vmax.f32 %v2235, 0.0
        %v2252 = vpack.c.bf16 %v2237, %v2236
        %v2253 = vpack.c.bf16 %v2239, %v2238
        %v2254 = vpack.c.bf16 %v2241, %v2240
        %v2255 = vpack.c.bf16 %v2243, %v2242
        %v2256 = vpack.c.bf16 %v2245, %v2244
        %v2257 = vpack.c.bf16 %v2247, %v2246
        %v2258 = vpack.c.bf16 %v2249, %v2248
        %v2259 = vpack.c.bf16 %v2251, %v2250
        %v2260 = vld [vmem:[%s7] sm:$0xff]
        %v2261 = vld [vmem:[%s7 + $0x8] sm:$0xff]
        %v2262 = vld [vmem:[%s7 + $0x10] sm:$0xff]
        %v2263 = vld [vmem:[%s7 + $0x18] sm:$0xff]
        %v2268 = vunpack.c.l.b16 %v2260
        %v2269 = vunpack.c.h.b16 %v2260
        %v2270 = vunpack.c.l.b16 %v2261
        %v2271 = vunpack.c.h.b16 %v2261
        %v2272 = vunpack.c.l.b16 %v2262
        %v2273 = vunpack.c.h.b16 %v2262
        %v2274 = vunpack.c.l.b16 %v2263
        %v2275 = vunpack.c.h.b16 %v2263
        %v2276 = vpack.c.b16 %v2270, %v2268
        %v2277 = vpack.c.b16 %v2271, %v2269
        %v2278 = vpack.c.b16 %v2274, %v2272
        %v2279 = vpack.c.b16 %v2275, %v2273
        %v2285 = vsel %vm1835, %v1811, 0
        %v2288 = vsel %vm1835, %v1812, 0
        %v2291 = vsel %vm1835, %v1813, 0
        %v2294 = vsel %vm1835, %v1814, 0
        %v2297 = vsel %vm1835, %v1815, 0
        %v2300 = vsel %vm1835, %v1816, 0
        %v2303 = vsel %vm1835, %v1817, 0
        %v2306 = vsel %vm1835, %v1818, 0
        %2308 = vmatprep.subr.bf16.mxu0 0
        %2309 = vmatpush1.bf16.msra.mxu0 0
        %2310 = vmatprep.subr.bf16.mxu0 0
        %2311 = vmatpush1.bf16.msra.mxu0 0
        %2312 = vmatprep.subr.bf16.mxu0 0
        %2313 = vmatpush1.bf16.msra.mxu0 0
        %2314 = vmatprep.subr.bf16.mxu0 0
        %2315 = vmatpush1.bf16.msra.mxu0 0
        %2316 = vmatprep.subr.bf16.mxu0 0
        %2317 = vmatpush1.bf16.msra.mxu0 0
        %2318 = vmatprep.subr.bf16.mxu0 0
        %2319 = vmatpush1.bf16.msra.mxu0 0
        %2320 = vmatprep.subr.bf16.mxu0 %v2279
        %2321 = vmatpush1.bf16.msra.mxu0 %v2278
        %2322 = vmatprep.subr.bf16.mxu0 %v2277
        %2323 = vmatpush1.bf16.msra.mxu0 %v2276
        %2324 = vmatprep.subr.bf16.mxu0 0
        %2325 = vmatpush2.bf16.msra.mxu0 0
        %2326 = vmatprep.subr.bf16.mxu0 0
        %2327 = vmatpush2.bf16.msra.mxu0 0
        %2328 = vmatprep.subr.bf16.mxu0 0
        %2329 = vmatpush2.bf16.msra.mxu0 0
        %2330 = vmatprep.subr.bf16.mxu0 0
        %2331 = vmatpush2.bf16.msra.mxu0 0
        %2332 = vmatprep.subr.bf16.mxu0 0
        %2333 = vmatpush2.bf16.msra.mxu0 0
        %2334 = vmatprep.subr.bf16.mxu0 0
        %2335 = vmatpush2.bf16.msra.mxu0 0
        %2336 = vmatprep.subr.bf16.mxu0 0
        %2337 = vmatpush2.bf16.msra.mxu0 0
        %2338 = vmatprep.subr.bf16.mxu0 0
        %2339 = vmatpush2.bf16.msra.mxu0 0
        %2340 = vmatprep.mubr.bf16.mxu0 0
        %2341 = vmatmul.mubr.bf16.gmra.mxu0 %v2285
        %v2342 = vpop.f32.mrf.mxu0
        %v2343 = vadd.f32 0.0, %v2342
        %v2344 = vpop.f32.mrf.mxu0
        %v2345 = vadd.f32 0.0, %v2344
        %v2346 = vpop.f32.mrf.mxu0
        %v2347 = vadd.f32 0.0, %v2346
        %v2348 = vpop.f32.mrf.mxu0
        %v2349 = vadd.f32 0.0, %v2348
        %2350 = vmatprep.mubr.bf16.mxu0 0
        %2351 = vmatmul.mubr.bf16.gmra.mxu0 %v2288
        %v2352 = vpop.f32.mrf.mxu0
        %v2353 = vadd.f32 0.0, %v2352
        %v2354 = vpop.f32.mrf.mxu0
        %v2355 = vadd.f32 0.0, %v2354
        %v2356 = vpop.f32.mrf.mxu0
        %v2357 = vadd.f32 0.0, %v2356
        %v2358 = vpop.f32.mrf.mxu0
        %v2359 = vadd.f32 0.0, %v2358
        %2360 = vmatprep.mubr.bf16.mxu0 0
        %2361 = vmatmul.mubr.bf16.gmra.mxu0 %v2291
        %v2362 = vpop.f32.mrf.mxu0
        %v2363 = vadd.f32 0.0, %v2362
        %v2364 = vpop.f32.mrf.mxu0
        %v2365 = vadd.f32 0.0, %v2364
        %v2366 = vpop.f32.mrf.mxu0
        %v2367 = vadd.f32 0.0, %v2366
        %v2368 = vpop.f32.mrf.mxu0
        %v2369 = vadd.f32 0.0, %v2368
        %2370 = vmatprep.mubr.bf16.mxu0 0
        %2371 = vmatmul.mubr.bf16.gmra.mxu0 %v2294
        %v2372 = vpop.f32.mrf.mxu0
        %v2373 = vadd.f32 0.0, %v2372
        %v2374 = vpop.f32.mrf.mxu0
        %v2375 = vadd.f32 0.0, %v2374
        %v2376 = vpop.f32.mrf.mxu0
        %v2377 = vadd.f32 0.0, %v2376
        %v2378 = vpop.f32.mrf.mxu0
        %v2379 = vadd.f32 0.0, %v2378
        %2380 = vmatprep.mubr.bf16.mxu0 0
        %2381 = vmatmul.mubr.bf16.gmra.mxu0 %v2297
        %v2382 = vpop.f32.mrf.mxu0
        %v2383 = vadd.f32 0.0, %v2382
        %v2384 = vpop.f32.mrf.mxu0
        %v2385 = vadd.f32 0.0, %v2384
        %v2386 = vpop.f32.mrf.mxu0
        %v2387 = vadd.f32 0.0, %v2386
        %v2388 = vpop.f32.mrf.mxu0
        %v2389 = vadd.f32 0.0, %v2388
        %2390 = vmatprep.mubr.bf16.mxu0 0
        %2391 = vmatmul.mubr.bf16.gmra.mxu0 %v2300
        %v2392 = vpop.f32.mrf.mxu0
        %v2393 = vadd.f32 0.0, %v2392
        %v2394 = vpop.f32.mrf.mxu0
        %v2395 = vadd.f32 0.0, %v2394
        %v2396 = vpop.f32.mrf.mxu0
        %v2397 = vadd.f32 0.0, %v2396
        %v2398 = vpop.f32.mrf.mxu0
        %v2399 = vadd.f32 0.0, %v2398
        %2400 = vmatprep.mubr.bf16.mxu0 0
        %2401 = vmatmul.mubr.bf16.gmra.mxu0 %v2303
        %v2402 = vpop.f32.mrf.mxu0
        %v2403 = vadd.f32 0.0, %v2402
        %v2404 = vpop.f32.mrf.mxu0
        %v2405 = vadd.f32 0.0, %v2404
        %v2406 = vpop.f32.mrf.mxu0
        %v2407 = vadd.f32 0.0, %v2406
        %v2408 = vpop.f32.mrf.mxu0
        %v2409 = vadd.f32 0.0, %v2408
        %2410 = vmatprep.mubr.bf16.mxu0 0
        %2411 = vmatmul.mubr.bf16.gmra.mxu0 %v2306
        %v2412 = vpop.f32.mrf.mxu0
        %v2413 = vadd.f32 0.0, %v2412
        %v2414 = vpop.f32.mrf.mxu0
        %v2415 = vadd.f32 0.0, %v2414
        %v2416 = vpop.f32.mrf.mxu0
        %v2417 = vadd.f32 0.0, %v2416
        %v2418 = vpop.f32.mrf.mxu0
        %v2419 = vadd.f32 0.0, %v2418
        %2420 = vdwg.mxu0
        %v2421 = vrot.slane %v2343, 6
        %v2422 = vrot.slane %v2347, 6
        %v2423 = vrot.slane %v2353, 6
        %v2424 = vrot.slane %v2357, 6
        %v2425 = vrot.slane %v2363, 6
        %v2426 = vrot.slane %v2367, 6
        %v2427 = vrot.slane %v2373, 6
        %v2428 = vrot.slane %v2377, 6
        %v2429 = vrot.slane %v2383, 6
        %v2430 = vrot.slane %v2387, 6
        %v2431 = vrot.slane %v2393, 6
        %v2432 = vrot.slane %v2397, 6
        %v2433 = vrot.slane %v2403, 6
        %v2434 = vrot.slane %v2407, 6
        %v2435 = vrot.slane %v2413, 6
        %v2436 = vrot.slane %v2417, 6
        %v2437 = vsel %vm1350, %v2435, %v2436
        %v2438 = vsel %vm1350, %v2434, %v2435
        %v2439 = vsel %vm1350, %v2433, %v2434
        %v2440 = vsel %vm1350, %v2432, %v2433
        %v2441 = vsel %vm1350, %v2431, %v2432
        %v2442 = vsel %vm1350, %v2430, %v2431
        %v2443 = vsel %vm1350, %v2429, %v2430
        %v2444 = vsel %vm1350, %v2428, %v2429
        %v2445 = vsel %vm1350, %v2427, %v2428
        %v2446 = vsel %vm1350, %v2426, %v2427
        %v2447 = vsel %vm1350, %v2425, %v2426
        %v2448 = vsel %vm1350, %v2424, %v2425
        %v2449 = vsel %vm1350, %v2423, %v2424
        %v2450 = vsel %vm1350, %v2422, %v2423
        %v2451 = vsel %vm1350, %v2421, %v2422
        %v2452 = vsel %vm1350, %v2436, %v2421
        %v2453 = vsel %vm1367, %v2452, 0.0
        %v2454 = vsel %vm1368, %v2451, 0.0
        %v2455 = vsel %vm1367, %v2450, 0.0
        %v2456 = vsel %vm1368, %v2449, 0.0
        %v2457 = vsel %vm1367, %v2448, 0.0
        %v2458 = vsel %vm1368, %v2447, 0.0
        %v2459 = vsel %vm1367, %v2446, 0.0
        %v2460 = vsel %vm1368, %v2445, 0.0
        %v2461 = vsel %vm1367, %v2444, 0.0
        %v2462 = vsel %vm1368, %v2443, 0.0
        %v2463 = vsel %vm1367, %v2442, 0.0
        %v2464 = vsel %vm1368, %v2441, 0.0
        %v2465 = vsel %vm1367, %v2440, 0.0
        %v2466 = vsel %vm1368, %v2439, 0.0
        %v2467 = vsel %vm1367, %v2438, 0.0
        %v2468 = vsel %vm1368, %v2437, 0.0
        %2485 = vrot.lane.b32.xlu0 %v2343, 96
        %v2486 = vpop.permute.xlu0 %2485
        %2487 = vrot.lane.b32.xlu0 %v2347, 96
        %v2488 = vpop.permute.xlu0 %2487
        %2489 = vrot.lane.b32.xlu0 %v2353, 96
        %v2490 = vpop.permute.xlu0 %2489
        %2491 = vrot.lane.b32.xlu0 %v2357, 96
        %v2492 = vpop.permute.xlu0 %2491
        %2493 = vrot.lane.b32.xlu0 %v2363, 96
        %v2494 = vpop.permute.xlu0 %2493
        %2495 = vrot.lane.b32.xlu0 %v2367, 96
        %v2496 = vpop.permute.xlu0 %2495
        %2497 = vrot.lane.b32.xlu0 %v2373, 96
        %v2498 = vpop.permute.xlu0 %2497
        %2499 = vrot.lane.b32.xlu0 %v2377, 96
        %v2500 = vpop.permute.xlu0 %2499
        %2501 = vrot.lane.b32.xlu0 %v2383, 96
        %v2502 = vpop.permute.xlu0 %2501
        %2503 = vrot.lane.b32.xlu0 %v2387, 96
        %v2504 = vpop.permute.xlu0 %2503
        %2505 = vrot.lane.b32.xlu0 %v2393, 96
        %v2506 = vpop.permute.xlu0 %2505
        %2507 = vrot.lane.b32.xlu0 %v2397, 96
        %v2508 = vpop.permute.xlu0 %2507
        %2509 = vrot.lane.b32.xlu0 %v2403, 96
        %v2510 = vpop.permute.xlu0 %2509
        %2511 = vrot.lane.b32.xlu0 %v2407, 96
        %v2512 = vpop.permute.xlu0 %2511
        %2513 = vrot.lane.b32.xlu0 %v2413, 96
        %v2514 = vpop.permute.xlu0 %2513
        %2515 = vrot.lane.b32.xlu0 %v2417, 96
        %v2516 = vpop.permute.xlu0 %2515
        %v2533 = vrot.slane %v2486, 7
        %v2534 = vrot.slane %v2488, 7
        %v2535 = vrot.slane %v2490, 7
        %v2536 = vrot.slane %v2492, 7
        %v2537 = vrot.slane %v2494, 7
        %v2538 = vrot.slane %v2496, 7
        %v2539 = vrot.slane %v2498, 7
        %v2540 = vrot.slane %v2500, 7
        %v2541 = vrot.slane %v2502, 7
        %v2542 = vrot.slane %v2504, 7
        %v2543 = vrot.slane %v2506, 7
        %v2544 = vrot.slane %v2508, 7
        %v2545 = vrot.slane %v2510, 7
        %v2546 = vrot.slane %v2512, 7
        %v2547 = vrot.slane %v2514, 7
        %v2548 = vrot.slane %v2516, 7
        %v2549 = vsel %vm912, %v2547, %v2548
        %v2550 = vsel %vm912, %v2546, %v2547
        %v2551 = vsel %vm912, %v2545, %v2546
        %v2552 = vsel %vm912, %v2544, %v2545
        %v2553 = vsel %vm912, %v2543, %v2544
        %v2554 = vsel %vm912, %v2542, %v2543
        %v2555 = vsel %vm912, %v2541, %v2542
        %v2556 = vsel %vm912, %v2540, %v2541
        %v2557 = vsel %vm912, %v2539, %v2540
        %v2558 = vsel %vm912, %v2538, %v2539
        %v2559 = vsel %vm912, %v2537, %v2538
        %v2560 = vsel %vm912, %v2536, %v2537
        %v2561 = vsel %vm912, %v2535, %v2536
        %v2562 = vsel %vm912, %v2534, %v2535
        %v2563 = vsel %vm912, %v2533, %v2534
        %v2564 = vsel %vm912, %v2548, %v2533
        %v2565 = vsel %vm930, %v2564, 0.0
        %v2566 = vsel %vm931, %v2563, 0.0
        %v2567 = vsel %vm930, %v2562, 0.0
        %v2568 = vsel %vm931, %v2561, 0.0
        %v2569 = vsel %vm930, %v2560, 0.0
        %v2570 = vsel %vm931, %v2559, 0.0
        %v2571 = vsel %vm930, %v2558, 0.0
        %v2572 = vsel %vm931, %v2557, 0.0
        %v2573 = vsel %vm930, %v2556, 0.0
        %v2574 = vsel %vm931, %v2555, 0.0
        %v2575 = vsel %vm930, %v2554, 0.0
        %v2576 = vsel %vm931, %v2553, 0.0
        %v2577 = vsel %vm930, %v2552, 0.0
        %v2578 = vsel %vm931, %v2551, 0.0
        %v2579 = vsel %vm930, %v2550, 0.0
        %v2580 = vsel %vm931, %v2549, 0.0
        %v2581 = vadd.f32 %v2453, %v2565
        %v2582 = vadd.f32 %v2454, %v2566
        %v2583 = vadd.f32 %v2455, %v2567
        %v2584 = vadd.f32 %v2456, %v2568
        %v2585 = vadd.f32 %v2457, %v2569
        %v2586 = vadd.f32 %v2458, %v2570
        %v2587 = vadd.f32 %v2459, %v2571
        %v2588 = vadd.f32 %v2460, %v2572
        %v2589 = vadd.f32 %v2461, %v2573
        %v2590 = vadd.f32 %v2462, %v2574
        %v2591 = vadd.f32 %v2463, %v2575
        %v2592 = vadd.f32 %v2464, %v2576
        %v2593 = vadd.f32 %v2465, %v2577
        %v2594 = vadd.f32 %v2466, %v2578
        %v2595 = vadd.f32 %v2467, %v2579
        %v2596 = vadd.f32 %v2468, %v2580
        %2597 = vrot.lane.b32.xlu0 %v2343, 64
        %v2598 = vpop.permute.xlu0 %2597
        %2599 = vrot.lane.b32.xlu0 %v2347, 64
        %v2600 = vpop.permute.xlu0 %2599
        %2601 = vrot.lane.b32.xlu0 %v2353, 64
        %v2602 = vpop.permute.xlu0 %2601
        %2603 = vrot.lane.b32.xlu0 %v2357, 64
        %v2604 = vpop.permute.xlu0 %2603
        %2605 = vrot.lane.b32.xlu0 %v2363, 64
        %v2606 = vpop.permute.xlu0 %2605
        %2607 = vrot.lane.b32.xlu0 %v2367, 64
        %v2608 = vpop.permute.xlu0 %2607
        %2609 = vrot.lane.b32.xlu0 %v2373, 64
        %v2610 = vpop.permute.xlu0 %2609
        %2611 = vrot.lane.b32.xlu0 %v2377, 64
        %v2612 = vpop.permute.xlu0 %2611
        %2613 = vrot.lane.b32.xlu0 %v2383, 64
        %v2614 = vpop.permute.xlu0 %2613
        %2615 = vrot.lane.b32.xlu0 %v2387, 64
        %v2616 = vpop.permute.xlu0 %2615
        %2617 = vrot.lane.b32.xlu0 %v2393, 64
        %v2618 = vpop.permute.xlu0 %2617
        %2619 = vrot.lane.b32.xlu0 %v2397, 64
        %v2620 = vpop.permute.xlu0 %2619
        %2621 = vrot.lane.b32.xlu0 %v2403, 64
        %v2622 = vpop.permute.xlu0 %2621
        %2623 = vrot.lane.b32.xlu0 %v2407, 64
        %v2624 = vpop.permute.xlu0 %2623
        %2625 = vrot.lane.b32.xlu0 %v2413, 64
        %v2626 = vpop.permute.xlu0 %2625
        %2627 = vrot.lane.b32.xlu0 %v2417, 64
        %v2628 = vpop.permute.xlu0 %2627
        %v2645 = vadd.f32 %v2581, %v2598
        %v2646 = vadd.f32 %v2582, %v2600
        %v2647 = vadd.f32 %v2583, %v2602
        %v2648 = vadd.f32 %v2584, %v2604
        %v2649 = vadd.f32 %v2585, %v2606
        %v2650 = vadd.f32 %v2586, %v2608
        %v2651 = vadd.f32 %v2587, %v2610
        %v2652 = vadd.f32 %v2588, %v2612
        %v2653 = vadd.f32 %v2589, %v2614
        %v2654 = vadd.f32 %v2590, %v2616
        %v2655 = vadd.f32 %v2591, %v2618
        %v2656 = vadd.f32 %v2592, %v2620
        %v2657 = vadd.f32 %v2593, %v2622
        %v2658 = vadd.f32 %v2594, %v2624
        %v2659 = vadd.f32 %v2595, %v2626
        %v2660 = vadd.f32 %v2596, %v2628
        %2661 = vrot.lane.b32.xlu0 %v2343, 32
        %v2662 = vpop.permute.xlu0 %2661
        %2663 = vrot.lane.b32.xlu0 %v2347, 32
        %v2664 = vpop.permute.xlu0 %2663
        %2665 = vrot.lane.b32.xlu0 %v2353, 32
        %v2666 = vpop.permute.xlu0 %2665
        %2667 = vrot.lane.b32.xlu0 %v2357, 32
        %v2668 = vpop.permute.xlu0 %2667
        %2669 = vrot.lane.b32.xlu0 %v2363, 32
        %v2670 = vpop.permute.xlu0 %2669
        %2671 = vrot.lane.b32.xlu0 %v2367, 32
        %v2672 = vpop.permute.xlu0 %2671
        %2673 = vrot.lane.b32.xlu0 %v2373, 32
        %v2674 = vpop.permute.xlu0 %2673
        %2675 = vrot.lane.b32.xlu0 %v2377, 32
        %v2676 = vpop.permute.xlu0 %2675
        %2677 = vrot.lane.b32.xlu0 %v2383, 32
        %v2678 = vpop.permute.xlu0 %2677
        %2679 = vrot.lane.b32.xlu0 %v2387, 32
        %v2680 = vpop.permute.xlu0 %2679
        %2681 = vrot.lane.b32.xlu0 %v2393, 32
        %v2682 = vpop.permute.xlu0 %2681
        %2683 = vrot.lane.b32.xlu0 %v2397, 32
        %v2684 = vpop.permute.xlu0 %2683
        %2685 = vrot.lane.b32.xlu0 %v2403, 32
        %v2686 = vpop.permute.xlu0 %2685
        %2687 = vrot.lane.b32.xlu0 %v2407, 32
        %v2688 = vpop.permute.xlu0 %2687
        %2689 = vrot.lane.b32.xlu0 %v2413, 32
        %v2690 = vpop.permute.xlu0 %2689
        %2691 = vrot.lane.b32.xlu0 %v2417, 32
        %v2692 = vpop.permute.xlu0 %2691
        %v2709 = vrot.slane %v2662, 1
        %v2710 = vrot.slane %v2664, 1
        %v2711 = vrot.slane %v2666, 1
        %v2712 = vrot.slane %v2668, 1
        %v2713 = vrot.slane %v2670, 1
        %v2714 = vrot.slane %v2672, 1
        %v2715 = vrot.slane %v2674, 1
        %v2716 = vrot.slane %v2676, 1
        %v2717 = vrot.slane %v2678, 1
        %v2718 = vrot.slane %v2680, 1
        %v2719 = vrot.slane %v2682, 1
        %v2720 = vrot.slane %v2684, 1
        %v2721 = vrot.slane %v2686, 1
        %v2722 = vrot.slane %v2688, 1
        %v2723 = vrot.slane %v2690, 1
        %v2724 = vrot.slane %v2692, 1
        %v2725 = vsel %vm1092, %v2723, %v2724
        %v2726 = vsel %vm1092, %v2722, %v2723
        %v2727 = vsel %vm1092, %v2721, %v2722
        %v2728 = vsel %vm1092, %v2720, %v2721
        %v2729 = vsel %vm1092, %v2719, %v2720
        %v2730 = vsel %vm1092, %v2718, %v2719
        %v2731 = vsel %vm1092, %v2717, %v2718
        %v2732 = vsel %vm1092, %v2716, %v2717
        %v2733 = vsel %vm1092, %v2715, %v2716
        %v2734 = vsel %vm1092, %v2714, %v2715
        %v2735 = vsel %vm1092, %v2713, %v2714
        %v2736 = vsel %vm1092, %v2712, %v2713
        %v2737 = vsel %vm1092, %v2711, %v2712
        %v2738 = vsel %vm1092, %v2710, %v2711
        %v2739 = vsel %vm1092, %v2709, %v2710
        %v2740 = vsel %vm1092, %v2724, %v2709
        %v2741 = vsel %vm1109, %v2739, 0.0
        %v2742 = vsel %vm1110, %v2738, 0.0
        %v2743 = vsel %vm1109, %v2737, 0.0
        %v2744 = vsel %vm1110, %v2736, 0.0
        %v2745 = vsel %vm1109, %v2735, 0.0
        %v2746 = vsel %vm1110, %v2734, 0.0
        %v2747 = vsel %vm1109, %v2733, 0.0
        %v2748 = vsel %vm1110, %v2732, 0.0
        %v2749 = vsel %vm1109, %v2731, 0.0
        %v2750 = vsel %vm1110, %v2730, 0.0
        %v2751 = vsel %vm1109, %v2729, 0.0
        %v2752 = vsel %vm1110, %v2728, 0.0
        %v2753 = vsel %vm1109, %v2727, 0.0
        %v2754 = vsel %vm1110, %v2726, 0.0
        %v2755 = vsel %vm1109, %v2725, 0.0
        %v2756 = vsel %vm1110, %v2740, 0.0
        %v2757 = vadd.f32 %v2645, %v2741
        %v2758 = vadd.f32 %v2646, %v2742
        %v2759 = vadd.f32 %v2647, %v2743
        %v2760 = vadd.f32 %v2648, %v2744
        %v2761 = vadd.f32 %v2649, %v2745
        %v2762 = vadd.f32 %v2650, %v2746
        %v2763 = vadd.f32 %v2651, %v2747
        %v2764 = vadd.f32 %v2652, %v2748
        %v2765 = vadd.f32 %v2653, %v2749
        %v2766 = vadd.f32 %v2654, %v2750
        %v2767 = vadd.f32 %v2655, %v2751
        %v2768 = vadd.f32 %v2656, %v2752
        %v2769 = vadd.f32 %v2657, %v2753
        %v2770 = vadd.f32 %v2658, %v2754
        %v2771 = vadd.f32 %v2659, %v2755
        %v2772 = vadd.f32 %v2660, %v2756
        %v2773 = vrot.slane %v2345, 2
        %v2774 = vrot.slane %v2349, 2
        %v2775 = vrot.slane %v2355, 2
        %v2776 = vrot.slane %v2359, 2
        %v2777 = vrot.slane %v2365, 2
        %v2778 = vrot.slane %v2369, 2
        %v2779 = vrot.slane %v2375, 2
        %v2780 = vrot.slane %v2379, 2
        %v2781 = vrot.slane %v2385, 2
        %v2782 = vrot.slane %v2389, 2
        %v2783 = vrot.slane %v2395, 2
        %v2784 = vrot.slane %v2399, 2
        %v2785 = vrot.slane %v2405, 2
        %v2786 = vrot.slane %v2409, 2
        %v2787 = vrot.slane %v2415, 2
        %v2788 = vrot.slane %v2419, 2
        %v2789 = vsel %vm1705, %v2787, %v2788
        %v2790 = vsel %vm1705, %v2786, %v2787
        %v2791 = vsel %vm1705, %v2785, %v2786
        %v2792 = vsel %vm1705, %v2784, %v2785
        %v2793 = vsel %vm1705, %v2783, %v2784
        %v2794 = vsel %vm1705, %v2782, %v2783
        %v2795 = vsel %vm1705, %v2781, %v2782
        %v2796 = vsel %vm1705, %v2780, %v2781
        %v2797 = vsel %vm1705, %v2779, %v2780
        %v2798 = vsel %vm1705, %v2778, %v2779
        %v2799 = vsel %vm1705, %v2777, %v2778
        %v2800 = vsel %vm1705, %v2776, %v2777
        %v2801 = vsel %vm1705, %v2775, %v2776
        %v2802 = vsel %vm1705, %v2774, %v2775
        %v2803 = vsel %vm1705, %v2773, %v2774
        %v2804 = vsel %vm1705, %v2788, %v2773
        %v2805 = vsel %vm1722, %v2803, 0.0
        %v2806 = vsel %vm1723, %v2802, 0.0
        %v2807 = vsel %vm1722, %v2801, 0.0
        %v2808 = vsel %vm1723, %v2800, 0.0
        %v2809 = vsel %vm1722, %v2799, 0.0
        %v2810 = vsel %vm1723, %v2798, 0.0
        %v2811 = vsel %vm1722, %v2797, 0.0
        %v2812 = vsel %vm1723, %v2796, 0.0
        %v2813 = vsel %vm1722, %v2795, 0.0
        %v2814 = vsel %vm1723, %v2794, 0.0
        %v2815 = vsel %vm1722, %v2793, 0.0
        %v2816 = vsel %vm1723, %v2792, 0.0
        %v2817 = vsel %vm1722, %v2791, 0.0
        %v2818 = vsel %vm1723, %v2790, 0.0
        %v2819 = vsel %vm1722, %v2789, 0.0
        %v2820 = vsel %vm1723, %v2804, 0.0
        %v2821 = vadd.f32 %v2757, %v2805
        %v2822 = vadd.f32 %v2758, %v2806
        %v2823 = vadd.f32 %v2759, %v2807
        %v2824 = vadd.f32 %v2760, %v2808
        %v2825 = vadd.f32 %v2761, %v2809
        %v2826 = vadd.f32 %v2762, %v2810
        %v2827 = vadd.f32 %v2763, %v2811
        %v2828 = vadd.f32 %v2764, %v2812
        %v2829 = vadd.f32 %v2765, %v2813
        %v2830 = vadd.f32 %v2766, %v2814
        %v2831 = vadd.f32 %v2767, %v2815
        %v2832 = vadd.f32 %v2768, %v2816
        %v2833 = vadd.f32 %v2769, %v2817
        %v2834 = vadd.f32 %v2770, %v2818
        %v2835 = vadd.f32 %v2771, %v2819
        %v2836 = vadd.f32 %v2772, %v2820
        %v2837 = vld [vmem:[%s8] sm:$0x1]
        %v2839 = vlaneseq
        %v2840 = vshrl.u32 %v2839, 7
        %v2841 = vsub.s32 0, %v2840
        %v2842 = vrot.slane %v2837, %v2841
        %v2844 = vadd.f32 %v2821, %v2842
        %v2845 = vadd.f32 %v2822, %v2842
        %v2846 = vadd.f32 %v2823, %v2842
        %v2847 = vadd.f32 %v2824, %v2842
        %v2848 = vadd.f32 %v2825, %v2842
        %v2849 = vadd.f32 %v2826, %v2842
        %v2850 = vadd.f32 %v2827, %v2842
        %v2851 = vadd.f32 %v2828, %v2842
        %v2852 = vadd.f32 %v2829, %v2842
        %v2853 = vadd.f32 %v2830, %v2842
        %v2854 = vadd.f32 %v2831, %v2842
        %v2855 = vadd.f32 %v2832, %v2842
        %v2856 = vadd.f32 %v2833, %v2842
        %v2857 = vadd.f32 %v2834, %v2842
        %v2858 = vadd.f32 %v2835, %v2842
        %v2859 = vadd.f32 %v2836, %v2842
        %v2860 = vmul.f32 %v2844, %v1169
        %v2861 = vmul.f32 %v2845, %v1174
        %v2862 = vmul.f32 %v2846, %v1179
        %v2863 = vmul.f32 %v2847, %v1184
        %v2864 = vmul.f32 %v2848, %v1189
        %v2865 = vmul.f32 %v2849, %v1194
        %v2866 = vmul.f32 %v2850, %v1199
        %v2867 = vmul.f32 %v2851, %v1204
        %v2868 = vmul.f32 %v2852, %v1209
        %v2869 = vmul.f32 %v2853, %v1214
        %v2870 = vmul.f32 %v2854, %v1219
        %v2871 = vmul.f32 %v2855, %v1224
        %v2872 = vmul.f32 %v2856, %v1229
        %v2873 = vmul.f32 %v2857, %v1234
        %v2874 = vmul.f32 %v2858, %v1239
        %v2875 = vmul.f32 %v2859, %v1244
        %v2876 = vmax.f32 %v2860, 0.0
        %v2877 = vmax.f32 %v2861, 0.0
        %v2878 = vmax.f32 %v2862, 0.0
        %v2879 = vmax.f32 %v2863, 0.0
        %v2880 = vmax.f32 %v2864, 0.0
        %v2881 = vmax.f32 %v2865, 0.0
        %v2882 = vmax.f32 %v2866, 0.0
        %v2883 = vmax.f32 %v2867, 0.0
        %v2884 = vmax.f32 %v2868, 0.0
        %v2885 = vmax.f32 %v2869, 0.0
        %v2886 = vmax.f32 %v2870, 0.0
        %v2887 = vmax.f32 %v2871, 0.0
        %v2888 = vmax.f32 %v2872, 0.0
        %v2889 = vmax.f32 %v2873, 0.0
        %v2890 = vmax.f32 %v2874, 0.0
        %v2891 = vmax.f32 %v2875, 0.0
        %v2892 = vpack.c.bf16 %v2877, %v2876
        %v2893 = vpack.c.bf16 %v2879, %v2878
        %v2894 = vpack.c.bf16 %v2881, %v2880
        %v2895 = vpack.c.bf16 %v2883, %v2882
        %v2896 = vpack.c.bf16 %v2885, %v2884
        %v2897 = vpack.c.bf16 %v2887, %v2886
        %v2898 = vpack.c.bf16 %v2889, %v2888
        %v2899 = vpack.c.bf16 %v2891, %v2890
        %v2900 = vld [vmem:[%s9] sm:$0xf]
        %v2901 = vld [vmem:[%s9 + $0x4] sm:$0xf]
        %v2902 = vld [vmem:[%s9 + $0x8] sm:$0xf]
        %v2903 = vld [vmem:[%s9 + $0xc] sm:$0xf]
        %v2904 = vld [vmem:[%s9 + $0x10] sm:$0xf]
        %v2905 = vld [vmem:[%s9 + $0x14] sm:$0xf]
        %v2906 = vld [vmem:[%s9 + $0x18] sm:$0xf]
        %v2907 = vld [vmem:[%s9 + $0x1c] sm:$0xf]
        %v2912 = vunpack.c.l.b16 %v2904
        %v2913 = vunpack.c.l.b16 %v2905
        %v2914 = vunpack.c.l.b16 %v2906
        %v2915 = vunpack.c.l.b16 %v2907
        %v2916 = vpack.c.b16 %v2913, %v2912
        %v2917 = vpack.c.b16 %v2915, %v2914
        %v2921 = vsel %vm1835, %v2252, 0
        %v2924 = vsel %vm1835, %v2253, 0
        %v2927 = vsel %vm1835, %v2254, 0
        %v2930 = vsel %vm1835, %v2255, 0
        %v2933 = vsel %vm1835, %v2256, 0
        %v2936 = vsel %vm1835, %v2257, 0
        %v2939 = vsel %vm1835, %v2258, 0
        %v2942 = vsel %vm1835, %v2259, 0
        %2944 = vmatprep.subr.bf16.mxu0 0
        %2945 = vmatpush1.bf16.msra.mxu0 0
        %2946 = vmatprep.subr.bf16.mxu0 0
        %2947 = vmatpush1.bf16.msra.mxu0 0
        %2948 = vmatprep.subr.bf16.mxu0 0
        %2949 = vmatpush1.bf16.msra.mxu0 0
        %2950 = vmatprep.subr.bf16.mxu0 0
        %2951 = vmatpush1.bf16.msra.mxu0 0
        %2952 = vmatprep.subr.bf16.mxu0 0
        %2953 = vmatpush1.bf16.msra.mxu0 0
        %2954 = vmatprep.subr.bf16.mxu0 0
        %2955 = vmatpush1.bf16.msra.mxu0 0
        %2956 = vmatprep.subr.bf16.mxu0 0
        %2957 = vmatpush1.bf16.msra.mxu0 %v2917
        %2958 = vmatprep.subr.bf16.mxu0 0
        %2959 = vmatpush1.bf16.msra.mxu0 %v2916
        %2960 = vmatprep.subr.bf16.mxu0 0
        %2961 = vmatpush2.bf16.msra.mxu0 0
        %2962 = vmatprep.subr.bf16.mxu0 0
        %2963 = vmatpush2.bf16.msra.mxu0 0
        %2964 = vmatprep.subr.bf16.mxu0 0
        %2965 = vmatpush2.bf16.msra.mxu0 0
        %2966 = vmatprep.subr.bf16.mxu0 0
        %2967 = vmatpush2.bf16.msra.mxu0 0
        %2968 = vmatprep.subr.bf16.mxu0 0
        %2969 = vmatpush2.bf16.msra.mxu0 0
        %2970 = vmatprep.subr.bf16.mxu0 0
        %2971 = vmatpush2.bf16.msra.mxu0 0
        %2972 = vmatprep.subr.bf16.mxu0 0
        %2973 = vmatpush2.bf16.msra.mxu0 0
        %2974 = vmatprep.subr.bf16.mxu0 0
        %2975 = vmatpush2.bf16.msra.mxu0 0
        %2976 = vmatprep.mubr.bf16.mxu0 0
        %2977 = vmatmul.mubr.bf16.gmra.mxu0 %v2921
        %v2978 = vpop.f32.mrf.mxu0
        %v2979 = vadd.f32 0.0, %v2978
        %v2980 = vpop.f32.mrf.mxu0
        %v2981 = vpop.f32.mrf.mxu0
        %v2982 = vadd.f32 0.0, %v2981
        %v2983 = vpop.f32.mrf.mxu0
        %2984 = vmatprep.mubr.bf16.mxu0 0
        %2985 = vmatmul.mubr.bf16.gmra.mxu0 %v2924
        %v2986 = vpop.f32.mrf.mxu0
        %v2987 = vadd.f32 0.0, %v2986
        %v2988 = vpop.f32.mrf.mxu0
        %v2989 = vpop.f32.mrf.mxu0
        %v2990 = vadd.f32 0.0, %v2989
        %v2991 = vpop.f32.mrf.mxu0
        %2992 = vmatprep.mubr.bf16.mxu0 0
        %2993 = vmatmul.mubr.bf16.gmra.mxu0 %v2927
        %v2994 = vpop.f32.mrf.mxu0
        %v2995 = vadd.f32 0.0, %v2994
        %v2996 = vpop.f32.mrf.mxu0
        %v2997 = vpop.f32.mrf.mxu0
        %v2998 = vadd.f32 0.0, %v2997
        %v2999 = vpop.f32.mrf.mxu0
        %3000 = vmatprep.mubr.bf16.mxu0 0
        %3001 = vmatmul.mubr.bf16.gmra.mxu0 %v2930
        %v3002 = vpop.f32.mrf.mxu0
        %v3003 = vadd.f32 0.0, %v3002
        %v3004 = vpop.f32.mrf.mxu0
        %v3005 = vpop.f32.mrf.mxu0
        %v3006 = vadd.f32 0.0, %v3005
        %v3007 = vpop.f32.mrf.mxu0
        %3008 = vmatprep.mubr.bf16.mxu0 0
        %3009 = vmatmul.mubr.bf16.gmra.mxu0 %v2933
        %v3010 = vpop.f32.mrf.mxu0
        %v3011 = vadd.f32 0.0, %v3010
        %v3012 = vpop.f32.mrf.mxu0
        %v3013 = vpop.f32.mrf.mxu0
        %v3014 = vadd.f32 0.0, %v3013
        %v3015 = vpop.f32.mrf.mxu0
        %3016 = vmatprep.mubr.bf16.mxu0 0
        %3017 = vmatmul.mubr.bf16.gmra.mxu0 %v2936
        %v3018 = vpop.f32.mrf.mxu0
        %v3019 = vadd.f32 0.0, %v3018
        %v3020 = vpop.f32.mrf.mxu0
        %v3021 = vpop.f32.mrf.mxu0
        %v3022 = vadd.f32 0.0, %v3021
        %v3023 = vpop.f32.mrf.mxu0
        %3024 = vmatprep.mubr.bf16.mxu0 0
        %3025 = vmatmul.mubr.bf16.gmra.mxu0 %v2939
        %v3026 = vpop.f32.mrf.mxu0
        %v3027 = vadd.f32 0.0, %v3026
        %v3028 = vpop.f32.mrf.mxu0
        %v3029 = vpop.f32.mrf.mxu0
        %v3030 = vadd.f32 0.0, %v3029
        %v3031 = vpop.f32.mrf.mxu0
        %3032 = vmatprep.mubr.bf16.mxu0 0
        %3033 = vmatmul.mubr.bf16.gmra.mxu0 %v2942
        %v3034 = vpop.f32.mrf.mxu0
        %v3035 = vadd.f32 0.0, %v3034
        %v3036 = vpop.f32.mrf.mxu0
        %v3037 = vpop.f32.mrf.mxu0
        %v3038 = vadd.f32 0.0, %v3037
        %v3039 = vpop.f32.mrf.mxu0
        %3040 = vdwg.mxu0
        %v3045 = vunpack.c.l.b16 %v2900
        %v3046 = vunpack.c.l.b16 %v2901
        %v3047 = vunpack.c.l.b16 %v2902
        %v3048 = vunpack.c.l.b16 %v2903
        %v3049 = vpack.c.b16 %v3046, %v3045
        %v3050 = vpack.c.b16 %v3048, %v3047
        %3053 = vmatprep.subr.bf16.mxu0 0
        %3054 = vmatpush1.bf16.msra.mxu0 0
        %3055 = vmatprep.subr.bf16.mxu0 0
        %3056 = vmatpush1.bf16.msra.mxu0 0
        %3057 = vmatprep.subr.bf16.mxu0 0
        %3058 = vmatpush1.bf16.msra.mxu0 0
        %3059 = vmatprep.subr.bf16.mxu0 0
        %3060 = vmatpush1.bf16.msra.mxu0 0
        %3061 = vmatprep.subr.bf16.mxu0 0
        %3062 = vmatpush1.bf16.msra.mxu0 0
        %3063 = vmatprep.subr.bf16.mxu0 0
        %3064 = vmatpush1.bf16.msra.mxu0 0
        %3065 = vmatprep.subr.bf16.mxu0 0
        %3066 = vmatpush1.bf16.msra.mxu0 %v3050
        %3067 = vmatprep.subr.bf16.mxu0 0
        %3068 = vmatpush1.bf16.msra.mxu0 %v3049
        %3069 = vmatprep.subr.bf16.mxu0 0
        %3070 = vmatpush2.bf16.msra.mxu0 0
        %3071 = vmatprep.subr.bf16.mxu0 0
        %3072 = vmatpush2.bf16.msra.mxu0 0
        %3073 = vmatprep.subr.bf16.mxu0 0
        %3074 = vmatpush2.bf16.msra.mxu0 0
        %3075 = vmatprep.subr.bf16.mxu0 0
        %3076 = vmatpush2.bf16.msra.mxu0 0
        %3077 = vmatprep.subr.bf16.mxu0 0
        %3078 = vmatpush2.bf16.msra.mxu0 0
        %3079 = vmatprep.subr.bf16.mxu0 0
        %3080 = vmatpush2.bf16.msra.mxu0 0
        %3081 = vmatprep.subr.bf16.mxu0 0
        %3082 = vmatpush2.bf16.msra.mxu0 0
        %3083 = vmatprep.subr.bf16.mxu0 0
        %3084 = vmatpush2.bf16.msra.mxu0 0
        %3085 = vmatprep.mubr.bf16.mxu0 0
        %3086 = vmatmul.mubr.bf16.gmra.mxu0 %v1837
        %v3087 = vpop.f32.mrf.mxu0
        %v3088 = vadd.f32 %v2979, %v3087
        %v3089 = vpop.f32.mrf.mxu0
        %v3090 = vpop.f32.mrf.mxu0
        %v3091 = vadd.f32 %v2982, %v3090
        %v3092 = vpop.f32.mrf.mxu0
        %3093 = vmatprep.mubr.bf16.mxu0 0
        %3094 = vmatmul.mubr.bf16.gmra.mxu0 %v1840
        %v3095 = vpop.f32.mrf.mxu0
        %v3096 = vadd.f32 %v2987, %v3095
        %v3097 = vpop.f32.mrf.mxu0
        %v3098 = vpop.f32.mrf.mxu0
        %v3099 = vadd.f32 %v2990, %v3098
        %v3100 = vpop.f32.mrf.mxu0
        %3101 = vmatprep.mubr.bf16.mxu0 0
        %3102 = vmatmul.mubr.bf16.gmra.mxu0 %v1843
        %v3103 = vpop.f32.mrf.mxu0
        %v3104 = vadd.f32 %v2995, %v3103
        %v3105 = vpop.f32.mrf.mxu0
        %v3106 = vpop.f32.mrf.mxu0
        %v3107 = vadd.f32 %v2998, %v3106
        %v3108 = vpop.f32.mrf.mxu0
        %3109 = vmatprep.mubr.bf16.mxu0 0
        %3110 = vmatmul.mubr.bf16.gmra.mxu0 %v1846
        %v3111 = vpop.f32.mrf.mxu0
        %v3112 = vadd.f32 %v3003, %v3111
        %v3113 = vpop.f32.mrf.mxu0
        %v3114 = vpop.f32.mrf.mxu0
        %v3115 = vadd.f32 %v3006, %v3114
        %v3116 = vpop.f32.mrf.mxu0
        %3117 = vmatprep.mubr.bf16.mxu0 0
        %3118 = vmatmul.mubr.bf16.gmra.mxu0 %v1849
        %v3119 = vpop.f32.mrf.mxu0
        %v3120 = vadd.f32 %v3011, %v3119
        %v3121 = vpop.f32.mrf.mxu0
        %v3122 = vpop.f32.mrf.mxu0
        %v3123 = vadd.f32 %v3014, %v3122
        %v3124 = vpop.f32.mrf.mxu0
        %3125 = vmatprep.mubr.bf16.mxu0 0
        %3126 = vmatmul.mubr.bf16.gmra.mxu0 %v1852
        %v3127 = vpop.f32.mrf.mxu0
        %v3128 = vadd.f32 %v3019, %v3127
        %v3129 = vpop.f32.mrf.mxu0
        %v3130 = vpop.f32.mrf.mxu0
        %v3131 = vadd.f32 %v3022, %v3130
        %v3132 = vpop.f32.mrf.mxu0
        %3133 = vmatprep.mubr.bf16.mxu0 0
        %3134 = vmatmul.mubr.bf16.gmra.mxu0 %v1855
        %v3135 = vpop.f32.mrf.mxu0
        %v3136 = vadd.f32 %v3027, %v3135
        %v3137 = vpop.f32.mrf.mxu0
        %v3138 = vpop.f32.mrf.mxu0
        %v3139 = vadd.f32 %v3030, %v3138
        %v3140 = vpop.f32.mrf.mxu0
        %3141 = vmatprep.mubr.bf16.mxu0 0
        %3142 = vmatmul.mubr.bf16.gmra.mxu0 %v1858
        %v3143 = vpop.f32.mrf.mxu0
        %v3144 = vadd.f32 %v3035, %v3143
        %v3145 = vpop.f32.mrf.mxu0
        %v3146 = vpop.f32.mrf.mxu0
        %v3147 = vadd.f32 %v3038, %v3146
        %v3148 = vpop.f32.mrf.mxu0
        %3149 = vdwg.mxu0
        %v3150 = vrot.slane %v3088, 7
        %v3151 = vrot.slane %v3091, 7
        %v3152 = vrot.slane %v3096, 7
        %v3153 = vrot.slane %v3099, 7
        %v3154 = vrot.slane %v3104, 7
        %v3155 = vrot.slane %v3107, 7
        %v3156 = vrot.slane %v3112, 7
        %v3157 = vrot.slane %v3115, 7
        %v3158 = vrot.slane %v3120, 7
        %v3159 = vrot.slane %v3123, 7
        %v3160 = vrot.slane %v3128, 7
        %v3161 = vrot.slane %v3131, 7
        %v3162 = vrot.slane %v3136, 7
        %v3163 = vrot.slane %v3139, 7
        %v3164 = vrot.slane %v3144, 7
        %v3165 = vrot.slane %v3147, 7
        %v3166 = vsel %vm912, %v3164, %v3165
        %v3167 = vsel %vm912, %v3163, %v3164
        %v3168 = vsel %vm912, %v3162, %v3163
        %v3169 = vsel %vm912, %v3161, %v3162
        %v3170 = vsel %vm912, %v3160, %v3161
        %v3171 = vsel %vm912, %v3159, %v3160
        %v3172 = vsel %vm912, %v3158, %v3159
        %v3173 = vsel %vm912, %v3157, %v3158
        %v3174 = vsel %vm912, %v3156, %v3157
        %v3175 = vsel %vm912, %v3155, %v3156
        %v3176 = vsel %vm912, %v3154, %v3155
        %v3177 = vsel %vm912, %v3153, %v3154
        %v3178 = vsel %vm912, %v3152, %v3153
        %v3179 = vsel %vm912, %v3151, %v3152
        %v3180 = vsel %vm912, %v3150, %v3151
        %v3181 = vsel %vm912, %v3165, %v3150
        %v3182 = vsel %vm930, %v3181, 0.0
        %v3183 = vsel %vm931, %v3180, 0.0
        %v3184 = vsel %vm930, %v3179, 0.0
        %v3185 = vsel %vm931, %v3178, 0.0
        %v3186 = vsel %vm930, %v3177, 0.0
        %v3187 = vsel %vm931, %v3176, 0.0
        %v3188 = vsel %vm930, %v3175, 0.0
        %v3189 = vsel %vm931, %v3174, 0.0
        %v3190 = vsel %vm930, %v3173, 0.0
        %v3191 = vsel %vm931, %v3172, 0.0
        %v3192 = vsel %vm930, %v3171, 0.0
        %v3193 = vsel %vm931, %v3170, 0.0
        %v3194 = vsel %vm930, %v3169, 0.0
        %v3195 = vsel %vm931, %v3168, 0.0
        %v3196 = vsel %vm930, %v3167, 0.0
        %v3197 = vsel %vm931, %v3166, 0.0
        %3214 = vrot.lane.b32.xlu0 %v3088, 96
        %v3215 = vpop.permute.xlu0 %3214
        %3216 = vrot.lane.b32.xlu0 %v3091, 96
        %v3217 = vpop.permute.xlu0 %3216
        %3218 = vrot.lane.b32.xlu0 %v3096, 96
        %v3219 = vpop.permute.xlu0 %3218
        %3220 = vrot.lane.b32.xlu0 %v3099, 96
        %v3221 = vpop.permute.xlu0 %3220
        %3222 = vrot.lane.b32.xlu0 %v3104, 96
        %v3223 = vpop.permute.xlu0 %3222
        %3224 = vrot.lane.b32.xlu0 %v3107, 96
        %v3225 = vpop.permute.xlu0 %3224
        %3226 = vrot.lane.b32.xlu0 %v3112, 96
        %v3227 = vpop.permute.xlu0 %3226
        %3228 = vrot.lane.b32.xlu0 %v3115, 96
        %v3229 = vpop.permute.xlu0 %3228
        %3230 = vrot.lane.b32.xlu0 %v3120, 96
        %v3231 = vpop.permute.xlu0 %3230
        %3232 = vrot.lane.b32.xlu0 %v3123, 96
        %v3233 = vpop.permute.xlu0 %3232
        %3234 = vrot.lane.b32.xlu0 %v3128, 96
        %v3235 = vpop.permute.xlu0 %3234
        %3236 = vrot.lane.b32.xlu0 %v3131, 96
        %v3237 = vpop.permute.xlu0 %3236
        %3238 = vrot.lane.b32.xlu0 %v3136, 96
        %v3239 = vpop.permute.xlu0 %3238
        %3240 = vrot.lane.b32.xlu0 %v3139, 96
        %v3241 = vpop.permute.xlu0 %3240
        %3242 = vrot.lane.b32.xlu0 %v3144, 96
        %v3243 = vpop.permute.xlu0 %3242
        %3244 = vrot.lane.b32.xlu0 %v3147, 96
        %v3245 = vpop.permute.xlu0 %3244
        %v3262 = vadd.f32 %v3182, %v3215
        %v3263 = vadd.f32 %v3183, %v3217
        %v3264 = vadd.f32 %v3184, %v3219
        %v3265 = vadd.f32 %v3185, %v3221
        %v3266 = vadd.f32 %v3186, %v3223
        %v3267 = vadd.f32 %v3187, %v3225
        %v3268 = vadd.f32 %v3188, %v3227
        %v3269 = vadd.f32 %v3189, %v3229
        %v3270 = vadd.f32 %v3190, %v3231
        %v3271 = vadd.f32 %v3191, %v3233
        %v3272 = vadd.f32 %v3192, %v3235
        %v3273 = vadd.f32 %v3193, %v3237
        %v3274 = vadd.f32 %v3194, %v3239
        %v3275 = vadd.f32 %v3195, %v3241
        %v3276 = vadd.f32 %v3196, %v3243
        %v3277 = vadd.f32 %v3197, %v3245
        %3278 = vrot.lane.b32.xlu0 %v3088, 64
        %v3279 = vpop.permute.xlu0 %3278
        %3280 = vrot.lane.b32.xlu0 %v3091, 64
        %v3281 = vpop.permute.xlu0 %3280
        %3282 = vrot.lane.b32.xlu0 %v3096, 64
        %v3283 = vpop.permute.xlu0 %3282
        %3284 = vrot.lane.b32.xlu0 %v3099, 64
        %v3285 = vpop.permute.xlu0 %3284
        %3286 = vrot.lane.b32.xlu0 %v3104, 64
        %v3287 = vpop.permute.xlu0 %3286
        %3288 = vrot.lane.b32.xlu0 %v3107, 64
        %v3289 = vpop.permute.xlu0 %3288
        %3290 = vrot.lane.b32.xlu0 %v3112, 64
        %v3291 = vpop.permute.xlu0 %3290
        %3292 = vrot.lane.b32.xlu0 %v3115, 64
        %v3293 = vpop.permute.xlu0 %3292
        %3294 = vrot.lane.b32.xlu0 %v3120, 64
        %v3295 = vpop.permute.xlu0 %3294
        %3296 = vrot.lane.b32.xlu0 %v3123, 64
        %v3297 = vpop.permute.xlu0 %3296
        %3298 = vrot.lane.b32.xlu0 %v3128, 64
        %v3299 = vpop.permute.xlu0 %3298
        %3300 = vrot.lane.b32.xlu0 %v3131, 64
        %v3301 = vpop.permute.xlu0 %3300
        %3302 = vrot.lane.b32.xlu0 %v3136, 64
        %v3303 = vpop.permute.xlu0 %3302
        %3304 = vrot.lane.b32.xlu0 %v3139, 64
        %v3305 = vpop.permute.xlu0 %3304
        %3306 = vrot.lane.b32.xlu0 %v3144, 64
        %v3307 = vpop.permute.xlu0 %3306
        %3308 = vrot.lane.b32.xlu0 %v3147, 64
        %v3309 = vpop.permute.xlu0 %3308
        %v3326 = vrot.slane %v3279, 1
        %v3327 = vrot.slane %v3281, 1
        %v3328 = vrot.slane %v3283, 1
        %v3329 = vrot.slane %v3285, 1
        %v3330 = vrot.slane %v3287, 1
        %v3331 = vrot.slane %v3289, 1
        %v3332 = vrot.slane %v3291, 1
        %v3333 = vrot.slane %v3293, 1
        %v3334 = vrot.slane %v3295, 1
        %v3335 = vrot.slane %v3297, 1
        %v3336 = vrot.slane %v3299, 1
        %v3337 = vrot.slane %v3301, 1
        %v3338 = vrot.slane %v3303, 1
        %v3339 = vrot.slane %v3305, 1
        %v3340 = vrot.slane %v3307, 1
        %v3341 = vrot.slane %v3309, 1
        %v3342 = vsel %vm1092, %v3340, %v3341
        %v3343 = vsel %vm1092, %v3339, %v3340
        %v3344 = vsel %vm1092, %v3338, %v3339
        %v3345 = vsel %vm1092, %v3337, %v3338
        %v3346 = vsel %vm1092, %v3336, %v3337
        %v3347 = vsel %vm1092, %v3335, %v3336
        %v3348 = vsel %vm1092, %v3334, %v3335
        %v3349 = vsel %vm1092, %v3333, %v3334
        %v3350 = vsel %vm1092, %v3332, %v3333
        %v3351 = vsel %vm1092, %v3331, %v3332
        %v3352 = vsel %vm1092, %v3330, %v3331
        %v3353 = vsel %vm1092, %v3329, %v3330
        %v3354 = vsel %vm1092, %v3328, %v3329
        %v3355 = vsel %vm1092, %v3327, %v3328
        %v3356 = vsel %vm1092, %v3326, %v3327
        %v3357 = vsel %vm1092, %v3341, %v3326
        %v3358 = vsel %vm1109, %v3356, 0.0
        %v3359 = vsel %vm1110, %v3355, 0.0
        %v3360 = vsel %vm1109, %v3354, 0.0
        %v3361 = vsel %vm1110, %v3353, 0.0
        %v3362 = vsel %vm1109, %v3352, 0.0
        %v3363 = vsel %vm1110, %v3351, 0.0
        %v3364 = vsel %vm1109, %v3350, 0.0
        %v3365 = vsel %vm1110, %v3349, 0.0
        %v3366 = vsel %vm1109, %v3348, 0.0
        %v3367 = vsel %vm1110, %v3347, 0.0
        %v3368 = vsel %vm1109, %v3346, 0.0
        %v3369 = vsel %vm1110, %v3345, 0.0
        %v3370 = vsel %vm1109, %v3344, 0.0
        %v3371 = vsel %vm1110, %v3343, 0.0
        %v3372 = vsel %vm1109, %v3342, 0.0
        %v3373 = vsel %vm1110, %v3357, 0.0
        %v3374 = vadd.f32 %v3262, %v3358
        %v3375 = vadd.f32 %v3263, %v3359
        %v3376 = vadd.f32 %v3264, %v3360
        %v3377 = vadd.f32 %v3265, %v3361
        %v3378 = vadd.f32 %v3266, %v3362
        %v3379 = vadd.f32 %v3267, %v3363
        %v3380 = vadd.f32 %v3268, %v3364
        %v3381 = vadd.f32 %v3269, %v3365
        %v3382 = vadd.f32 %v3270, %v3366
        %v3383 = vadd.f32 %v3271, %v3367
        %v3384 = vadd.f32 %v3272, %v3368
        %v3385 = vadd.f32 %v3273, %v3369
        %v3386 = vadd.f32 %v3274, %v3370
        %v3387 = vadd.f32 %v3275, %v3371
        %v3388 = vadd.f32 %v3276, %v3372
        %v3389 = vadd.f32 %v3277, %v3373
        %v3390 = vld [vmem:[%s10] sm:$0x1]
        %v3392 = vlaneseq
        %v3393 = vshrl.u32 %v3392, 7
        %v3394 = vsub.s32 0, %v3393
        %v3395 = vrot.slane %v3390, %v3394
        %v3397 = vadd.f32 %v3374, %v3395
        %v3398 = vadd.f32 %v3375, %v3395
        %v3399 = vadd.f32 %v3376, %v3395
        %v3400 = vadd.f32 %v3377, %v3395
        %v3401 = vadd.f32 %v3378, %v3395
        %v3402 = vadd.f32 %v3379, %v3395
        %v3403 = vadd.f32 %v3380, %v3395
        %v3404 = vadd.f32 %v3381, %v3395
        %v3405 = vadd.f32 %v3382, %v3395
        %v3406 = vadd.f32 %v3383, %v3395
        %v3407 = vadd.f32 %v3384, %v3395
        %v3408 = vadd.f32 %v3385, %v3395
        %v3409 = vadd.f32 %v3386, %v3395
        %v3410 = vadd.f32 %v3387, %v3395
        %v3411 = vadd.f32 %v3388, %v3395
        %v3412 = vadd.f32 %v3389, %v3395
        %v3413 = vmul.f32 %v3397, %v1169
        %v3414 = vmul.f32 %v3398, %v1174
        %v3415 = vmul.f32 %v3399, %v1179
        %v3416 = vmul.f32 %v3400, %v1184
        %v3417 = vmul.f32 %v3401, %v1189
        %v3418 = vmul.f32 %v3402, %v1194
        %v3419 = vmul.f32 %v3403, %v1199
        %v3420 = vmul.f32 %v3404, %v1204
        %v3421 = vmul.f32 %v3405, %v1209
        %v3422 = vmul.f32 %v3406, %v1214
        %v3423 = vmul.f32 %v3407, %v1219
        %v3424 = vmul.f32 %v3408, %v1224
        %v3425 = vmul.f32 %v3409, %v1229
        %v3426 = vmul.f32 %v3410, %v1234
        %v3427 = vmul.f32 %v3411, %v1239
        %v3428 = vmul.f32 %v3412, %v1244
        %v3429 = vmax.f32 %v3413, 0.0
        %v3430 = vmax.f32 %v3414, 0.0
        %v3431 = vmax.f32 %v3415, 0.0
        %v3432 = vmax.f32 %v3416, 0.0
        %v3433 = vmax.f32 %v3417, 0.0
        %v3434 = vmax.f32 %v3418, 0.0
        %v3435 = vmax.f32 %v3419, 0.0
        %v3436 = vmax.f32 %v3420, 0.0
        %v3437 = vmax.f32 %v3421, 0.0
        %v3438 = vmax.f32 %v3422, 0.0
        %v3439 = vmax.f32 %v3423, 0.0
        %v3440 = vmax.f32 %v3424, 0.0
        %v3441 = vmax.f32 %v3425, 0.0
        %v3442 = vmax.f32 %v3426, 0.0
        %v3443 = vmax.f32 %v3427, 0.0
        %v3444 = vmax.f32 %v3428, 0.0
        %v3445 = vpack.c.bf16 %v3430, %v3429
        %v3446 = vpack.c.bf16 %v3432, %v3431
        %v3447 = vpack.c.bf16 %v3434, %v3433
        %v3448 = vpack.c.bf16 %v3436, %v3435
        %v3449 = vpack.c.bf16 %v3438, %v3437
        %v3450 = vpack.c.bf16 %v3440, %v3439
        %v3451 = vpack.c.bf16 %v3442, %v3441
        %v3452 = vpack.c.bf16 %v3444, %v3443
        %v3453 = vld [vmem:[%s11] sm:$0xff]
        %v3454 = vld [vmem:[%s11 + $0x8] sm:$0xff]
        %v3455 = vld [vmem:[%s11 + $0x10] sm:$0xff]
        %v3456 = vld [vmem:[%s11 + $0x18] sm:$0xff]
        %v3457 = vld [vmem:[%s11 + $0x20] sm:$0xff]
        %v3458 = vld [vmem:[%s11 + $0x28] sm:$0xff]
        %v3459 = vld [vmem:[%s11 + $0x30] sm:$0xff]
        %v3460 = vld [vmem:[%s11 + $0x38] sm:$0xff]
        %v3465 = vunpack.c.l.b16 %v3457
        %v3466 = vunpack.c.h.b16 %v3457
        %v3467 = vunpack.c.l.b16 %v3458
        %v3468 = vunpack.c.h.b16 %v3458
        %v3469 = vunpack.c.l.b16 %v3459
        %v3470 = vunpack.c.h.b16 %v3459
        %v3471 = vunpack.c.l.b16 %v3460
        %v3472 = vunpack.c.h.b16 %v3460
        %v3473 = vpack.c.b16 %v3467, %v3465
        %v3474 = vpack.c.b16 %v3468, %v3466
        %v3475 = vpack.c.b16 %v3471, %v3469
        %v3476 = vpack.c.b16 %v3472, %v3470
        %v3482 = vsel %vm1835, %v2892, 0
        %v3485 = vsel %vm1835, %v2893, 0
        %v3488 = vsel %vm1835, %v2894, 0
        %v3491 = vsel %vm1835, %v2895, 0
        %v3494 = vsel %vm1835, %v2896, 0
        %v3497 = vsel %vm1835, %v2897, 0
        %v3500 = vsel %vm1835, %v2898, 0
        %v3503 = vsel %vm1835, %v2899, 0
        %3505 = vmatprep.subr.bf16.mxu0 0
        %3506 = vmatpush1.bf16.msra.mxu0 0
        %3507 = vmatprep.subr.bf16.mxu0 0
        %3508 = vmatpush1.bf16.msra.mxu0 0
        %3509 = vmatprep.subr.bf16.mxu0 0
        %3510 = vmatpush1.bf16.msra.mxu0 0
        %3511 = vmatprep.subr.bf16.mxu0 0
        %3512 = vmatpush1.bf16.msra.mxu0 0
        %3513 = vmatprep.subr.bf16.mxu0 0
        %3514 = vmatpush1.bf16.msra.mxu0 0
        %3515 = vmatprep.subr.bf16.mxu0 0
        %3516 = vmatpush1.bf16.msra.mxu0 0
        %3517 = vmatprep.subr.bf16.mxu0 %v3476
        %3518 = vmatpush1.bf16.msra.mxu0 %v3475
        %3519 = vmatprep.subr.bf16.mxu0 %v3474
        %3520 = vmatpush1.bf16.msra.mxu0 %v3473
        %3521 = vmatprep.subr.bf16.mxu0 0
        %3522 = vmatpush2.bf16.msra.mxu0 0
        %3523 = vmatprep.subr.bf16.mxu0 0
        %3524 = vmatpush2.bf16.msra.mxu0 0
        %3525 = vmatprep.subr.bf16.mxu0 0
        %3526 = vmatpush2.bf16.msra.mxu0 0
        %3527 = vmatprep.subr.bf16.mxu0 0
        %3528 = vmatpush2.bf16.msra.mxu0 0
        %3529 = vmatprep.subr.bf16.mxu0 0
        %3530 = vmatpush2.bf16.msra.mxu0 0
        %3531 = vmatprep.subr.bf16.mxu0 0
        %3532 = vmatpush2.bf16.msra.mxu0 0
        %3533 = vmatprep.subr.bf16.mxu0 0
        %3534 = vmatpush2.bf16.msra.mxu0 0
        %3535 = vmatprep.subr.bf16.mxu0 0
        %3536 = vmatpush2.bf16.msra.mxu0 0
        %3537 = vmatprep.mubr.bf16.mxu0 0
        %3538 = vmatmul.mubr.bf16.gmra.mxu0 %v3482
        %v3539 = vpop.f32.mrf.mxu0
        %v3540 = vadd.f32 0.0, %v3539
        %v3541 = vpop.f32.mrf.mxu0
        %v3542 = vadd.f32 0.0, %v3541
        %v3543 = vpop.f32.mrf.mxu0
        %v3544 = vadd.f32 0.0, %v3543
        %v3545 = vpop.f32.mrf.mxu0
        %v3546 = vadd.f32 0.0, %v3545
        %3547 = vmatprep.mubr.bf16.mxu0 0
        %3548 = vmatmul.mubr.bf16.gmra.mxu0 %v3485
        %v3549 = vpop.f32.mrf.mxu0
        %v3550 = vadd.f32 0.0, %v3549
        %v3551 = vpop.f32.mrf.mxu0
        %v3552 = vadd.f32 0.0, %v3551
        %v3553 = vpop.f32.mrf.mxu0
        %v3554 = vadd.f32 0.0, %v3553
        %v3555 = vpop.f32.mrf.mxu0
        %v3556 = vadd.f32 0.0, %v3555
        %3557 = vmatprep.mubr.bf16.mxu0 0
        %3558 = vmatmul.mubr.bf16.gmra.mxu0 %v3488
        %v3559 = vpop.f32.mrf.mxu0
        %v3560 = vadd.f32 0.0, %v3559
        %v3561 = vpop.f32.mrf.mxu0
        %v3562 = vadd.f32 0.0, %v3561
        %v3563 = vpop.f32.mrf.mxu0
        %v3564 = vadd.f32 0.0, %v3563
        %v3565 = vpop.f32.mrf.mxu0
        %v3566 = vadd.f32 0.0, %v3565
        %3567 = vmatprep.mubr.bf16.mxu0 0
        %3568 = vmatmul.mubr.bf16.gmra.mxu0 %v3491
        %v3569 = vpop.f32.mrf.mxu0
        %v3570 = vadd.f32 0.0, %v3569
        %v3571 = vpop.f32.mrf.mxu0
        %v3572 = vadd.f32 0.0, %v3571
        %v3573 = vpop.f32.mrf.mxu0
        %v3574 = vadd.f32 0.0, %v3573
        %v3575 = vpop.f32.mrf.mxu0
        %v3576 = vadd.f32 0.0, %v3575
        %3577 = vmatprep.mubr.bf16.mxu0 0
        %3578 = vmatmul.mubr.bf16.gmra.mxu0 %v3494
        %v3579 = vpop.f32.mrf.mxu0
        %v3580 = vadd.f32 0.0, %v3579
        %v3581 = vpop.f32.mrf.mxu0
        %v3582 = vadd.f32 0.0, %v3581
        %v3583 = vpop.f32.mrf.mxu0
        %v3584 = vadd.f32 0.0, %v3583
        %v3585 = vpop.f32.mrf.mxu0
        %v3586 = vadd.f32 0.0, %v3585
        %3587 = vmatprep.mubr.bf16.mxu0 0
        %3588 = vmatmul.mubr.bf16.gmra.mxu0 %v3497
        %v3589 = vpop.f32.mrf.mxu0
        %v3590 = vadd.f32 0.0, %v3589
        %v3591 = vpop.f32.mrf.mxu0
        %v3592 = vadd.f32 0.0, %v3591
        %v3593 = vpop.f32.mrf.mxu0
        %v3594 = vadd.f32 0.0, %v3593
        %v3595 = vpop.f32.mrf.mxu0
        %v3596 = vadd.f32 0.0, %v3595
        %3597 = vmatprep.mubr.bf16.mxu0 0
        %3598 = vmatmul.mubr.bf16.gmra.mxu0 %v3500
        %v3599 = vpop.f32.mrf.mxu0
        %v3600 = vadd.f32 0.0, %v3599
        %v3601 = vpop.f32.mrf.mxu0
        %v3602 = vadd.f32 0.0, %v3601
        %v3603 = vpop.f32.mrf.mxu0
        %v3604 = vadd.f32 0.0, %v3603
        %v3605 = vpop.f32.mrf.mxu0
        %v3606 = vadd.f32 0.0, %v3605
        %3607 = vmatprep.mubr.bf16.mxu0 0
        %3608 = vmatmul.mubr.bf16.gmra.mxu0 %v3503
        %v3609 = vpop.f32.mrf.mxu0
        %v3610 = vadd.f32 0.0, %v3609
        %v3611 = vpop.f32.mrf.mxu0
        %v3612 = vadd.f32 0.0, %v3611
        %v3613 = vpop.f32.mrf.mxu0
        %v3614 = vadd.f32 0.0, %v3613
        %v3615 = vpop.f32.mrf.mxu0
        %v3616 = vadd.f32 0.0, %v3615
        %3617 = vdwg.mxu0
        %v3622 = vunpack.c.l.b16 %v3453
        %v3623 = vunpack.c.h.b16 %v3453
        %v3624 = vunpack.c.l.b16 %v3454
        %v3625 = vunpack.c.h.b16 %v3454
        %v3626 = vunpack.c.l.b16 %v3455
        %v3627 = vunpack.c.h.b16 %v3455
        %v3628 = vunpack.c.l.b16 %v3456
        %v3629 = vunpack.c.h.b16 %v3456
        %v3630 = vpack.c.b16 %v3624, %v3622
        %v3631 = vpack.c.b16 %v3625, %v3623
        %v3632 = vpack.c.b16 %v3628, %v3626
        %v3633 = vpack.c.b16 %v3629, %v3627
        %3638 = vmatprep.subr.bf16.mxu0 0
        %3639 = vmatpush1.bf16.msra.mxu0 0
        %3640 = vmatprep.subr.bf16.mxu0 0
        %3641 = vmatpush1.bf16.msra.mxu0 0
        %3642 = vmatprep.subr.bf16.mxu0 0
        %3643 = vmatpush1.bf16.msra.mxu0 0
        %3644 = vmatprep.subr.bf16.mxu0 0
        %3645 = vmatpush1.bf16.msra.mxu0 0
        %3646 = vmatprep.subr.bf16.mxu0 0
        %3647 = vmatpush1.bf16.msra.mxu0 0
        %3648 = vmatprep.subr.bf16.mxu0 0
        %3649 = vmatpush1.bf16.msra.mxu0 0
        %3650 = vmatprep.subr.bf16.mxu0 %v3633
        %3651 = vmatpush1.bf16.msra.mxu0 %v3632
        %3652 = vmatprep.subr.bf16.mxu0 %v3631
        %3653 = vmatpush1.bf16.msra.mxu0 %v3630
        %3654 = vmatprep.subr.bf16.mxu0 0
        %3655 = vmatpush2.bf16.msra.mxu0 0
        %3656 = vmatprep.subr.bf16.mxu0 0
        %3657 = vmatpush2.bf16.msra.mxu0 0
        %3658 = vmatprep.subr.bf16.mxu0 0
        %3659 = vmatpush2.bf16.msra.mxu0 0
        %3660 = vmatprep.subr.bf16.mxu0 0
        %3661 = vmatpush2.bf16.msra.mxu0 0
        %3662 = vmatprep.subr.bf16.mxu0 0
        %3663 = vmatpush2.bf16.msra.mxu0 0
        %3664 = vmatprep.subr.bf16.mxu0 0
        %3665 = vmatpush2.bf16.msra.mxu0 0
        %3666 = vmatprep.subr.bf16.mxu0 0
        %3667 = vmatpush2.bf16.msra.mxu0 0
        %3668 = vmatprep.subr.bf16.mxu0 0
        %3669 = vmatpush2.bf16.msra.mxu0 0
        %3670 = vmatprep.mubr.bf16.mxu0 0
        %3671 = vmatmul.mubr.bf16.gmra.mxu0 %v2285
        %v3672 = vpop.f32.mrf.mxu0
        %v3673 = vadd.f32 %v3540, %v3672
        %v3674 = vpop.f32.mrf.mxu0
        %v3675 = vadd.f32 %v3542, %v3674
        %v3676 = vpop.f32.mrf.mxu0
        %v3677 = vadd.f32 %v3544, %v3676
        %v3678 = vpop.f32.mrf.mxu0
        %v3679 = vadd.f32 %v3546, %v3678
        %3680 = vmatprep.mubr.bf16.mxu0 0
        %3681 = vmatmul.mubr.bf16.gmra.mxu0 %v2288
        %v3682 = vpop.f32.mrf.mxu0
        %v3683 = vadd.f32 %v3550, %v3682
        %v3684 = vpop.f32.mrf.mxu0
        %v3685 = vadd.f32 %v3552, %v3684
        %v3686 = vpop.f32.mrf.mxu0
        %v3687 = vadd.f32 %v3554, %v3686
        %v3688 = vpop.f32.mrf.mxu0
        %v3689 = vadd.f32 %v3556, %v3688
        %3690 = vmatprep.mubr.bf16.mxu0 0
        %3691 = vmatmul.mubr.bf16.gmra.mxu0 %v2291
        %v3692 = vpop.f32.mrf.mxu0
        %v3693 = vadd.f32 %v3560, %v3692
        %v3694 = vpop.f32.mrf.mxu0
        %v3695 = vadd.f32 %v3562, %v3694
        %v3696 = vpop.f32.mrf.mxu0
        %v3697 = vadd.f32 %v3564, %v3696
        %v3698 = vpop.f32.mrf.mxu0
        %v3699 = vadd.f32 %v3566, %v3698
        %3700 = vmatprep.mubr.bf16.mxu0 0
        %3701 = vmatmul.mubr.bf16.gmra.mxu0 %v2294
        %v3702 = vpop.f32.mrf.mxu0
        %v3703 = vadd.f32 %v3570, %v3702
        %v3704 = vpop.f32.mrf.mxu0
        %v3705 = vadd.f32 %v3572, %v3704
        %v3706 = vpop.f32.mrf.mxu0
        %v3707 = vadd.f32 %v3574, %v3706
        %v3708 = vpop.f32.mrf.mxu0
        %v3709 = vadd.f32 %v3576, %v3708
        %3710 = vmatprep.mubr.bf16.mxu0 0
        %3711 = vmatmul.mubr.bf16.gmra.mxu0 %v2297
        %v3712 = vpop.f32.mrf.mxu0
        %v3713 = vadd.f32 %v3580, %v3712
        %v3714 = vpop.f32.mrf.mxu0
        %v3715 = vadd.f32 %v3582, %v3714
        %v3716 = vpop.f32.mrf.mxu0
        %v3717 = vadd.f32 %v3584, %v3716
        %v3718 = vpop.f32.mrf.mxu0
        %v3719 = vadd.f32 %v3586, %v3718
        %3720 = vmatprep.mubr.bf16.mxu0 0
        %3721 = vmatmul.mubr.bf16.gmra.mxu0 %v2300
        %v3722 = vpop.f32.mrf.mxu0
        %v3723 = vadd.f32 %v3590, %v3722
        %v3724 = vpop.f32.mrf.mxu0
        %v3725 = vadd.f32 %v3592, %v3724
        %v3726 = vpop.f32.mrf.mxu0
        %v3727 = vadd.f32 %v3594, %v3726
        %v3728 = vpop.f32.mrf.mxu0
        %v3729 = vadd.f32 %v3596, %v3728
        %3730 = vmatprep.mubr.bf16.mxu0 0
        %3731 = vmatmul.mubr.bf16.gmra.mxu0 %v2303
        %v3732 = vpop.f32.mrf.mxu0
        %v3733 = vadd.f32 %v3600, %v3732
        %v3734 = vpop.f32.mrf.mxu0
        %v3735 = vadd.f32 %v3602, %v3734
        %v3736 = vpop.f32.mrf.mxu0
        %v3737 = vadd.f32 %v3604, %v3736
        %v3738 = vpop.f32.mrf.mxu0
        %v3739 = vadd.f32 %v3606, %v3738
        %3740 = vmatprep.mubr.bf16.mxu0 0
        %3741 = vmatmul.mubr.bf16.gmra.mxu0 %v2306
        %v3742 = vpop.f32.mrf.mxu0
        %v3743 = vadd.f32 %v3610, %v3742
        %v3744 = vpop.f32.mrf.mxu0
        %v3745 = vadd.f32 %v3612, %v3744
        %v3746 = vpop.f32.mrf.mxu0
        %v3747 = vadd.f32 %v3614, %v3746
        %v3748 = vpop.f32.mrf.mxu0
        %v3749 = vadd.f32 %v3616, %v3748
        %3750 = vdwg.mxu0
        %v3751 = vrot.slane %v3673, 6
        %v3752 = vrot.slane %v3677, 6
        %v3753 = vrot.slane %v3683, 6
        %v3754 = vrot.slane %v3687, 6
        %v3755 = vrot.slane %v3693, 6
        %v3756 = vrot.slane %v3697, 6
        %v3757 = vrot.slane %v3703, 6
        %v3758 = vrot.slane %v3707, 6
        %v3759 = vrot.slane %v3713, 6
        %v3760 = vrot.slane %v3717, 6
        %v3761 = vrot.slane %v3723, 6
        %v3762 = vrot.slane %v3727, 6
        %v3763 = vrot.slane %v3733, 6
        %v3764 = vrot.slane %v3737, 6
        %v3765 = vrot.slane %v3743, 6
        %v3766 = vrot.slane %v3747, 6
        %v3767 = vsel %vm1350, %v3765, %v3766
        %v3768 = vsel %vm1350, %v3764, %v3765
        %v3769 = vsel %vm1350, %v3763, %v3764
        %v3770 = vsel %vm1350, %v3762, %v3763
        %v3771 = vsel %vm1350, %v3761, %v3762
        %v3772 = vsel %vm1350, %v3760, %v3761
        %v3773 = vsel %vm1350, %v3759, %v3760
        %v3774 = vsel %vm1350, %v3758, %v3759
        %v3775 = vsel %vm1350, %v3757, %v3758
        %v3776 = vsel %vm1350, %v3756, %v3757
        %v3777 = vsel %vm1350, %v3755, %v3756
        %v3778 = vsel %vm1350, %v3754, %v3755
        %v3779 = vsel %vm1350, %v3753, %v3754
        %v3780 = vsel %vm1350, %v3752, %v3753
        %v3781 = vsel %vm1350, %v3751, %v3752
        %v3782 = vsel %vm1350, %v3766, %v3751
        %v3783 = vsel %vm1367, %v3782, 0.0
        %v3784 = vsel %vm1368, %v3781, 0.0
        %v3785 = vsel %vm1367, %v3780, 0.0
        %v3786 = vsel %vm1368, %v3779, 0.0
        %v3787 = vsel %vm1367, %v3778, 0.0
        %v3788 = vsel %vm1368, %v3777, 0.0
        %v3789 = vsel %vm1367, %v3776, 0.0
        %v3790 = vsel %vm1368, %v3775, 0.0
        %v3791 = vsel %vm1367, %v3774, 0.0
        %v3792 = vsel %vm1368, %v3773, 0.0
        %v3793 = vsel %vm1367, %v3772, 0.0
        %v3794 = vsel %vm1368, %v3771, 0.0
        %v3795 = vsel %vm1367, %v3770, 0.0
        %v3796 = vsel %vm1368, %v3769, 0.0
        %v3797 = vsel %vm1367, %v3768, 0.0
        %v3798 = vsel %vm1368, %v3767, 0.0
        %3815 = vrot.lane.b32.xlu0 %v3673, 96
        %v3816 = vpop.permute.xlu0 %3815
        %3817 = vrot.lane.b32.xlu0 %v3677, 96
        %v3818 = vpop.permute.xlu0 %3817
        %3819 = vrot.lane.b32.xlu0 %v3683, 96
        %v3820 = vpop.permute.xlu0 %3819
        %3821 = vrot.lane.b32.xlu0 %v3687, 96
        %v3822 = vpop.permute.xlu0 %3821
        %3823 = vrot.lane.b32.xlu0 %v3693, 96
        %v3824 = vpop.permute.xlu0 %3823
        %3825 = vrot.lane.b32.xlu0 %v3697, 96
        %v3826 = vpop.permute.xlu0 %3825
        %3827 = vrot.lane.b32.xlu0 %v3703, 96
        %v3828 = vpop.permute.xlu0 %3827
        %3829 = vrot.lane.b32.xlu0 %v3707, 96
        %v3830 = vpop.permute.xlu0 %3829
        %3831 = vrot.lane.b32.xlu0 %v3713, 96
        %v3832 = vpop.permute.xlu0 %3831
        %3833 = vrot.lane.b32.xlu0 %v3717, 96
        %v3834 = vpop.permute.xlu0 %3833
        %3835 = vrot.lane.b32.xlu0 %v3723, 96
        %v3836 = vpop.permute.xlu0 %3835
        %3837 = vrot.lane.b32.xlu0 %v3727, 96
        %v3838 = vpop.permute.xlu0 %3837
        %3839 = vrot.lane.b32.xlu0 %v3733, 96
        %v3840 = vpop.permute.xlu0 %3839
        %3841 = vrot.lane.b32.xlu0 %v3737, 96
        %v3842 = vpop.permute.xlu0 %3841
        %3843 = vrot.lane.b32.xlu0 %v3743, 96
        %v3844 = vpop.permute.xlu0 %3843
        %3845 = vrot.lane.b32.xlu0 %v3747, 96
        %v3846 = vpop.permute.xlu0 %3845
        %v3863 = vrot.slane %v3816, 7
        %v3864 = vrot.slane %v3818, 7
        %v3865 = vrot.slane %v3820, 7
        %v3866 = vrot.slane %v3822, 7
        %v3867 = vrot.slane %v3824, 7
        %v3868 = vrot.slane %v3826, 7
        %v3869 = vrot.slane %v3828, 7
        %v3870 = vrot.slane %v3830, 7
        %v3871 = vrot.slane %v3832, 7
        %v3872 = vrot.slane %v3834, 7
        %v3873 = vrot.slane %v3836, 7
        %v3874 = vrot.slane %v3838, 7
        %v3875 = vrot.slane %v3840, 7
        %v3876 = vrot.slane %v3842, 7
        %v3877 = vrot.slane %v3844, 7
        %v3878 = vrot.slane %v3846, 7
        %v3879 = vsel %vm912, %v3877, %v3878
        %v3880 = vsel %vm912, %v3876, %v3877
        %v3881 = vsel %vm912, %v3875, %v3876
        %v3882 = vsel %vm912, %v3874, %v3875
        %v3883 = vsel %vm912, %v3873, %v3874
        %v3884 = vsel %vm912, %v3872, %v3873
        %v3885 = vsel %vm912, %v3871, %v3872
        %v3886 = vsel %vm912, %v3870, %v3871
        %v3887 = vsel %vm912, %v3869, %v3870
        %v3888 = vsel %vm912, %v3868, %v3869
        %v3889 = vsel %vm912, %v3867, %v3868
        %v3890 = vsel %vm912, %v3866, %v3867
        %v3891 = vsel %vm912, %v3865, %v3866
        %v3892 = vsel %vm912, %v3864, %v3865
        %v3893 = vsel %vm912, %v3863, %v3864
        %v3894 = vsel %vm912, %v3878, %v3863
        %v3895 = vsel %vm930, %v3894, 0.0
        %v3896 = vsel %vm931, %v3893, 0.0
        %v3897 = vsel %vm930, %v3892, 0.0
        %v3898 = vsel %vm931, %v3891, 0.0
        %v3899 = vsel %vm930, %v3890, 0.0
        %v3900 = vsel %vm931, %v3889, 0.0
        %v3901 = vsel %vm930, %v3888, 0.0
        %v3902 = vsel %vm931, %v3887, 0.0
        %v3903 = vsel %vm930, %v3886, 0.0
        %v3904 = vsel %vm931, %v3885, 0.0
        %v3905 = vsel %vm930, %v3884, 0.0
        %v3906 = vsel %vm931, %v3883, 0.0
        %v3907 = vsel %vm930, %v3882, 0.0
        %v3908 = vsel %vm931, %v3881, 0.0
        %v3909 = vsel %vm930, %v3880, 0.0
        %v3910 = vsel %vm931, %v3879, 0.0
        %v3911 = vadd.f32 %v3783, %v3895
        %v3912 = vadd.f32 %v3784, %v3896
        %v3913 = vadd.f32 %v3785, %v3897
        %v3914 = vadd.f32 %v3786, %v3898
        %v3915 = vadd.f32 %v3787, %v3899
        %v3916 = vadd.f32 %v3788, %v3900
        %v3917 = vadd.f32 %v3789, %v3901
        %v3918 = vadd.f32 %v3790, %v3902
        %v3919 = vadd.f32 %v3791, %v3903
        %v3920 = vadd.f32 %v3792, %v3904
        %v3921 = vadd.f32 %v3793, %v3905
        %v3922 = vadd.f32 %v3794, %v3906
        %v3923 = vadd.f32 %v3795, %v3907
        %v3924 = vadd.f32 %v3796, %v3908
        %v3925 = vadd.f32 %v3797, %v3909
        %v3926 = vadd.f32 %v3798, %v3910
        %3927 = vrot.lane.b32.xlu0 %v3673, 64
        %v3928 = vpop.permute.xlu0 %3927
        %3929 = vrot.lane.b32.xlu0 %v3677, 64
        %v3930 = vpop.permute.xlu0 %3929
        %3931 = vrot.lane.b32.xlu0 %v3683, 64
        %v3932 = vpop.permute.xlu0 %3931
        %3933 = vrot.lane.b32.xlu0 %v3687, 64
        %v3934 = vpop.permute.xlu0 %3933
        %3935 = vrot.lane.b32.xlu0 %v3693, 64
        %v3936 = vpop.permute.xlu0 %3935
        %3937 = vrot.lane.b32.xlu0 %v3697, 64
        %v3938 = vpop.permute.xlu0 %3937
        %3939 = vrot.lane.b32.xlu0 %v3703, 64
        %v3940 = vpop.permute.xlu0 %3939
        %3941 = vrot.lane.b32.xlu0 %v3707, 64
        %v3942 = vpop.permute.xlu0 %3941
        %3943 = vrot.lane.b32.xlu0 %v3713, 64
        %v3944 = vpop.permute.xlu0 %3943
        %3945 = vrot.lane.b32.xlu0 %v3717, 64
        %v3946 = vpop.permute.xlu0 %3945
        %3947 = vrot.lane.b32.xlu0 %v3723, 64
        %v3948 = vpop.permute.xlu0 %3947
        %3949 = vrot.lane.b32.xlu0 %v3727, 64
        %v3950 = vpop.permute.xlu0 %3949
        %3951 = vrot.lane.b32.xlu0 %v3733, 64
        %v3952 = vpop.permute.xlu0 %3951
        %3953 = vrot.lane.b32.xlu0 %v3737, 64
        %v3954 = vpop.permute.xlu0 %3953
        %3955 = vrot.lane.b32.xlu0 %v3743, 64
        %v3956 = vpop.permute.xlu0 %3955
        %3957 = vrot.lane.b32.xlu0 %v3747, 64
        %v3958 = vpop.permute.xlu0 %3957
        %v3975 = vadd.f32 %v3911, %v3928
        %v3976 = vadd.f32 %v3912, %v3930
        %v3977 = vadd.f32 %v3913, %v3932
        %v3978 = vadd.f32 %v3914, %v3934
        %v3979 = vadd.f32 %v3915, %v3936
        %v3980 = vadd.f32 %v3916, %v3938
        %v3981 = vadd.f32 %v3917, %v3940
        %v3982 = vadd.f32 %v3918, %v3942
        %v3983 = vadd.f32 %v3919, %v3944
        %v3984 = vadd.f32 %v3920, %v3946
        %v3985 = vadd.f32 %v3921, %v3948
        %v3986 = vadd.f32 %v3922, %v3950
        %v3987 = vadd.f32 %v3923, %v3952
        %v3988 = vadd.f32 %v3924, %v3954
        %v3989 = vadd.f32 %v3925, %v3956
        %v3990 = vadd.f32 %v3926, %v3958
        %3991 = vrot.lane.b32.xlu0 %v3673, 32
        %v3992 = vpop.permute.xlu0 %3991
        %3993 = vrot.lane.b32.xlu0 %v3677, 32
        %v3994 = vpop.permute.xlu0 %3993
        %3995 = vrot.lane.b32.xlu0 %v3683, 32
        %v3996 = vpop.permute.xlu0 %3995
        %3997 = vrot.lane.b32.xlu0 %v3687, 32
        %v3998 = vpop.permute.xlu0 %3997
        %3999 = vrot.lane.b32.xlu0 %v3693, 32
        %v4000 = vpop.permute.xlu0 %3999
        %4001 = vrot.lane.b32.xlu0 %v3697, 32
        %v4002 = vpop.permute.xlu0 %4001
        %4003 = vrot.lane.b32.xlu0 %v3703, 32
        %v4004 = vpop.permute.xlu0 %4003
        %4005 = vrot.lane.b32.xlu0 %v3707, 32
        %v4006 = vpop.permute.xlu0 %4005
        %4007 = vrot.lane.b32.xlu0 %v3713, 32
        %v4008 = vpop.permute.xlu0 %4007
        %4009 = vrot.lane.b32.xlu0 %v3717, 32
        %v4010 = vpop.permute.xlu0 %4009
        %4011 = vrot.lane.b32.xlu0 %v3723, 32
        %v4012 = vpop.permute.xlu0 %4011
        %4013 = vrot.lane.b32.xlu0 %v3727, 32
        %v4014 = vpop.permute.xlu0 %4013
        %4015 = vrot.lane.b32.xlu0 %v3733, 32
        %v4016 = vpop.permute.xlu0 %4015
        %4017 = vrot.lane.b32.xlu0 %v3737, 32
        %v4018 = vpop.permute.xlu0 %4017
        %4019 = vrot.lane.b32.xlu0 %v3743, 32
        %v4020 = vpop.permute.xlu0 %4019
        %4021 = vrot.lane.b32.xlu0 %v3747, 32
        %v4022 = vpop.permute.xlu0 %4021
        %v4039 = vrot.slane %v3992, 1
        %v4040 = vrot.slane %v3994, 1
        %v4041 = vrot.slane %v3996, 1
        %v4042 = vrot.slane %v3998, 1
        %v4043 = vrot.slane %v4000, 1
        %v4044 = vrot.slane %v4002, 1
        %v4045 = vrot.slane %v4004, 1
        %v4046 = vrot.slane %v4006, 1
        %v4047 = vrot.slane %v4008, 1
        %v4048 = vrot.slane %v4010, 1
        %v4049 = vrot.slane %v4012, 1
        %v4050 = vrot.slane %v4014, 1
        %v4051 = vrot.slane %v4016, 1
        %v4052 = vrot.slane %v4018, 1
        %v4053 = vrot.slane %v4020, 1
        %v4054 = vrot.slane %v4022, 1
        %v4055 = vsel %vm1092, %v4053, %v4054
        %v4056 = vsel %vm1092, %v4052, %v4053
        %v4057 = vsel %vm1092, %v4051, %v4052
        %v4058 = vsel %vm1092, %v4050, %v4051
        %v4059 = vsel %vm1092, %v4049, %v4050
        %v4060 = vsel %vm1092, %v4048, %v4049
        %v4061 = vsel %vm1092, %v4047, %v4048
        %v4062 = vsel %vm1092, %v4046, %v4047
        %v4063 = vsel %vm1092, %v4045, %v4046
        %v4064 = vsel %vm1092, %v4044, %v4045
        %v4065 = vsel %vm1092, %v4043, %v4044
        %v4066 = vsel %vm1092, %v4042, %v4043
        %v4067 = vsel %vm1092, %v4041, %v4042
        %v4068 = vsel %vm1092, %v4040, %v4041
        %v4069 = vsel %vm1092, %v4039, %v4040
        %v4070 = vsel %vm1092, %v4054, %v4039
        %v4071 = vsel %vm1109, %v4069, 0.0
        %v4072 = vsel %vm1110, %v4068, 0.0
        %v4073 = vsel %vm1109, %v4067, 0.0
        %v4074 = vsel %vm1110, %v4066, 0.0
        %v4075 = vsel %vm1109, %v4065, 0.0
        %v4076 = vsel %vm1110, %v4064, 0.0
        %v4077 = vsel %vm1109, %v4063, 0.0
        %v4078 = vsel %vm1110, %v4062, 0.0
        %v4079 = vsel %vm1109, %v4061, 0.0
        %v4080 = vsel %vm1110, %v4060, 0.0
        %v4081 = vsel %vm1109, %v4059, 0.0
        %v4082 = vsel %vm1110, %v4058, 0.0
        %v4083 = vsel %vm1109, %v4057, 0.0
        %v4084 = vsel %vm1110, %v4056, 0.0
        %v4085 = vsel %vm1109, %v4055, 0.0
        %v4086 = vsel %vm1110, %v4070, 0.0
        %v4087 = vadd.f32 %v3975, %v4071
        %v4088 = vadd.f32 %v3976, %v4072
        %v4089 = vadd.f32 %v3977, %v4073
        %v4090 = vadd.f32 %v3978, %v4074
        %v4091 = vadd.f32 %v3979, %v4075
        %v4092 = vadd.f32 %v3980, %v4076
        %v4093 = vadd.f32 %v3981, %v4077
        %v4094 = vadd.f32 %v3982, %v4078
        %v4095 = vadd.f32 %v3983, %v4079
        %v4096 = vadd.f32 %v3984, %v4080
        %v4097 = vadd.f32 %v3985, %v4081
        %v4098 = vadd.f32 %v3986, %v4082
        %v4099 = vadd.f32 %v3987, %v4083
        %v4100 = vadd.f32 %v3988, %v4084
        %v4101 = vadd.f32 %v3989, %v4085
        %v4102 = vadd.f32 %v3990, %v4086
        %v4103 = vrot.slane %v3675, 2
        %v4104 = vrot.slane %v3679, 2
        %v4105 = vrot.slane %v3685, 2
        %v4106 = vrot.slane %v3689, 2
        %v4107 = vrot.slane %v3695, 2
        %v4108 = vrot.slane %v3699, 2
        %v4109 = vrot.slane %v3705, 2
        %v4110 = vrot.slane %v3709, 2
        %v4111 = vrot.slane %v3715, 2
        %v4112 = vrot.slane %v3719, 2
        %v4113 = vrot.slane %v3725, 2
        %v4114 = vrot.slane %v3729, 2
        %v4115 = vrot.slane %v3735, 2
        %v4116 = vrot.slane %v3739, 2
        %v4117 = vrot.slane %v3745, 2
        %v4118 = vrot.slane %v3749, 2
        %v4119 = vsel %vm1705, %v4117, %v4118
        %v4120 = vsel %vm1705, %v4116, %v4117
        %v4121 = vsel %vm1705, %v4115, %v4116
        %v4122 = vsel %vm1705, %v4114, %v4115
        %v4123 = vsel %vm1705, %v4113, %v4114
        %v4124 = vsel %vm1705, %v4112, %v4113
        %v4125 = vsel %vm1705, %v4111, %v4112
        %v4126 = vsel %vm1705, %v4110, %v4111
        %v4127 = vsel %vm1705, %v4109, %v4110
        %v4128 = vsel %vm1705, %v4108, %v4109
        %v4129 = vsel %vm1705, %v4107, %v4108
        %v4130 = vsel %vm1705, %v4106, %v4107
        %v4131 = vsel %vm1705, %v4105, %v4106
        %v4132 = vsel %vm1705, %v4104, %v4105
        %v4133 = vsel %vm1705, %v4103, %v4104
        %v4134 = vsel %vm1705, %v4118, %v4103
        %v4135 = vsel %vm1722, %v4133, 0.0
        %v4136 = vsel %vm1723, %v4132, 0.0
        %v4137 = vsel %vm1722, %v4131, 0.0
        %v4138 = vsel %vm1723, %v4130, 0.0
        %v4139 = vsel %vm1722, %v4129, 0.0
        %v4140 = vsel %vm1723, %v4128, 0.0
        %v4141 = vsel %vm1722, %v4127, 0.0
        %v4142 = vsel %vm1723, %v4126, 0.0
        %v4143 = vsel %vm1722, %v4125, 0.0
        %v4144 = vsel %vm1723, %v4124, 0.0
        %v4145 = vsel %vm1722, %v4123, 0.0
        %v4146 = vsel %vm1723, %v4122, 0.0
        %v4147 = vsel %vm1722, %v4121, 0.0
        %v4148 = vsel %vm1723, %v4120, 0.0
        %v4149 = vsel %vm1722, %v4119, 0.0
        %v4150 = vsel %vm1723, %v4134, 0.0
        %v4151 = vadd.f32 %v4087, %v4135
        %v4152 = vadd.f32 %v4088, %v4136
        %v4153 = vadd.f32 %v4089, %v4137
        %v4154 = vadd.f32 %v4090, %v4138
        %v4155 = vadd.f32 %v4091, %v4139
        %v4156 = vadd.f32 %v4092, %v4140
        %v4157 = vadd.f32 %v4093, %v4141
        %v4158 = vadd.f32 %v4094, %v4142
        %v4159 = vadd.f32 %v4095, %v4143
        %v4160 = vadd.f32 %v4096, %v4144
        %v4161 = vadd.f32 %v4097, %v4145
        %v4162 = vadd.f32 %v4098, %v4146
        %v4163 = vadd.f32 %v4099, %v4147
        %v4164 = vadd.f32 %v4100, %v4148
        %v4165 = vadd.f32 %v4101, %v4149
        %v4166 = vadd.f32 %v4102, %v4150
        %v4167 = vld [vmem:[%s12] sm:$0x1]
        %v4169 = vlaneseq
        %v4170 = vshrl.u32 %v4169, 7
        %v4171 = vsub.s32 0, %v4170
        %v4172 = vrot.slane %v4167, %v4171
        %v4174 = vadd.f32 %v4151, %v4172
        %v4175 = vadd.f32 %v4152, %v4172
        %v4176 = vadd.f32 %v4153, %v4172
        %v4177 = vadd.f32 %v4154, %v4172
        %v4178 = vadd.f32 %v4155, %v4172
        %v4179 = vadd.f32 %v4156, %v4172
        %v4180 = vadd.f32 %v4157, %v4172
        %v4181 = vadd.f32 %v4158, %v4172
        %v4182 = vadd.f32 %v4159, %v4172
        %v4183 = vadd.f32 %v4160, %v4172
        %v4184 = vadd.f32 %v4161, %v4172
        %v4185 = vadd.f32 %v4162, %v4172
        %v4186 = vadd.f32 %v4163, %v4172
        %v4187 = vadd.f32 %v4164, %v4172
        %v4188 = vadd.f32 %v4165, %v4172
        %v4189 = vadd.f32 %v4166, %v4172
        %v4190 = vmul.f32 %v4174, %v1169
        %v4191 = vmul.f32 %v4175, %v1174
        %v4192 = vmul.f32 %v4176, %v1179
        %v4193 = vmul.f32 %v4177, %v1184
        %v4194 = vmul.f32 %v4178, %v1189
        %v4195 = vmul.f32 %v4179, %v1194
        %v4196 = vmul.f32 %v4180, %v1199
        %v4197 = vmul.f32 %v4181, %v1204
        %v4198 = vmul.f32 %v4182, %v1209
        %v4199 = vmul.f32 %v4183, %v1214
        %v4200 = vmul.f32 %v4184, %v1219
        %v4201 = vmul.f32 %v4185, %v1224
        %v4202 = vmul.f32 %v4186, %v1229
        %v4203 = vmul.f32 %v4187, %v1234
        %v4204 = vmul.f32 %v4188, %v1239
        %v4205 = vmul.f32 %v4189, %v1244
        %v4206 = vmax.f32 %v4190, 0.0
        %v4207 = vmax.f32 %v4191, 0.0
        %v4208 = vmax.f32 %v4192, 0.0
        %v4209 = vmax.f32 %v4193, 0.0
        %v4210 = vmax.f32 %v4194, 0.0
        %v4211 = vmax.f32 %v4195, 0.0
        %v4212 = vmax.f32 %v4196, 0.0
        %v4213 = vmax.f32 %v4197, 0.0
        %v4214 = vmax.f32 %v4198, 0.0
        %v4215 = vmax.f32 %v4199, 0.0
        %v4216 = vmax.f32 %v4200, 0.0
        %v4217 = vmax.f32 %v4201, 0.0
        %v4218 = vmax.f32 %v4202, 0.0
        %v4219 = vmax.f32 %v4203, 0.0
        %v4220 = vmax.f32 %v4204, 0.0
        %v4221 = vmax.f32 %v4205, 0.0
        %v4222 = vpack.c.bf16 %v4207, %v4206
        %v4223 = vpack.c.bf16 %v4209, %v4208
        %v4224 = vpack.c.bf16 %v4211, %v4210
        %v4225 = vpack.c.bf16 %v4213, %v4212
        %v4226 = vpack.c.bf16 %v4215, %v4214
        %v4227 = vpack.c.bf16 %v4217, %v4216
        %v4228 = vpack.c.bf16 %v4219, %v4218
        %v4229 = vpack.c.bf16 %v4221, %v4220
        %v4230 = vld [vmem:[%s13] sm:$0xf]
        %v4231 = vld [vmem:[%s13 + $0x4] sm:$0xf]
        %v4232 = vld [vmem:[%s13 + $0x8] sm:$0xf]
        %v4233 = vld [vmem:[%s13 + $0xc] sm:$0xf]
        %v4234 = vld [vmem:[%s13 + $0x10] sm:$0xf]
        %v4235 = vld [vmem:[%s13 + $0x14] sm:$0xf]
        %v4236 = vld [vmem:[%s13 + $0x18] sm:$0xf]
        %v4237 = vld [vmem:[%s13 + $0x1c] sm:$0xf]
        %v4238 = vld [vmem:[%s13 + $0x20] sm:$0xf]
        %v4239 = vld [vmem:[%s13 + $0x24] sm:$0xf]
        %v4244 = vunpack.c.l.b16 %v4236
        %v4245 = vunpack.c.l.b16 %v4237
        %v4246 = vunpack.c.l.b16 %v4238
        %v4247 = vunpack.c.l.b16 %v4239
        %v4248 = vpack.c.b16 %v4245, %v4244
        %v4249 = vpack.c.b16 %v4247, %v4246
        %v4253 = vsel %vm1835, %v3445, 0
        %v4256 = vsel %vm1835, %v3446, 0
        %v4259 = vsel %vm1835, %v3447, 0
        %v4262 = vsel %vm1835, %v3448, 0
        %v4265 = vsel %vm1835, %v3449, 0
        %v4268 = vsel %vm1835, %v3450, 0
        %v4271 = vsel %vm1835, %v3451, 0
        %v4274 = vsel %vm1835, %v3452, 0
        %4276 = vmatprep.subr.bf16.mxu0 0
        %4277 = vmatpush1.bf16.msra.mxu0 0
        %4278 = vmatprep.subr.bf16.mxu0 0
        %4279 = vmatpush1.bf16.msra.mxu0 0
        %4280 = vmatprep.subr.bf16.mxu0 0
        %4281 = vmatpush1.bf16.msra.mxu0 0
        %4282 = vmatprep.subr.bf16.mxu0 0
        %4283 = vmatpush1.bf16.msra.mxu0 0
        %4284 = vmatprep.subr.bf16.mxu0 0
        %4285 = vmatpush1.bf16.msra.mxu0 0
        %4286 = vmatprep.subr.bf16.mxu0 0
        %4287 = vmatpush1.bf16.msra.mxu0 0
        %4288 = vmatprep.subr.bf16.mxu0 0
        %4289 = vmatpush1.bf16.msra.mxu0 %v4249
        %4290 = vmatprep.subr.bf16.mxu0 0
        %4291 = vmatpush1.bf16.msra.mxu0 %v4248
        %4292 = vmatprep.subr.bf16.mxu0 0
        %4293 = vmatpush2.bf16.msra.mxu0 0
        %4294 = vmatprep.subr.bf16.mxu0 0
        %4295 = vmatpush2.bf16.msra.mxu0 0
        %4296 = vmatprep.subr.bf16.mxu0 0
        %4297 = vmatpush2.bf16.msra.mxu0 0
        %4298 = vmatprep.subr.bf16.mxu0 0
        %4299 = vmatpush2.bf16.msra.mxu0 0
        %4300 = vmatprep.subr.bf16.mxu0 0
        %4301 = vmatpush2.bf16.msra.mxu0 0
        %4302 = vmatprep.subr.bf16.mxu0 0
        %4303 = vmatpush2.bf16.msra.mxu0 0
        %4304 = vmatprep.subr.bf16.mxu0 0
        %4305 = vmatpush2.bf16.msra.mxu0 0
        %4306 = vmatprep.subr.bf16.mxu0 0
        %4307 = vmatpush2.bf16.msra.mxu0 0
        %4308 = vmatprep.mubr.bf16.mxu0 0
        %4309 = vmatmul.mubr.bf16.gmra.mxu0 %v4253
        %v4310 = vpop.f32.mrf.mxu0
        %v4311 = vadd.f32 0.0, %v4310
        %v4312 = vpop.f32.mrf.mxu0
        %v4313 = vpop.f32.mrf.mxu0
        %v4314 = vadd.f32 0.0, %v4313
        %v4315 = vpop.f32.mrf.mxu0
        %4316 = vmatprep.mubr.bf16.mxu0 0
        %4317 = vmatmul.mubr.bf16.gmra.mxu0 %v4256
        %v4318 = vpop.f32.mrf.mxu0
        %v4319 = vadd.f32 0.0, %v4318
        %v4320 = vpop.f32.mrf.mxu0
        %v4321 = vpop.f32.mrf.mxu0
        %v4322 = vadd.f32 0.0, %v4321
        %v4323 = vpop.f32.mrf.mxu0
        %4324 = vmatprep.mubr.bf16.mxu0 0
        %4325 = vmatmul.mubr.bf16.gmra.mxu0 %v4259
        %v4326 = vpop.f32.mrf.mxu0
        %v4327 = vadd.f32 0.0, %v4326
        %v4328 = vpop.f32.mrf.mxu0
        %v4329 = vpop.f32.mrf.mxu0
        %v4330 = vadd.f32 0.0, %v4329
        %v4331 = vpop.f32.mrf.mxu0
        %4332 = vmatprep.mubr.bf16.mxu0 0
        %4333 = vmatmul.mubr.bf16.gmra.mxu0 %v4262
        %v4334 = vpop.f32.mrf.mxu0
        %v4335 = vadd.f32 0.0, %v4334
        %v4336 = vpop.f32.mrf.mxu0
        %v4337 = vpop.f32.mrf.mxu0
        %v4338 = vadd.f32 0.0, %v4337
        %v4339 = vpop.f32.mrf.mxu0
        %4340 = vmatprep.mubr.bf16.mxu0 0
        %4341 = vmatmul.mubr.bf16.gmra.mxu0 %v4265
        %v4342 = vpop.f32.mrf.mxu0
        %v4343 = vadd.f32 0.0, %v4342
        %v4344 = vpop.f32.mrf.mxu0
        %v4345 = vpop.f32.mrf.mxu0
        %v4346 = vadd.f32 0.0, %v4345
        %v4347 = vpop.f32.mrf.mxu0
        %4348 = vmatprep.mubr.bf16.mxu0 0
        %4349 = vmatmul.mubr.bf16.gmra.mxu0 %v4268
        %v4350 = vpop.f32.mrf.mxu0
        %v4351 = vadd.f32 0.0, %v4350
        %v4352 = vpop.f32.mrf.mxu0
        %v4353 = vpop.f32.mrf.mxu0
        %v4354 = vadd.f32 0.0, %v4353
        %v4355 = vpop.f32.mrf.mxu0
        %4356 = vmatprep.mubr.bf16.mxu0 0
        %4357 = vmatmul.mubr.bf16.gmra.mxu0 %v4271
        %v4358 = vpop.f32.mrf.mxu0
        %v4359 = vadd.f32 0.0, %v4358
        %v4360 = vpop.f32.mrf.mxu0
        %v4361 = vpop.f32.mrf.mxu0
        %v4362 = vadd.f32 0.0, %v4361
        %v4363 = vpop.f32.mrf.mxu0
        %4364 = vmatprep.mubr.bf16.mxu0 0
        %4365 = vmatmul.mubr.bf16.gmra.mxu0 %v4274
        %v4366 = vpop.f32.mrf.mxu0
        %v4367 = vadd.f32 0.0, %v4366
        %v4368 = vpop.f32.mrf.mxu0
        %v4369 = vpop.f32.mrf.mxu0
        %v4370 = vadd.f32 0.0, %v4369
        %v4371 = vpop.f32.mrf.mxu0
        %4372 = vdwg.mxu0
        %v4379 = vunpack.c.l.b16 %v4230
        %v4380 = vunpack.c.l.b16 %v4231
        %v4381 = vunpack.c.l.b16 %v4232
        %v4382 = vunpack.c.l.b16 %v4233
        %v4383 = vunpack.c.l.b16 %v4234
        %v4384 = vunpack.c.l.b16 %v4235
        %v4385 = vpack.c.b16 %v4380, %v4379
        %v4386 = vpack.c.b16 %v4382, %v4381
        %v4387 = vpack.c.b16 %v4384, %v4383
        %4391 = vmatprep.subr.bf16.mxu0 0
        %4392 = vmatpush1.bf16.msra.mxu0 0
        %4393 = vmatprep.subr.bf16.mxu0 0
        %4394 = vmatpush1.bf16.msra.mxu0 0
        %4395 = vmatprep.subr.bf16.mxu0 0
        %4396 = vmatpush1.bf16.msra.mxu0 0
        %4397 = vmatprep.subr.bf16.mxu0 0
        %4398 = vmatpush1.bf16.msra.mxu0 0
        %4399 = vmatprep.subr.bf16.mxu0 0
        %4400 = vmatpush1.bf16.msra.mxu0 0
        %4401 = vmatprep.subr.bf16.mxu0 0
        %4402 = vmatpush1.bf16.msra.mxu0 %v4387
        %4403 = vmatprep.subr.bf16.mxu0 0
        %4404 = vmatpush1.bf16.msra.mxu0 %v4386
        %4405 = vmatprep.subr.bf16.mxu0 0
        %4406 = vmatpush1.bf16.msra.mxu0 %v4385
        %4407 = vmatprep.subr.bf16.mxu0 0
        %4408 = vmatpush2.bf16.msra.mxu0 0
        %4409 = vmatprep.subr.bf16.mxu0 0
        %4410 = vmatpush2.bf16.msra.mxu0 0
        %4411 = vmatprep.subr.bf16.mxu0 0
        %4412 = vmatpush2.bf16.msra.mxu0 0
        %4413 = vmatprep.subr.bf16.mxu0 0
        %4414 = vmatpush2.bf16.msra.mxu0 0
        %4415 = vmatprep.subr.bf16.mxu0 0
        %4416 = vmatpush2.bf16.msra.mxu0 0
        %4417 = vmatprep.subr.bf16.mxu0 0
        %4418 = vmatpush2.bf16.msra.mxu0 0
        %4419 = vmatprep.subr.bf16.mxu0 0
        %4420 = vmatpush2.bf16.msra.mxu0 0
        %4421 = vmatprep.subr.bf16.mxu0 0
        %4422 = vmatpush2.bf16.msra.mxu0 0
        %4423 = vmatprep.mubr.bf16.mxu0 0
        %4424 = vmatmul.mubr.bf16.gmra.mxu0 %v758
        %v4425 = vpop.f32.mrf.mxu0
        %v4426 = vadd.f32 %v4311, %v4425
        %v4427 = vpop.f32.mrf.mxu0
        %v4428 = vpop.f32.mrf.mxu0
        %v4429 = vadd.f32 %v4314, %v4428
        %v4430 = vpop.f32.mrf.mxu0
        %4431 = vmatprep.mubr.bf16.mxu0 0
        %4432 = vmatmul.mubr.bf16.gmra.mxu0 %v761
        %v4433 = vpop.f32.mrf.mxu0
        %v4434 = vadd.f32 %v4319, %v4433
        %v4435 = vpop.f32.mrf.mxu0
        %v4436 = vpop.f32.mrf.mxu0
        %v4437 = vadd.f32 %v4322, %v4436
        %v4438 = vpop.f32.mrf.mxu0
        %4439 = vmatprep.mubr.bf16.mxu0 0
        %4440 = vmatmul.mubr.bf16.gmra.mxu0 %v764
        %v4441 = vpop.f32.mrf.mxu0
        %v4442 = vadd.f32 %v4327, %v4441
        %v4443 = vpop.f32.mrf.mxu0
        %v4444 = vpop.f32.mrf.mxu0
        %v4445 = vadd.f32 %v4330, %v4444
        %v4446 = vpop.f32.mrf.mxu0
        %4447 = vmatprep.mubr.bf16.mxu0 0
        %4448 = vmatmul.mubr.bf16.gmra.mxu0 %v767
        %v4449 = vpop.f32.mrf.mxu0
        %v4450 = vadd.f32 %v4335, %v4449
        %v4451 = vpop.f32.mrf.mxu0
        %v4452 = vpop.f32.mrf.mxu0
        %v4453 = vadd.f32 %v4338, %v4452
        %v4454 = vpop.f32.mrf.mxu0
        %4455 = vmatprep.mubr.bf16.mxu0 0
        %4456 = vmatmul.mubr.bf16.gmra.mxu0 %v770
        %v4457 = vpop.f32.mrf.mxu0
        %v4458 = vadd.f32 %v4343, %v4457
        %v4459 = vpop.f32.mrf.mxu0
        %v4460 = vpop.f32.mrf.mxu0
        %v4461 = vadd.f32 %v4346, %v4460
        %v4462 = vpop.f32.mrf.mxu0
        %4463 = vmatprep.mubr.bf16.mxu0 0
        %4464 = vmatmul.mubr.bf16.gmra.mxu0 %v773
        %v4465 = vpop.f32.mrf.mxu0
        %v4466 = vadd.f32 %v4351, %v4465
        %v4467 = vpop.f32.mrf.mxu0
        %v4468 = vpop.f32.mrf.mxu0
        %v4469 = vadd.f32 %v4354, %v4468
        %v4470 = vpop.f32.mrf.mxu0
        %4471 = vmatprep.mubr.bf16.mxu0 0
        %4472 = vmatmul.mubr.bf16.gmra.mxu0 %v776
        %v4473 = vpop.f32.mrf.mxu0
        %v4474 = vadd.f32 %v4359, %v4473
        %v4475 = vpop.f32.mrf.mxu0
        %v4476 = vpop.f32.mrf.mxu0
        %v4477 = vadd.f32 %v4362, %v4476
        %v4478 = vpop.f32.mrf.mxu0
        %4479 = vmatprep.mubr.bf16.mxu0 0
        %4480 = vmatmul.mubr.bf16.gmra.mxu0 %v779
        %v4481 = vpop.f32.mrf.mxu0
        %v4482 = vadd.f32 %v4367, %v4481
        %v4483 = vpop.f32.mrf.mxu0
        %v4484 = vpop.f32.mrf.mxu0
        %v4485 = vadd.f32 %v4370, %v4484
        %v4486 = vpop.f32.mrf.mxu0
        %4487 = vdwg.mxu0
        %v4488 = vld [vmem:[%s13 + $0x28] sm:$0xf]
        %v4489 = vld [vmem:[%s13 + $0x2c] sm:$0xf]
        %v4490 = vld [vmem:[%s13 + $0x30] sm:$0xf]
        %v4491 = vld [vmem:[%s13 + $0x34] sm:$0xf]
        %v4496 = vunpack.c.l.b16 %v4488
        %v4497 = vunpack.c.l.b16 %v4489
        %v4498 = vunpack.c.l.b16 %v4490
        %v4499 = vunpack.c.l.b16 %v4491
        %v4500 = vpack.c.b16 %v4497, %v4496
        %v4501 = vpack.c.b16 %v4499, %v4498
        %v4505 = vsel %vm1835, %v4222, 0
        %v4508 = vsel %vm1835, %v4223, 0
        %v4511 = vsel %vm1835, %v4224, 0
        %v4514 = vsel %vm1835, %v4225, 0
        %v4517 = vsel %vm1835, %v4226, 0
        %v4520 = vsel %vm1835, %v4227, 0
        %v4523 = vsel %vm1835, %v4228, 0
        %v4526 = vsel %vm1835, %v4229, 0
        %4528 = vmatprep.subr.bf16.mxu0 0
        %4529 = vmatpush1.bf16.msra.mxu0 0
        %4530 = vmatprep.subr.bf16.mxu0 0
        %4531 = vmatpush1.bf16.msra.mxu0 0
        %4532 = vmatprep.subr.bf16.mxu0 0
        %4533 = vmatpush1.bf16.msra.mxu0 0
        %4534 = vmatprep.subr.bf16.mxu0 0
        %4535 = vmatpush1.bf16.msra.mxu0 0
        %4536 = vmatprep.subr.bf16.mxu0 0
        %4537 = vmatpush1.bf16.msra.mxu0 0
        %4538 = vmatprep.subr.bf16.mxu0 0
        %4539 = vmatpush1.bf16.msra.mxu0 0
        %4540 = vmatprep.subr.bf16.mxu0 0
        %4541 = vmatpush1.bf16.msra.mxu0 %v4501
        %4542 = vmatprep.subr.bf16.mxu0 0
        %4543 = vmatpush1.bf16.msra.mxu0 %v4500
        %4544 = vmatprep.subr.bf16.mxu0 0
        %4545 = vmatpush2.bf16.msra.mxu0 0
        %4546 = vmatprep.subr.bf16.mxu0 0
        %4547 = vmatpush2.bf16.msra.mxu0 0
        %4548 = vmatprep.subr.bf16.mxu0 0
        %4549 = vmatpush2.bf16.msra.mxu0 0
        %4550 = vmatprep.subr.bf16.mxu0 0
        %4551 = vmatpush2.bf16.msra.mxu0 0
        %4552 = vmatprep.subr.bf16.mxu0 0
        %4553 = vmatpush2.bf16.msra.mxu0 0
        %4554 = vmatprep.subr.bf16.mxu0 0
        %4555 = vmatpush2.bf16.msra.mxu0 0
        %4556 = vmatprep.subr.bf16.mxu0 0
        %4557 = vmatpush2.bf16.msra.mxu0 0
        %4558 = vmatprep.subr.bf16.mxu0 0
        %4559 = vmatpush2.bf16.msra.mxu0 0
        %4560 = vmatprep.mubr.bf16.mxu0 0
        %4561 = vmatmul.mubr.bf16.gmra.mxu0 %v4505
        %v4562 = vpop.f32.mrf.mxu0
        %v4563 = vadd.f32 0.0, %v4562
        %v4564 = vpop.f32.mrf.mxu0
        %v4565 = vpop.f32.mrf.mxu0
        %v4566 = vadd.f32 0.0, %v4565
        %v4567 = vpop.f32.mrf.mxu0
        %4568 = vmatprep.mubr.bf16.mxu0 0
        %4569 = vmatmul.mubr.bf16.gmra.mxu0 %v4508
        %v4570 = vpop.f32.mrf.mxu0
        %v4571 = vadd.f32 0.0, %v4570
        %v4572 = vpop.f32.mrf.mxu0
        %v4573 = vpop.f32.mrf.mxu0
        %v4574 = vadd.f32 0.0, %v4573
        %v4575 = vpop.f32.mrf.mxu0
        %4576 = vmatprep.mubr.bf16.mxu0 0
        %4577 = vmatmul.mubr.bf16.gmra.mxu0 %v4511
        %v4578 = vpop.f32.mrf.mxu0
        %v4579 = vadd.f32 0.0, %v4578
        %v4580 = vpop.f32.mrf.mxu0
        %v4581 = vpop.f32.mrf.mxu0
        %v4582 = vadd.f32 0.0, %v4581
        %v4583 = vpop.f32.mrf.mxu0
        %4584 = vmatprep.mubr.bf16.mxu0 0
        %4585 = vmatmul.mubr.bf16.gmra.mxu0 %v4514
        %v4586 = vpop.f32.mrf.mxu0
        %v4587 = vadd.f32 0.0, %v4586
        %v4588 = vpop.f32.mrf.mxu0
        %v4589 = vpop.f32.mrf.mxu0
        %v4590 = vadd.f32 0.0, %v4589
        %v4591 = vpop.f32.mrf.mxu0
        %4592 = vmatprep.mubr.bf16.mxu0 0
        %4593 = vmatmul.mubr.bf16.gmra.mxu0 %v4517
        %v4594 = vpop.f32.mrf.mxu0
        %v4595 = vadd.f32 0.0, %v4594
        %v4596 = vpop.f32.mrf.mxu0
        %v4597 = vpop.f32.mrf.mxu0
        %v4598 = vadd.f32 0.0, %v4597
        %v4599 = vpop.f32.mrf.mxu0
        %4600 = vmatprep.mubr.bf16.mxu0 0
        %4601 = vmatmul.mubr.bf16.gmra.mxu0 %v4520
        %v4602 = vpop.f32.mrf.mxu0
        %v4603 = vadd.f32 0.0, %v4602
        %v4604 = vpop.f32.mrf.mxu0
        %v4605 = vpop.f32.mrf.mxu0
        %v4606 = vadd.f32 0.0, %v4605
        %v4607 = vpop.f32.mrf.mxu0
        %4608 = vmatprep.mubr.bf16.mxu0 0
        %4609 = vmatmul.mubr.bf16.gmra.mxu0 %v4523
        %v4610 = vpop.f32.mrf.mxu0
        %v4611 = vadd.f32 0.0, %v4610
        %v4612 = vpop.f32.mrf.mxu0
        %v4613 = vpop.f32.mrf.mxu0
        %v4614 = vadd.f32 0.0, %v4613
        %v4615 = vpop.f32.mrf.mxu0
        %4616 = vmatprep.mubr.bf16.mxu0 0
        %4617 = vmatmul.mubr.bf16.gmra.mxu0 %v4526
        %v4618 = vpop.f32.mrf.mxu0
        %v4619 = vadd.f32 0.0, %v4618
        %v4620 = vpop.f32.mrf.mxu0
        %v4621 = vpop.f32.mrf.mxu0
        %v4622 = vadd.f32 0.0, %v4621
        %v4623 = vpop.f32.mrf.mxu0
        %4624 = vdwg.mxu0
        %v4625 = vadd.f32 %v4426, %v4563
        %v4626 = vadd.f32 %v4429, %v4566
        %v4627 = vadd.f32 %v4434, %v4571
        %v4628 = vadd.f32 %v4437, %v4574
        %v4629 = vadd.f32 %v4442, %v4579
        %v4630 = vadd.f32 %v4445, %v4582
        %v4631 = vadd.f32 %v4450, %v4587
        %v4632 = vadd.f32 %v4453, %v4590
        %v4633 = vadd.f32 %v4458, %v4595
        %v4634 = vadd.f32 %v4461, %v4598
        %v4635 = vadd.f32 %v4466, %v4603
        %v4636 = vadd.f32 %v4469, %v4606
        %v4637 = vadd.f32 %v4474, %v4611
        %v4638 = vadd.f32 %v4477, %v4614
        %v4639 = vadd.f32 %v4482, %v4619
        %v4640 = vadd.f32 %v4485, %v4622
        %v4641 = vld [vmem:[%s14] sm:$0x1]
        %v4643 = vlaneseq
        %v4644 = vshrl.u32 %v4643, 7
        %v4645 = vsub.s32 0, %v4644
        %v4646 = vrot.slane %v4641, %v4645
        %v4648 = vadd.f32 %v4625, %v4646
        %v4649 = vadd.f32 %v4626, %v4646
        %v4650 = vadd.f32 %v4627, %v4646
        %v4651 = vadd.f32 %v4628, %v4646
        %v4652 = vadd.f32 %v4629, %v4646
        %v4653 = vadd.f32 %v4630, %v4646
        %v4654 = vadd.f32 %v4631, %v4646
        %v4655 = vadd.f32 %v4632, %v4646
        %v4656 = vadd.f32 %v4633, %v4646
        %v4657 = vadd.f32 %v4634, %v4646
        %v4658 = vadd.f32 %v4635, %v4646
        %v4659 = vadd.f32 %v4636, %v4646
        %v4660 = vadd.f32 %v4637, %v4646
        %v4661 = vadd.f32 %v4638, %v4646
        %v4662 = vadd.f32 %v4639, %v4646
        %v4663 = vadd.f32 %v4640, %v4646
        %v4664 = vmul.f32 %v4648, %v1169
        %v4665 = vmul.f32 %v4649, %v1174
        %v4666 = vmul.f32 %v4650, %v1179
        %v4667 = vmul.f32 %v4651, %v1184
        %v4668 = vmul.f32 %v4652, %v1189
        %v4669 = vmul.f32 %v4653, %v1194
        %v4670 = vmul.f32 %v4654, %v1199
        %v4671 = vmul.f32 %v4655, %v1204
        %v4672 = vmul.f32 %v4656, %v1209
        %v4673 = vmul.f32 %v4657, %v1214
        %v4674 = vmul.f32 %v4658, %v1219
        %v4675 = vmul.f32 %v4659, %v1224
        %v4676 = vmul.f32 %v4660, %v1229
        %v4677 = vmul.f32 %v4661, %v1234
        %v4678 = vmul.f32 %v4662, %v1239
        %v4679 = vmul.f32 %v4663, %v1244
        %v4680 = vmax.f32 %v4664, 0.0
        %v4681 = vmax.f32 %v4665, 0.0
        %v4682 = vmax.f32 %v4666, 0.0
        %v4683 = vmax.f32 %v4667, 0.0
        %v4684 = vmax.f32 %v4668, 0.0
        %v4685 = vmax.f32 %v4669, 0.0
        %v4686 = vmax.f32 %v4670, 0.0
        %v4687 = vmax.f32 %v4671, 0.0
        %v4688 = vmax.f32 %v4672, 0.0
        %v4689 = vmax.f32 %v4673, 0.0
        %v4690 = vmax.f32 %v4674, 0.0
        %v4691 = vmax.f32 %v4675, 0.0
        %v4692 = vmax.f32 %v4676, 0.0
        %v4693 = vmax.f32 %v4677, 0.0
        %v4694 = vmax.f32 %v4678, 0.0
        %v4695 = vmax.f32 %v4679, 0.0
        %vm4696 = vcmask 523264
        %v4697 = vsel %vm4696, %v4680, 0.0
        %4698 = vadd.xlane.f32.xlu0 %v4697
        %v4699 = vpop.xlane.xlu0 %4698
        %v4700 = vsel %vm4696, %v4681, 0.0
        %4701 = vadd.xlane.f32.xlu0 %v4700
        %v4702 = vpop.xlane.xlu0 %4701
        %v4703 = vsel %vm4696, %v4682, 0.0
        %4704 = vadd.xlane.f32.xlu0 %v4703
        %v4705 = vpop.xlane.xlu0 %4704
        %v4706 = vsel %vm4696, %v4683, 0.0
        %4707 = vadd.xlane.f32.xlu0 %v4706
        %v4708 = vpop.xlane.xlu0 %4707
        %v4709 = vsel %vm4696, %v4684, 0.0
        %4710 = vadd.xlane.f32.xlu0 %v4709
        %v4711 = vpop.xlane.xlu0 %4710
        %v4712 = vsel %vm4696, %v4685, 0.0
        %4713 = vadd.xlane.f32.xlu0 %v4712
        %v4714 = vpop.xlane.xlu0 %4713
        %v4715 = vsel %vm4696, %v4686, 0.0
        %4716 = vadd.xlane.f32.xlu0 %v4715
        %v4717 = vpop.xlane.xlu0 %4716
        %v4718 = vsel %vm4696, %v4687, 0.0
        %4719 = vadd.xlane.f32.xlu0 %v4718
        %v4720 = vpop.xlane.xlu0 %4719
        %v4721 = vsel %vm4696, %v4688, 0.0
        %4722 = vadd.xlane.f32.xlu0 %v4721
        %v4723 = vpop.xlane.xlu0 %4722
        %v4724 = vsel %vm4696, %v4689, 0.0
        %4725 = vadd.xlane.f32.xlu0 %v4724
        %v4726 = vpop.xlane.xlu0 %4725
        %v4727 = vsel %vm4696, %v4690, 0.0
        %4728 = vadd.xlane.f32.xlu0 %v4727
        %v4729 = vpop.xlane.xlu0 %4728
        %v4730 = vsel %vm4696, %v4691, 0.0
        %4731 = vadd.xlane.f32.xlu0 %v4730
        %v4732 = vpop.xlane.xlu0 %4731
        %v4733 = vsel %vm4696, %v4692, 0.0
        %4734 = vadd.xlane.f32.xlu0 %v4733
        %v4735 = vpop.xlane.xlu0 %4734
        %v4736 = vsel %vm4696, %v4693, 0.0
        %4737 = vadd.xlane.f32.xlu0 %v4736
        %v4738 = vpop.xlane.xlu0 %4737
        %v4739 = vsel %vm4696, %v4694, 0.0
        %4740 = vadd.xlane.f32.xlu0 %v4739
        %v4741 = vpop.xlane.xlu0 %4740
        %v4742 = vsel %vm4696, %v4695, 0.0
        %4743 = vadd.xlane.f32.xlu0 %v4742
        %v4744 = vpop.xlane.xlu0 %4743
        %v4745 = vrcp.pop 64.0
        %v4746 = vmul.f32 %v4699, %v4745
        %v4747 = vmul.f32 %v4702, %v4745
        %v4748 = vmul.f32 %v4705, %v4745
        %v4749 = vmul.f32 %v4708, %v4745
        %v4750 = vmul.f32 %v4711, %v4745
        %v4751 = vmul.f32 %v4714, %v4745
        %v4752 = vmul.f32 %v4717, %v4745
        %v4753 = vmul.f32 %v4720, %v4745
        %v4754 = vmul.f32 %v4723, %v4745
        %v4755 = vmul.f32 %v4726, %v4745
        %v4756 = vmul.f32 %v4729, %v4745
        %v4757 = vmul.f32 %v4732, %v4745
        %v4758 = vmul.f32 %v4735, %v4745
        %v4759 = vmul.f32 %v4738, %v4745
        %v4760 = vmul.f32 %v4741, %v4745
        %v4761 = vmul.f32 %v4744, %v4745
        %v4762 = vsub.f32 %v4680, %v4746
        %v4763 = vsub.f32 %v4681, %v4747
        %v4764 = vsub.f32 %v4682, %v4748
        %v4765 = vsub.f32 %v4683, %v4749
        %v4766 = vsub.f32 %v4684, %v4750
        %v4767 = vsub.f32 %v4685, %v4751
        %v4768 = vsub.f32 %v4686, %v4752
        %v4769 = vsub.f32 %v4687, %v4753
        %v4770 = vsub.f32 %v4688, %v4754
        %v4771 = vsub.f32 %v4689, %v4755
        %v4772 = vsub.f32 %v4690, %v4756
        %v4773 = vsub.f32 %v4691, %v4757
        %v4774 = vsub.f32 %v4692, %v4758
        %v4775 = vsub.f32 %v4693, %v4759
        %v4776 = vsub.f32 %v4694, %v4760
        %v4777 = vsub.f32 %v4695, %v4761
        %v4778 = vmul.f32 %v4762, %v4762
        %v4779 = vmul.f32 %v4763, %v4763
        %v4780 = vmul.f32 %v4764, %v4764
        %v4781 = vmul.f32 %v4765, %v4765
        %v4782 = vmul.f32 %v4766, %v4766
        %v4783 = vmul.f32 %v4767, %v4767
        %v4784 = vmul.f32 %v4768, %v4768
        %v4785 = vmul.f32 %v4769, %v4769
        %v4786 = vmul.f32 %v4770, %v4770
        %v4787 = vmul.f32 %v4771, %v4771
        %v4788 = vmul.f32 %v4772, %v4772
        %v4789 = vmul.f32 %v4773, %v4773
        %v4790 = vmul.f32 %v4774, %v4774
        %v4791 = vmul.f32 %v4775, %v4775
        %v4792 = vmul.f32 %v4776, %v4776
        %v4793 = vmul.f32 %v4777, %v4777
        %v4794 = vsel %vm4696, %v4778, 0.0
        %4795 = vadd.xlane.f32.xlu0 %v4794
        %v4796 = vpop.xlane.xlu0 %4795
        %v4797 = vsel %vm4696, %v4779, 0.0
        %4798 = vadd.xlane.f32.xlu0 %v4797
        %v4799 = vpop.xlane.xlu0 %4798
        %v4800 = vsel %vm4696, %v4780, 0.0
        %4801 = vadd.xlane.f32.xlu0 %v4800
        %v4802 = vpop.xlane.xlu0 %4801
        %v4803 = vsel %vm4696, %v4781, 0.0
        %4804 = vadd.xlane.f32.xlu0 %v4803
        %v4805 = vpop.xlane.xlu0 %4804
        %v4806 = vsel %vm4696, %v4782, 0.0
        %4807 = vadd.xlane.f32.xlu0 %v4806
        %v4808 = vpop.xlane.xlu0 %4807
        %v4809 = vsel %vm4696, %v4783, 0.0
        %4810 = vadd.xlane.f32.xlu0 %v4809
        %v4811 = vpop.xlane.xlu0 %4810
        %v4812 = vsel %vm4696, %v4784, 0.0
        %4813 = vadd.xlane.f32.xlu0 %v4812
        %v4814 = vpop.xlane.xlu0 %4813
        %v4815 = vsel %vm4696, %v4785, 0.0
        %4816 = vadd.xlane.f32.xlu0 %v4815
        %v4817 = vpop.xlane.xlu0 %4816
        %v4818 = vsel %vm4696, %v4786, 0.0
        %4819 = vadd.xlane.f32.xlu0 %v4818
        %v4820 = vpop.xlane.xlu0 %4819
        %v4821 = vsel %vm4696, %v4787, 0.0
        %4822 = vadd.xlane.f32.xlu0 %v4821
        %v4823 = vpop.xlane.xlu0 %4822
        %v4824 = vsel %vm4696, %v4788, 0.0
        %4825 = vadd.xlane.f32.xlu0 %v4824
        %v4826 = vpop.xlane.xlu0 %4825
        %v4827 = vsel %vm4696, %v4789, 0.0
        %4828 = vadd.xlane.f32.xlu0 %v4827
        %v4829 = vpop.xlane.xlu0 %4828
        %v4830 = vsel %vm4696, %v4790, 0.0
        %4831 = vadd.xlane.f32.xlu0 %v4830
        %v4832 = vpop.xlane.xlu0 %4831
        %v4833 = vsel %vm4696, %v4791, 0.0
        %4834 = vadd.xlane.f32.xlu0 %v4833
        %v4835 = vpop.xlane.xlu0 %4834
        %v4836 = vsel %vm4696, %v4792, 0.0
        %4837 = vadd.xlane.f32.xlu0 %v4836
        %v4838 = vpop.xlane.xlu0 %4837
        %v4839 = vsel %vm4696, %v4793, 0.0
        %4840 = vadd.xlane.f32.xlu0 %v4839
        %v4841 = vpop.xlane.xlu0 %4840
        %v4842 = vmul.f32 %v4796, %v4745
        %v4843 = vmul.f32 %v4799, %v4745
        %v4844 = vmul.f32 %v4802, %v4745
        %v4845 = vmul.f32 %v4805, %v4745
        %v4846 = vmul.f32 %v4808, %v4745
        %v4847 = vmul.f32 %v4811, %v4745
        %v4848 = vmul.f32 %v4814, %v4745
        %v4849 = vmul.f32 %v4817, %v4745
        %v4850 = vmul.f32 %v4820, %v4745
        %v4851 = vmul.f32 %v4823, %v4745
        %v4852 = vmul.f32 %v4826, %v4745
        %v4853 = vmul.f32 %v4829, %v4745
        %v4854 = vmul.f32 %v4832, %v4745
        %v4855 = vmul.f32 %v4835, %v4745
        %v4856 = vmul.f32 %v4838, %v4745
        %v4857 = vmul.f32 %v4841, %v4745
        %v4858 = vadd.f32 %v4842, 1e-05
        %v4859 = vadd.f32 %v4843, 1e-05
        %v4860 = vadd.f32 %v4844, 1e-05
        %v4861 = vadd.f32 %v4845, 1e-05
        %v4862 = vadd.f32 %v4846, 1e-05
        %v4863 = vadd.f32 %v4847, 1e-05
        %v4864 = vadd.f32 %v4848, 1e-05
        %v4865 = vadd.f32 %v4849, 1e-05
        %v4866 = vadd.f32 %v4850, 1e-05
        %v4867 = vadd.f32 %v4851, 1e-05
        %v4868 = vadd.f32 %v4852, 1e-05
        %v4869 = vadd.f32 %v4853, 1e-05
        %v4870 = vadd.f32 %v4854, 1e-05
        %v4871 = vadd.f32 %v4855, 1e-05
        %v4872 = vadd.f32 %v4856, 1e-05
        %v4873 = vadd.f32 %v4857, 1e-05
        %v4874 = vrsqrt.pop %v4858
        %v4875 = vrsqrt.pop %v4859
        %v4876 = vrsqrt.pop %v4860
        %v4877 = vrsqrt.pop %v4861
        %v4878 = vrsqrt.pop %v4862
        %v4879 = vrsqrt.pop %v4863
        %v4880 = vrsqrt.pop %v4864
        %v4881 = vrsqrt.pop %v4865
        %v4882 = vrsqrt.pop %v4866
        %v4883 = vrsqrt.pop %v4867
        %v4884 = vrsqrt.pop %v4868
        %v4885 = vrsqrt.pop %v4869
        %v4886 = vrsqrt.pop %v4870
        %v4887 = vrsqrt.pop %v4871
        %v4888 = vrsqrt.pop %v4872
        %v4889 = vrsqrt.pop %v4873
        %v4890 = vmul.f32 %v4762, %v4874
        %v4891 = vmul.f32 %v4763, %v4875
        %v4892 = vmul.f32 %v4764, %v4876
        %v4893 = vmul.f32 %v4765, %v4877
        %v4894 = vmul.f32 %v4766, %v4878
        %v4895 = vmul.f32 %v4767, %v4879
        %v4896 = vmul.f32 %v4768, %v4880
        %v4897 = vmul.f32 %v4769, %v4881
        %v4898 = vmul.f32 %v4770, %v4882
        %v4899 = vmul.f32 %v4771, %v4883
        %v4900 = vmul.f32 %v4772, %v4884
        %v4901 = vmul.f32 %v4773, %v4885
        %v4902 = vmul.f32 %v4774, %v4886
        %v4903 = vmul.f32 %v4775, %v4887
        %v4904 = vmul.f32 %v4776, %v4888
        %v4905 = vmul.f32 %v4777, %v4889
        %v4906 = vld [vmem:[%s15] sm:$0x1]
        %v4908 = vlaneseq
        %v4909 = vshrl.u32 %v4908, 7
        %v4910 = vsub.s32 0, %v4909
        %v4911 = vrot.slane %v4906, %v4910
        %v4913 = vmul.f32 %v4890, %v4911
        %v4914 = vmul.f32 %v4891, %v4911
        %v4915 = vmul.f32 %v4892, %v4911
        %v4916 = vmul.f32 %v4893, %v4911
        %v4917 = vmul.f32 %v4894, %v4911
        %v4918 = vmul.f32 %v4895, %v4911
        %v4919 = vmul.f32 %v4896, %v4911
        %v4920 = vmul.f32 %v4897, %v4911
        %v4921 = vmul.f32 %v4898, %v4911
        %v4922 = vmul.f32 %v4899, %v4911
        %v4923 = vmul.f32 %v4900, %v4911
        %v4924 = vmul.f32 %v4901, %v4911
        %v4925 = vmul.f32 %v4902, %v4911
        %v4926 = vmul.f32 %v4903, %v4911
        %v4927 = vmul.f32 %v4904, %v4911
        %v4928 = vmul.f32 %v4905, %v4911
        %v4929 = vld [vmem:[%s16] sm:$0x1]
        %v4931 = vlaneseq
        %v4932 = vshrl.u32 %v4931, 7
        %v4933 = vsub.s32 0, %v4932
        %v4934 = vrot.slane %v4929, %v4933
        %v4936 = vadd.f32 %v4913, %v4934
        %v4937 = vadd.f32 %v4914, %v4934
        %v4938 = vadd.f32 %v4915, %v4934
        %v4939 = vadd.f32 %v4916, %v4934
        %v4940 = vadd.f32 %v4917, %v4934
        %v4941 = vadd.f32 %v4918, %v4934
        %v4942 = vadd.f32 %v4919, %v4934
        %v4943 = vadd.f32 %v4920, %v4934
        %v4944 = vadd.f32 %v4921, %v4934
        %v4945 = vadd.f32 %v4922, %v4934
        %v4946 = vadd.f32 %v4923, %v4934
        %v4947 = vadd.f32 %v4924, %v4934
        %v4948 = vadd.f32 %v4925, %v4934
        %v4949 = vadd.f32 %v4926, %v4934
        %v4950 = vadd.f32 %v4927, %v4934
        %v4951 = vadd.f32 %v4928, %v4934
        %v4952 = vpack.c.bf16 %v4937, %v4936
        %v4953 = vpack.c.bf16 %v4939, %v4938
        %v4954 = vpack.c.bf16 %v4941, %v4940
        %v4955 = vpack.c.bf16 %v4943, %v4942
        %v4956 = vpack.c.bf16 %v4945, %v4944
        %v4957 = vpack.c.bf16 %v4947, %v4946
        %v4958 = vpack.c.bf16 %v4949, %v4948
        %v4959 = vpack.c.bf16 %v4951, %v4950
        %v4960 = vld [vmem:[%s17] sm:$0xf]
        %v4961 = vld [vmem:[%s17 + $0x4] sm:$0xf]
        %v4962 = vld [vmem:[%s17 + $0x8] sm:$0xf]
        %v4963 = vld [vmem:[%s17 + $0xc] sm:$0xf]
        %v4964 = vld [vmem:[%s17 + $0x10] sm:$0xf]
        %v4965 = vld [vmem:[%s17 + $0x14] sm:$0xf]
        %v4966 = vld [vmem:[%s17 + $0x18] sm:$0xf]
        %v4967 = vld [vmem:[%s17 + $0x1c] sm:$0xf]
        %v4968 = vld [vmem:[%s18] sm:$0x1]
        %v4970 = vlaneseq
        %v4971 = vshrl.u32 %v4970, 7
        %v4972 = vsub.s32 0, %v4971
        %v4973 = vrot.slane %v4968, %v4972
        %v4983 = vunpack.c.l.b16 %v4960
        %v4984 = vunpack.c.l.b16 %v4961
        %v4985 = vunpack.c.l.b16 %v4962
        %v4986 = vunpack.c.l.b16 %v4963
        %v4987 = vunpack.c.l.b16 %v4964
        %v4988 = vunpack.c.l.b16 %v4965
        %v4989 = vunpack.c.l.b16 %v4966
        %v4990 = vunpack.c.l.b16 %v4967
        %v4991 = vpack.c.b16 %v4984, %v4983
        %v4992 = vpack.c.b16 %v4986, %v4985
        %v4993 = vpack.c.b16 %v4988, %v4987
        %v4994 = vpack.c.b16 %v4990, %v4989
        %v5000 = vsel %vm4696, %v4952, 0
        %v5003 = vsel %vm4696, %v4953, 0
        %v5006 = vsel %vm4696, %v4954, 0
        %v5009 = vsel %vm4696, %v4955, 0
        %v5012 = vsel %vm4696, %v4956, 0
        %v5015 = vsel %vm4696, %v4957, 0
        %v5018 = vsel %vm4696, %v4958, 0
        %v5021 = vsel %vm4696, %v4959, 0
        %5023 = vmatprep.subr.bf16.mxu0 0
        %5024 = vmatpush1.bf16.msra.mxu0 0
        %5025 = vmatprep.subr.bf16.mxu0 0
        %5026 = vmatpush1.bf16.msra.mxu0 0
        %5027 = vmatprep.subr.bf16.mxu0 0
        %5028 = vmatpush1.bf16.msra.mxu0 0
        %5029 = vmatprep.subr.bf16.mxu0 0
        %5030 = vmatpush1.bf16.msra.mxu0 0
        %5031 = vmatprep.subr.bf16.mxu0 0
        %5032 = vmatpush1.bf16.msra.mxu0 %v4994
        %5033 = vmatprep.subr.bf16.mxu0 0
        %5034 = vmatpush1.bf16.msra.mxu0 %v4993
        %5035 = vmatprep.subr.bf16.mxu0 0
        %5036 = vmatpush1.bf16.msra.mxu0 %v4992
        %5037 = vmatprep.subr.bf16.mxu0 0
        %5038 = vmatpush1.bf16.msra.mxu0 %v4991
        %5039 = vmatprep.subr.bf16.mxu0 0
        %5040 = vmatpush2.bf16.msra.mxu0 0
        %5041 = vmatprep.subr.bf16.mxu0 0
        %5042 = vmatpush2.bf16.msra.mxu0 0
        %5043 = vmatprep.subr.bf16.mxu0 0
        %5044 = vmatpush2.bf16.msra.mxu0 0
        %5045 = vmatprep.subr.bf16.mxu0 0
        %5046 = vmatpush2.bf16.msra.mxu0 0
        %5047 = vmatprep.subr.bf16.mxu0 0
        %5048 = vmatpush2.bf16.msra.mxu0 0
        %5049 = vmatprep.subr.bf16.mxu0 0
        %5050 = vmatpush2.bf16.msra.mxu0 0
        %5051 = vmatprep.subr.bf16.mxu0 0
        %5052 = vmatpush2.bf16.msra.mxu0 0
        %5053 = vmatprep.subr.bf16.mxu0 0
        %5054 = vmatpush2.bf16.msra.mxu0 0
        %5055 = vmatprep.mubr.bf16.mxu0 0
        %5056 = vmatmul.mubr.bf16.gmra.mxu0 %v5000
        %v5057 = vpop.f32.mrf.mxu0
        %v5058 = vadd.f32 %v4973, %v5057
        %v5059 = vpop.f32.mrf.mxu0
        %v5060 = vpop.f32.mrf.mxu0
        %v5061 = vadd.f32 %v4973, %v5060
        %v5062 = vpop.f32.mrf.mxu0
        %5063 = vmatprep.mubr.bf16.mxu0 0
        %5064 = vmatmul.mubr.bf16.gmra.mxu0 %v5003
        %v5065 = vpop.f32.mrf.mxu0
        %v5066 = vadd.f32 %v4973, %v5065
        %v5067 = vpop.f32.mrf.mxu0
        %v5068 = vpop.f32.mrf.mxu0
        %v5069 = vadd.f32 %v4973, %v5068
        %v5070 = vpop.f32.mrf.mxu0
        %5071 = vmatprep.mubr.bf16.mxu0 0
        %5072 = vmatmul.mubr.bf16.gmra.mxu0 %v5006
        %v5073 = vpop.f32.mrf.mxu0
        %v5074 = vadd.f32 %v4973, %v5073
        %v5075 = vpop.f32.mrf.mxu0
        %v5076 = vpop.f32.mrf.mxu0
        %v5077 = vadd.f32 %v4973, %v5076
        %v5078 = vpop.f32.mrf.mxu0
        %5079 = vmatprep.mubr.bf16.mxu0 0
        %5080 = vmatmul.mubr.bf16.gmra.mxu0 %v5009
        %v5081 = vpop.f32.mrf.mxu0
        %v5082 = vadd.f32 %v4973, %v5081
        %v5083 = vpop.f32.mrf.mxu0
        %v5084 = vpop.f32.mrf.mxu0
        %v5085 = vadd.f32 %v4973, %v5084
        %v5086 = vpop.f32.mrf.mxu0
        %5087 = vmatprep.mubr.bf16.mxu0 0
        %5088 = vmatmul.mubr.bf16.gmra.mxu0 %v5012
        %v5089 = vpop.f32.mrf.mxu0
        %v5090 = vadd.f32 %v4973, %v5089
        %v5091 = vpop.f32.mrf.mxu0
        %v5092 = vpop.f32.mrf.mxu0
        %v5093 = vadd.f32 %v4973, %v5092
        %v5094 = vpop.f32.mrf.mxu0
        %5095 = vmatprep.mubr.bf16.mxu0 0
        %5096 = vmatmul.mubr.bf16.gmra.mxu0 %v5015
        %v5097 = vpop.f32.mrf.mxu0
        %v5098 = vadd.f32 %v4973, %v5097
        %v5099 = vpop.f32.mrf.mxu0
        %v5100 = vpop.f32.mrf.mxu0
        %v5101 = vadd.f32 %v4973, %v5100
        %v5102 = vpop.f32.mrf.mxu0
        %5103 = vmatprep.mubr.bf16.mxu0 0
        %5104 = vmatmul.mubr.bf16.gmra.mxu0 %v5018
        %v5105 = vpop.f32.mrf.mxu0
        %v5106 = vadd.f32 %v4973, %v5105
        %v5107 = vpop.f32.mrf.mxu0
        %v5108 = vpop.f32.mrf.mxu0
        %v5109 = vadd.f32 %v4973, %v5108
        %v5110 = vpop.f32.mrf.mxu0
        %5111 = vmatprep.mubr.bf16.mxu0 0
        %5112 = vmatmul.mubr.bf16.gmra.mxu0 %v5021
        %v5113 = vpop.f32.mrf.mxu0
        %v5114 = vadd.f32 %v4973, %v5113
        %v5115 = vpop.f32.mrf.mxu0
        %v5116 = vpop.f32.mrf.mxu0
        %v5117 = vadd.f32 %v4973, %v5116
        %v5118 = vpop.f32.mrf.mxu0
        %5119 = vdwg.mxu0
        %5120 = vst [vmem:[%s631] sm:$0xff] %v5058
        %5121 = vst [vmem:[%s631 + $0x8] sm:$0xff] %v5061
        %5122 = vst [vmem:[%s631 + $0x10] sm:$0xff] %v5066
        %5123 = vst [vmem:[%s631 + $0x18] sm:$0xff] %v5069
        %5124 = vst [vmem:[%s631 + $0x20] sm:$0xff] %v5074
        %5125 = vst [vmem:[%s631 + $0x28] sm:$0xff] %v5077
        %5126 = vst [vmem:[%s631 + $0x30] sm:$0xff] %v5082
        %5127 = vst [vmem:[%s631 + $0x38] sm:$0xff] %v5085
        %5128 = vst [vmem:[%s631 + $0x40] sm:$0xff] %v5090
        %5129 = vst [vmem:[%s631 + $0x48] sm:$0xff] %v5093
        %5130 = vst [vmem:[%s631 + $0x50] sm:$0xff] %v5098
        %5131 = vst [vmem:[%s631 + $0x58] sm:$0xff] %v5101
        %5132 = vst [vmem:[%s631 + $0x60] sm:$0xff] %v5106
        %5133 = vst [vmem:[%s631 + $0x68] sm:$0xff] %v5109
        %5134 = vst [vmem:[%s631 + $0x70] sm:$0xff] %v5114
        %5135 = vst [vmem:[%s631 + $0x78] sm:$0xff] %v5117
        %s5136 = sand.u32 %s451, 1
        %s5137 = scalar_lea.sflag [#allocation4], %s5136
        %s5138 = sand.u32 %s451, 1
        %s5139 = smul.addr %s5138, 128
        %s5140 = scalar_lea.vmem [#allocation5], %s5139
        // Predicated region
        $region101: #{tpu_custom_call.1} parent=95 // pred_check
          %p5141 = pneg %p461
        $region102: #{tpu_custom_call.1} parent=95 // pred_check_branch
          %5143 = sbr.rel (%p5141) target = $region104
        $region103: #{tpu_custom_call.1} parent=95 // pred_region
          %s5144 = smul.u32 8, %s34
          %s5146 = ssub.s32 2048, 2048
          %5147 = vsyncadd %s5137, %s5146
          %s5148 = smul.addr %s5144, 2
          %s5149 = smul.addr %s5148, 128
          %s5150 = scalar_lea.hbm %s19, %s5149
          %s5151 = sshll.u32 %s5140, 4
          %s5152 = int_to_ptr.vmem [resolvable:$true] %s5151
          %5157 = dma.vmem_to_hbm [thread:$0]  %s5152, 2048, %s5150, %s5137, 128, 128, 8
        $region104: #{tpu_custom_call.1} parent=95 // pred_fallthru
          _
      $region96: #{tpu_custom_call.1} parent=5 // pred_fallthru
        _
      %p5158 = scmp.le.s32.totalorder 2, %s29
      // Predicated region
      $region105: #{tpu_custom_call.1} parent=5 // pred_check
        %p5159 = pneg %p5158
      $region106: #{tpu_custom_call.1} parent=5 // pred_check_branch
        %5161 = sbr.rel (%p5159) target = $region108
      $region107: #{tpu_custom_call.1} parent=5 // pred_region
        %s5162 = ssub.s32 %s29, 2
        // Predicated region
        $region109: #{tpu_custom_call.1} parent=107 // pred_check
          %p5163 = pneg %p467
        $region110: #{tpu_custom_call.1} parent=107 // pred_check_branch
          %5165 = sbr.rel (%p5163) target = $region112
        $region111: #{tpu_custom_call.1} parent=107 // pred_region
          %s5166 = sand.u32 %s452, 1
          %s5167 = scalar_lea.sflag [#allocation4], %s5166
          %s5168 = sand.u32 %s452, 1
          %s5169 = smul.addr %s5168, 128
          %s5170 = scalar_lea.vmem [#allocation5], %s5169
          %5171 = dma.done %s5167, 2048
        $region112: #{tpu_custom_call.1} parent=107 // pred_fallthru
          _
      $region108: #{tpu_custom_call.1} parent=5 // pred_fallthru
        _
    $region6: #{tpu_custom_call.1} parent=1 // loop_footer
      %s33 = sadd.s32 1, %s29
    $region7: #{tpu_custom_call.1} parent=1 // loop_footer_branch
      %28 = sbr.rel target = $region3
    $region8: #{tpu_custom_call.1} parent=1 // loop_exit
      _
    %5172 = vsyncpa [#allocation3], 1
    %s5173 = scalar_lea.sflag [#allocation3], 1
    %5174 = vsyncpa %s5173, 1
    %5175 = vsyncpa [#allocation4], 1
    %s5176 = scalar_lea.sflag [#allocation4], 1
    %5177 = vsyncpa %s5176, 1

</llo_original>
